<compile_context>
chip_gen: v7x
topology: tpu7x:2x2x1
jax: 0.10.0
libtpu: 0.0.40
codegen_flags: <defaults>
</compile_context>

<pallas_src>
import jax
import jax.numpy as jnp
from jax.experimental import pallas as pl
from jax.experimental.pallas import tpu as pltpu


def mlp_kernel(x_ref, w1t_ref, b1_ref, w2t_ref, b2_ref, o_ref):
    # x:   (tb, 20)              w1t: (20, 20) = fc1.weight^T   b1: (1, 20)
    # w2t: (20, 10) = fc2.weight^T                               b2: (1, 10)
    # o:   (tb, 10)
    x = x_ref[...]

    h = jnp.dot(x, w1t_ref[...], preferred_element_type=jnp.float32) + b1_ref[...]
    h = jnp.maximum(h, 0.0)                                   # relu(fc1(x))

    z = jnp.dot(h, w2t_ref[...], preferred_element_type=jnp.float32) + b2_ref[...]
    z = jnp.maximum(z, 0.0)                                   # relu(fc2(.))

    # log_softmax over the 10-class feature (lane) axis, max-shifted for safety.
    m = jnp.max(z, axis=-1, keepdims=True)
    shifted = z - m
    lse = jnp.log(jnp.sum(jnp.exp(shifted), axis=-1, keepdims=True))
    o_ref[...] = (shifted - lse).astype(o_ref.dtype)


def net_forward(x, w1, b1, w2, b2, *, max_single_block=4096, tb=2048):
    """x: (B, 20) f32.  w1: (20, 20), b1: (20,), w2: (10, 20), b2: (10,)
    in native PyTorch nn.Linear layout (out_features, in_features).
    Returns log_softmax(relu(relu(x @ w1^T + b1) @ w2^T + b2)) of shape (B, 10)."""
    B, f_in = x.shape
    f_hid = w1.shape[0]
    f_out = w2.shape[0]

    # Tiny one-off transposes on the weights (20x20 / 10x20) so the kernel can
    # consume x in its native (batch, feature) layout with no wrapper transpose
    # of the batch-sized arrays.
    w1t = w1.T                    # (f_in, f_hid)
    w2t = w2.T                    # (f_hid, f_out)
    b1r = b1.reshape(1, -1)       # (1, f_hid)
    b2r = b2.reshape(1, -1)       # (1, f_out)

    if B <= max_single_block:
        # Single grid step, full-array blocks: no padding, no per-step overhead.
        n_blocks = 1
        block_b = B
        b_pad = B
        x_in = x
    else:
        # Batch-tiled path for large B. Round the block count up to an even
        # number so the "parallel" axis splits evenly over v7x's 2 TensorCores.
        n_blocks = pl.cdiv(B, tb)
        if n_blocks % 2 == 1:
            n_blocks += 1
        block_b = tb
        b_pad = n_blocks * tb
        # Single pad op (rows only); padded rows yield finite values, sliced off.
        x_in = jnp.pad(x, ((0, b_pad - B), (0, 0)))

    out = pl.pallas_call(
        mlp_kernel,
        out_shape=jax.ShapeDtypeStruct((b_pad, f_out), jnp.float32),
        grid=(n_blocks,),
        in_specs=[
            pl.BlockSpec((block_b, f_in), lambda i: (i, 0)),   # x tile (moves)
            pl.BlockSpec((f_in, f_hid), lambda i: (0, 0)),     # W1^T (resident)
            pl.BlockSpec((1, f_hid), lambda i: (0, 0)),        # b1   (resident)
            pl.BlockSpec((f_hid, f_out), lambda i: (0, 0)),    # W2^T (resident)
            pl.BlockSpec((1, f_out), lambda i: (0, 0)),        # b2   (resident)
        ],
        out_specs=pl.BlockSpec((block_b, f_out), lambda i: (i, 0)),
        compiler_params=pltpu.CompilerParams(
            dimension_semantics=("parallel",)   # shards batch tiles over TCs on v7x
        ),
    )(x_in, w1t, b1r, w2t, b2r)

    return out if b_pad == B else out[:B]


if __name__ == "__main__":
    key = jax.random.PRNGKey(0)
    kx, k1, k2, k3, k4 = jax.random.split(key, 5)

    # PyTorch nn.Linear parameter shapes: fc1.weight (20, 20), fc2.weight (10, 20).
    bound = 1.0 / jnp.sqrt(20.0)
    w1 = jax.random.uniform(k1, (20, 20), jnp.float32, -bound, bound)
    b1 = jax.random.uniform(k2, (20,), jnp.float32, -bound, bound)
    w2 = jax.random.uniform(k3, (10, 20), jnp.float32, -bound, bound)
    b2 = jax.random.uniform(k4, (10,), jnp.float32, -bound, bound)

    def ref_forward(xv):
        h = jnp.maximum(xv @ w1.T + b1, 0.0)
        z = jnp.maximum(h @ w2.T + b2, 0.0)
        return jax.nn.log_softmax(z, axis=1)

    # 1) Small batch -> single-block path (no padding, no wrapper layout ops).
    x_small = jax.random.normal(kx, (1500, 20), dtype=jnp.float32)
    out_small = jax.block_until_ready(net_forward(x_small, w1, b1, w2, b2))
    assert out_small.shape == (1500, 10)
    assert jnp.allclose(out_small, ref_forward(x_small), atol=1e-5, rtol=1e-5), \
        "mismatch vs reference (single-block path)"

    # 2) Larger batch -> tiled path (tb=2048, even block count for v7x megacore).
    x_large = jax.random.normal(kx, (5000, 20), dtype=jnp.float32)
    out_large = jax.block_until_ready(net_forward(x_large, w1, b1, w2, b2))
    assert out_large.shape == (5000, 10)
    assert jnp.allclose(out_large, ref_forward(x_large), atol=1e-5, rtol=1e-5), \
        "mismatch vs reference (tiled path)"

    print("KERNEL_OK")
</pallas_src>

<mosaic_0001>
module attributes {stable_mosaic.version = 11 : i64} {
  func.func @mlp_kernel(%arg0: i32, %arg1: memref<1500x20xf32, #tpu.memory_space<vmem>>, %arg2: memref<20x20xf32, #tpu.memory_space<vmem>>, %arg3: memref<1x20xf32, #tpu.memory_space<vmem>>, %arg4: memref<20x10xf32, #tpu.memory_space<vmem>>, %arg5: memref<1x10xf32, #tpu.memory_space<vmem>>, %arg6: memref<1500x10xf32, #tpu.memory_space<vmem>>) attributes {dimension_semantics = [#tpu.dimension_semantics<parallel>], iteration_bounds = array<i64: 1>, scalar_prefetch = 0 : i64, scratch_operands = 0 : i64, tpu.core_type = #tpu.core_type<tc>, window_params = [{transform_indices = @transform_0, window_bounds = array<i64: 1500, 20>}, {pipeline_mode = #tpu.pipeline_mode<synchronous>, transform_indices = @transform_1, window_bounds = array<i64: 20, 20>}, {pipeline_mode = #tpu.pipeline_mode<synchronous>, transform_indices = @transform_2, window_bounds = array<i64: 1, 20>}, {pipeline_mode = #tpu.pipeline_mode<synchronous>, transform_indices = @transform_3, window_bounds = array<i64: 20, 10>}, {pipeline_mode = #tpu.pipeline_mode<synchronous>, transform_indices = @transform_4, window_bounds = array<i64: 1, 10>}, {transform_indices = @transform_5, window_bounds = array<i64: 1500, 10>}]} {
    %c0 = arith.constant 0 : index
    %c0_0 = arith.constant 0 : index
    %0 = vector.load %arg1[%c0, %c0_0] : memref<1500x20xf32, #tpu.memory_space<vmem>>, vector<1500x20xf32>
    %c0_1 = arith.constant 0 : index
    %c0_2 = arith.constant 0 : index
    %1 = vector.load %arg2[%c0_1, %c0_2] : memref<20x20xf32, #tpu.memory_space<vmem>>, vector<20x20xf32>
    %cst = arith.constant dense<0.000000e+00> : vector<1500x20xf32>
    %2 = tpu.matmul %0, %1, %cst {dimension_numbers = #tpu.dot_dimension_numbers<[1], [0], [0], [1], [0, 0, 1, 1], [], []>} : vector<1500x20xf32>, vector<20x20xf32>, vector<1500x20xf32> -> vector<1500x20xf32>
    %c0_3 = arith.constant 0 : index
    %c0_4 = arith.constant 0 : index
    %3 = vector.load %arg3[%c0_3, %c0_4] : memref<1x20xf32, #tpu.memory_space<vmem>>, vector<1x20xf32>
    %4 = vector.broadcast %3 : vector<1x20xf32> to vector<1500x20xf32>
    %5 = arith.addf %2, %4 : vector<1500x20xf32>
    %cst_5 = arith.constant 0.000000e+00 : f32
    %6 = vector.broadcast %cst_5 : f32 to vector<1500x20xf32>
    %7 = arith.maximumf %5, %6 : vector<1500x20xf32>
    %c0_6 = arith.constant 0 : index
    %c0_7 = arith.constant 0 : index
    %8 = vector.load %arg4[%c0_6, %c0_7] : memref<20x10xf32, #tpu.memory_space<vmem>>, vector<20x10xf32>
    %cst_8 = arith.constant dense<0.000000e+00> : vector<1500x10xf32>
    %9 = tpu.matmul %7, %8, %cst_8 {dimension_numbers = #tpu.dot_dimension_numbers<[1], [0], [0], [1], [0, 0, 1, 1], [], []>} : vector<1500x20xf32>, vector<20x10xf32>, vector<1500x10xf32> -> vector<1500x10xf32>
    %c0_9 = arith.constant 0 : index
    %c0_10 = arith.constant 0 : index
    %10 = vector.load %arg5[%c0_9, %c0_10] : memref<1x10xf32, #tpu.memory_space<vmem>>, vector<1x10xf32>
    %11 = vector.broadcast %10 : vector<1x10xf32> to vector<1500x10xf32>
    %12 = arith.addf %9, %11 : vector<1500x10xf32>
    %cst_11 = arith.constant 0.000000e+00 : f32
    %13 = vector.broadcast %cst_11 : f32 to vector<1500x10xf32>
    %14 = arith.maximumf %12, %13 : vector<1500x10xf32>
    %cst_12 = arith.constant dense<0xFF800000> : vector<1500xf32>
    %15 = vector.multi_reduction <maximumf>, %14, %cst_12 [1] : vector<1500x10xf32> to vector<1500xf32>
    %16 = vector.shape_cast %15 : vector<1500xf32> to vector<1500x1xf32>
    %17 = vector.broadcast %16 : vector<1500x1xf32> to vector<1500x10xf32>
    %18 = arith.subf %14, %17 : vector<1500x10xf32>
    %19 = math.exp %18 : vector<1500x10xf32>
    %cst_13 = arith.constant dense<0.000000e+00> : vector<1500xf32>
    %20 = vector.multi_reduction <add>, %19, %cst_13 [1] : vector<1500x10xf32> to vector<1500xf32>
    %21 = vector.shape_cast %20 : vector<1500xf32> to vector<1500x1xf32>
    %22 = math.log %21 : vector<1500x1xf32>
    %23 = vector.broadcast %22 : vector<1500x1xf32> to vector<1500x10xf32>
    %24 = arith.subf %18, %23 : vector<1500x10xf32>
    %c0_14 = arith.constant 0 : index
    %c0_15 = arith.constant 0 : index
    %25 = vector.load %arg6[%c0_14, %c0_15] : memref<1500x10xf32, #tpu.memory_space<vmem>>, vector<1500x10xf32>
    tpu.vector_store %arg6[%c0_14, %c0_15], %24 {strides = array<i32>} : memref<1500x10xf32, #tpu.memory_space<vmem>>, vector<1500x10xf32>,
    return
  }
  func.func @transform_0(%arg0: i32) -> (i32, i32) {
    %c0_i32 = arith.constant 0 : i32
    %c0_i32_0 = arith.constant 0 : i32
    return %arg0, %c0_i32 : i32, i32
  }
  func.func @transform_1(%arg0: i32) -> (i32, i32) {
    %c0_i32 = arith.constant 0 : i32
    %c0_i32_0 = arith.constant 0 : i32
    %c0_i32_1 = arith.constant 0 : i32
    return %c0_i32, %c0_i32_0 : i32, i32
  }
  func.func @transform_2(%arg0: i32) -> (i32, i32) {
    %c0_i32 = arith.constant 0 : i32
    %c0_i32_0 = arith.constant 0 : i32
    %c0_i32_1 = arith.constant 0 : i32
    return %c0_i32, %c0_i32_0 : i32, i32
  }
  func.func @transform_3(%arg0: i32) -> (i32, i32) {
    %c0_i32 = arith.constant 0 : i32
    %c0_i32_0 = arith.constant 0 : i32
    %c0_i32_1 = arith.constant 0 : i32
    return %c0_i32, %c0_i32_0 : i32, i32
  }
  func.func @transform_4(%arg0: i32) -> (i32, i32) {
    %c0_i32 = arith.constant 0 : i32
    %c0_i32_0 = arith.constant 0 : i32
    %c0_i32_1 = arith.constant 0 : i32
    return %c0_i32, %c0_i32_0 : i32, i32
  }
  func.func @transform_5(%arg0: i32) -> (i32, i32) {
    %c0_i32 = arith.constant 0 : i32
    %c0_i32_0 = arith.constant 0 : i32
    return %arg0, %c0_i32 : i32, i32
  }
}

</mosaic_0001>

<llo_original>
// kernel: tpu_custom_call.1
$region0: #{tpu_custom_call.1}
  #allocation0 [shape = 'u32[]', space=smem, size = 0x4, offset = 0x4, fixed_abs, tag = 'smem constant byte address 0x4 - core index']
  #allocation1 [shape = 'u32[144,128]{1,0:T(1,128)}', space=vmem, size = 0x12000, scoped, tag = 'internal scratch']
  %s0 = inlined_call_operand.vmem [shape: f32[1500,20], index: 0, kind: input, shape index: {}]
  %s1 = inlined_call_operand.vmem [shape: f32[20,20], index: 1, kind: input, shape index: {}]
  %s2 = inlined_call_operand.vmem [shape: f32[1,20], index: 2, kind: input, shape index: {}]
  %s3 = inlined_call_operand.vmem [shape: f32[20,10], index: 3, kind: input, shape index: {}]
  %s4 = inlined_call_operand.vmem [shape: f32[1,10], index: 4, kind: input, shape index: {}]
  %s5 = inlined_call_operand.vmem [shape: f32[1500,10], index: 5, kind: output, shape index: {}]
  %s6 = sld [smem:[#allocation0]]
  $region30: #{tpu_custom_call.1} parent=0
    _
  %s8 = ssub.s32 1, %s6
  %s9 = scalar_select 0, %s8, %s6
  // Predicated region
  $region2: #{tpu_custom_call.1} parent=0 // pred_check
    _
  $region3: #{tpu_custom_call.1} parent=0 // pred_check_branch
    %11 = sbr.rel (0) target = $region5
  $region4: #{tpu_custom_call.1} parent=0 // pred_region
    _
  $region5: #{tpu_custom_call.1} parent=0 // pred_fallthru
    _
  // Predicated region
  $region6: #{tpu_custom_call.1} parent=0 // pred_check
    _
  $region7: #{tpu_custom_call.1} parent=0 // pred_check_branch
    %13 = sbr.rel (0) target = $region9
  $region8: #{tpu_custom_call.1} parent=0 // pred_region
    _
  $region9: #{tpu_custom_call.1} parent=0 // pred_fallthru
    _
  // Predicated region
  $region10: #{tpu_custom_call.1} parent=0 // pred_check
    _
  $region11: #{tpu_custom_call.1} parent=0 // pred_check_branch
    %15 = sbr.rel (0) target = $region13
  $region12: #{tpu_custom_call.1} parent=0 // pred_region
    _
  $region13: #{tpu_custom_call.1} parent=0 // pred_fallthru
    _
  // Predicated region
  $region14: #{tpu_custom_call.1} parent=0 // pred_check
    _
  $region15: #{tpu_custom_call.1} parent=0 // pred_check_branch
    %17 = sbr.rel (0) target = $region17
  $region16: #{tpu_custom_call.1} parent=0 // pred_region
    _
  $region17: #{tpu_custom_call.1} parent=0 // pred_fallthru
    _
  // Predicated region
  $region18: #{tpu_custom_call.1} parent=0 // pred_check
    _
  $region19: #{tpu_custom_call.1} parent=0 // pred_check_branch
    %19 = sbr.rel (0) target = $region21
  $region20: #{tpu_custom_call.1} parent=0 // pred_region
    _
  $region21: #{tpu_custom_call.1} parent=0 // pred_fallthru
    _
  %v20 = vld [vmem:[%s0] sm:$0xff]
  %v21 = vld [vmem:[%s0 + $0x8] sm:$0xff]
  %v22 = vld [vmem:[%s0 + $0x10] sm:$0xff]
  %v23 = vld [vmem:[%s0 + $0x18] sm:$0xff]
  %v24 = vld [vmem:[%s0 + $0x20] sm:$0xff]
  %v25 = vld [vmem:[%s0 + $0x28] sm:$0xff]
  %v26 = vld [vmem:[%s0 + $0x30] sm:$0xff]
  %v27 = vld [vmem:[%s0 + $0x38] sm:$0xff]
  %v28 = vld [vmem:[%s0 + $0x40] sm:$0xff]
  %v29 = vld [vmem:[%s0 + $0x48] sm:$0xff]
  %v30 = vld [vmem:[%s0 + $0x50] sm:$0xff]
  %v31 = vld [vmem:[%s0 + $0x58] sm:$0xff]
  %v32 = vld [vmem:[%s0 + $0x60] sm:$0xff]
  %v33 = vld [vmem:[%s0 + $0x68] sm:$0xff]
  %v34 = vld [vmem:[%s0 + $0x70] sm:$0xff]
  %v35 = vld [vmem:[%s0 + $0x78] sm:$0xff]
  %v36 = vld [vmem:[%s0 + $0x80] sm:$0xff]
  %v37 = vld [vmem:[%s0 + $0x88] sm:$0xff]
  %v38 = vld [vmem:[%s0 + $0x90] sm:$0xff]
  %v39 = vld [vmem:[%s0 + $0x98] sm:$0xff]
  %v40 = vld [vmem:[%s0 + $0xa0] sm:$0xff]
  %v41 = vld [vmem:[%s0 + $0xa8] sm:$0xff]
  %v42 = vld [vmem:[%s0 + $0xb0] sm:$0xff]
  %v43 = vld [vmem:[%s0 + $0xb8] sm:$0xff]
  %v44 = vld [vmem:[%s0 + $0xc0] sm:$0xff]
  %v45 = vld [vmem:[%s0 + $0xc8] sm:$0xff]
  %v46 = vld [vmem:[%s0 + $0xd0] sm:$0xff]
  %v47 = vld [vmem:[%s0 + $0xd8] sm:$0xff]
  %v48 = vld [vmem:[%s0 + $0xe0] sm:$0xff]
  %v49 = vld [vmem:[%s0 + $0xe8] sm:$0xff]
  %v50 = vld [vmem:[%s0 + $0xf0] sm:$0xff]
  %v51 = vld [vmem:[%s0 + $0xf8] sm:$0xff]
  %v52 = vld [vmem:[%s0 + $0x100] sm:$0xff]
  %v53 = vld [vmem:[%s0 + $0x108] sm:$0xff]
  %v54 = vld [vmem:[%s0 + $0x110] sm:$0xff]
  %v55 = vld [vmem:[%s0 + $0x118] sm:$0xff]
  %v56 = vld [vmem:[%s0 + $0x120] sm:$0xff]
  %v57 = vld [vmem:[%s0 + $0x128] sm:$0xff]
  %v58 = vld [vmem:[%s0 + $0x130] sm:$0xff]
  %v59 = vld [vmem:[%s0 + $0x138] sm:$0xff]
  %v60 = vld [vmem:[%s0 + $0x140] sm:$0xff]
  %v61 = vld [vmem:[%s0 + $0x148] sm:$0xff]
  %v62 = vld [vmem:[%s0 + $0x150] sm:$0xff]
  %v63 = vld [vmem:[%s0 + $0x158] sm:$0xff]
  %v64 = vld [vmem:[%s0 + $0x160] sm:$0xff]
  %v65 = vld [vmem:[%s0 + $0x168] sm:$0xff]
  %v66 = vld [vmem:[%s0 + $0x170] sm:$0xff]
  %v67 = vld [vmem:[%s0 + $0x178] sm:$0xff]
  %v68 = vld [vmem:[%s0 + $0x180] sm:$0xff]
  %v69 = vld [vmem:[%s0 + $0x188] sm:$0xff]
  %v70 = vld [vmem:[%s0 + $0x190] sm:$0xff]
  %v71 = vld [vmem:[%s0 + $0x198] sm:$0xff]
  %v72 = vld [vmem:[%s0 + $0x1a0] sm:$0xff]
  %v73 = vld [vmem:[%s0 + $0x1a8] sm:$0xff]
  %v74 = vld [vmem:[%s0 + $0x1b0] sm:$0xff]
  %v75 = vld [vmem:[%s0 + $0x1b8] sm:$0xff]
  %v76 = vld [vmem:[%s0 + $0x1c0] sm:$0xff]
  %v77 = vld [vmem:[%s0 + $0x1c8] sm:$0xff]
  %v78 = vld [vmem:[%s0 + $0x1d0] sm:$0xff]
  %v79 = vld [vmem:[%s0 + $0x1d8] sm:$0xff]
  %v80 = vld [vmem:[%s0 + $0x1e0] sm:$0xff]
  %v81 = vld [vmem:[%s0 + $0x1e8] sm:$0xff]
  %v82 = vld [vmem:[%s0 + $0x1f0] sm:$0xff]
  %v83 = vld [vmem:[%s0 + $0x1f8] sm:$0xff]
  %v84 = vld [vmem:[%s0 + $0x200] sm:$0xff]
  %v85 = vld [vmem:[%s0 + $0x208] sm:$0xff]
  %v86 = vld [vmem:[%s0 + $0x210] sm:$0xff]
  %v87 = vld [vmem:[%s0 + $0x218] sm:$0xff]
  %v88 = vld [vmem:[%s0 + $0x220] sm:$0xff]
  %v89 = vld [vmem:[%s0 + $0x228] sm:$0xff]
  %v90 = vld [vmem:[%s0 + $0x230] sm:$0xff]
  %v91 = vld [vmem:[%s0 + $0x238] sm:$0xff]
  %v92 = vld [vmem:[%s0 + $0x240] sm:$0xff]
  %v93 = vld [vmem:[%s0 + $0x248] sm:$0xff]
  %v94 = vld [vmem:[%s0 + $0x250] sm:$0xff]
  %v95 = vld [vmem:[%s0 + $0x258] sm:$0xff]
  %v96 = vld [vmem:[%s0 + $0x260] sm:$0xff]
  %v97 = vld [vmem:[%s0 + $0x268] sm:$0xff]
  %v98 = vld [vmem:[%s0 + $0x270] sm:$0xff]
  %v99 = vld [vmem:[%s0 + $0x278] sm:$0xff]
  %v100 = vld [vmem:[%s0 + $0x280] sm:$0xff]
  %v101 = vld [vmem:[%s0 + $0x288] sm:$0xff]
  %v102 = vld [vmem:[%s0 + $0x290] sm:$0xff]
  %v103 = vld [vmem:[%s0 + $0x298] sm:$0xff]
  %v104 = vld [vmem:[%s0 + $0x2a0] sm:$0xff]
  %v105 = vld [vmem:[%s0 + $0x2a8] sm:$0xff]
  %v106 = vld [vmem:[%s0 + $0x2b0] sm:$0xff]
  %v107 = vld [vmem:[%s0 + $0x2b8] sm:$0xff]
  %v108 = vld [vmem:[%s0 + $0x2c0] sm:$0xff]
  %v109 = vld [vmem:[%s0 + $0x2c8] sm:$0xff]
  %v110 = vld [vmem:[%s0 + $0x2d0] sm:$0xff]
  %v111 = vld [vmem:[%s0 + $0x2d8] sm:$0xff]
  %v112 = vld [vmem:[%s0 + $0x2e0] sm:$0xff]
  %v113 = vld [vmem:[%s0 + $0x2e8] sm:$0xff]
  %v114 = vld [vmem:[%s0 + $0x2f0] sm:$0xff]
  %v115 = vld [vmem:[%s0 + $0x2f8] sm:$0xff]
  %v116 = vld [vmem:[%s0 + $0x300] sm:$0xff]
  %v117 = vld [vmem:[%s0 + $0x308] sm:$0xff]
  %v118 = vld [vmem:[%s0 + $0x310] sm:$0xff]
  %v119 = vld [vmem:[%s0 + $0x318] sm:$0xff]
  %v120 = vld [vmem:[%s0 + $0x320] sm:$0xff]
  %v121 = vld [vmem:[%s0 + $0x328] sm:$0xff]
  %v122 = vld [vmem:[%s0 + $0x330] sm:$0xff]
  %v123 = vld [vmem:[%s0 + $0x338] sm:$0xff]
  %v124 = vld [vmem:[%s0 + $0x340] sm:$0xff]
  %v125 = vld [vmem:[%s0 + $0x348] sm:$0xff]
  %v126 = vld [vmem:[%s0 + $0x350] sm:$0xff]
  %v127 = vld [vmem:[%s0 + $0x358] sm:$0xff]
  %v128 = vld [vmem:[%s0 + $0x360] sm:$0xff]
  %v129 = vld [vmem:[%s0 + $0x368] sm:$0xff]
  %v130 = vld [vmem:[%s0 + $0x370] sm:$0xff]
  %v131 = vld [vmem:[%s0 + $0x378] sm:$0xff]
  %v132 = vld [vmem:[%s0 + $0x380] sm:$0xff]
  %v133 = vld [vmem:[%s0 + $0x388] sm:$0xff]
  %v134 = vld [vmem:[%s0 + $0x390] sm:$0xff]
  %v135 = vld [vmem:[%s0 + $0x398] sm:$0xff]
  %v136 = vld [vmem:[%s0 + $0x3a0] sm:$0xff]
  %v137 = vld [vmem:[%s0 + $0x3a8] sm:$0xff]
  %v138 = vld [vmem:[%s0 + $0x3b0] sm:$0xff]
  %v139 = vld [vmem:[%s0 + $0x3b8] sm:$0xff]
  %v140 = vld [vmem:[%s0 + $0x3c0] sm:$0xff]
  %v141 = vld [vmem:[%s0 + $0x3c8] sm:$0xff]
  %v142 = vld [vmem:[%s0 + $0x3d0] sm:$0xff]
  %v143 = vld [vmem:[%s0 + $0x3d8] sm:$0xff]
  %v144 = vld [vmem:[%s0 + $0x3e0] sm:$0xff]
  %v145 = vld [vmem:[%s0 + $0x3e8] sm:$0xff]
  %v146 = vld [vmem:[%s0 + $0x3f0] sm:$0xff]
  %v147 = vld [vmem:[%s0 + $0x3f8] sm:$0xff]
  %v148 = vld [vmem:[%s0 + $0x400] sm:$0xff]
  %v149 = vld [vmem:[%s0 + $0x408] sm:$0xff]
  %v150 = vld [vmem:[%s0 + $0x410] sm:$0xff]
  %v151 = vld [vmem:[%s0 + $0x418] sm:$0xff]
  %v152 = vld [vmem:[%s0 + $0x420] sm:$0xff]
  %v153 = vld [vmem:[%s0 + $0x428] sm:$0xff]
  %v154 = vld [vmem:[%s0 + $0x430] sm:$0xff]
  %v155 = vld [vmem:[%s0 + $0x438] sm:$0xff]
  %v156 = vld [vmem:[%s0 + $0x440] sm:$0xff]
  %v157 = vld [vmem:[%s0 + $0x448] sm:$0xff]
  %v158 = vld [vmem:[%s0 + $0x450] sm:$0xff]
  %v159 = vld [vmem:[%s0 + $0x458] sm:$0xff]
  %v160 = vld [vmem:[%s0 + $0x460] sm:$0xff]
  %v161 = vld [vmem:[%s0 + $0x468] sm:$0xff]
  %v162 = vld [vmem:[%s0 + $0x470] sm:$0xff]
  %v163 = vld [vmem:[%s0 + $0x478] sm:$0xff]
  %v164 = vld [vmem:[%s0 + $0x480] sm:$0xff]
  %v165 = vld [vmem:[%s0 + $0x488] sm:$0xff]
  %v166 = vld [vmem:[%s0 + $0x490] sm:$0xff]
  %v167 = vld [vmem:[%s0 + $0x498] sm:$0xff]
  %v168 = vld [vmem:[%s0 + $0x4a0] sm:$0xff]
  %v169 = vld [vmem:[%s0 + $0x4a8] sm:$0xff]
  %v170 = vld [vmem:[%s0 + $0x4b0] sm:$0xff]
  %v171 = vld [vmem:[%s0 + $0x4b8] sm:$0xff]
  %v172 = vld [vmem:[%s0 + $0x4c0] sm:$0xff]
  %v173 = vld [vmem:[%s0 + $0x4c8] sm:$0xff]
  %v174 = vld [vmem:[%s0 + $0x4d0] sm:$0xff]
  %v175 = vld [vmem:[%s0 + $0x4d8] sm:$0xff]
  %v176 = vld [vmem:[%s0 + $0x4e0] sm:$0xff]
  %v177 = vld [vmem:[%s0 + $0x4e8] sm:$0xff]
  %v178 = vld [vmem:[%s0 + $0x4f0] sm:$0xff]
  %v179 = vld [vmem:[%s0 + $0x4f8] sm:$0xff]
  %v180 = vld [vmem:[%s0 + $0x500] sm:$0xff]
  %v181 = vld [vmem:[%s0 + $0x508] sm:$0xff]
  %v182 = vld [vmem:[%s0 + $0x510] sm:$0xff]
  %v183 = vld [vmem:[%s0 + $0x518] sm:$0xff]
  %v184 = vld [vmem:[%s0 + $0x520] sm:$0xff]
  %v185 = vld [vmem:[%s0 + $0x528] sm:$0xff]
  %v186 = vld [vmem:[%s0 + $0x530] sm:$0xff]
  %v187 = vld [vmem:[%s0 + $0x538] sm:$0xff]
  %v188 = vld [vmem:[%s0 + $0x540] sm:$0xff]
  %v189 = vld [vmem:[%s0 + $0x548] sm:$0xff]
  %v190 = vld [vmem:[%s0 + $0x550] sm:$0xff]
  %v191 = vld [vmem:[%s0 + $0x558] sm:$0xff]
  %v192 = vld [vmem:[%s0 + $0x560] sm:$0xff]
  %v193 = vld [vmem:[%s0 + $0x568] sm:$0xff]
  %v194 = vld [vmem:[%s0 + $0x570] sm:$0xff]
  %v195 = vld [vmem:[%s0 + $0x578] sm:$0xff]
  %v196 = vld [vmem:[%s0 + $0x580] sm:$0xff]
  %v197 = vld [vmem:[%s0 + $0x588] sm:$0xff]
  %v198 = vld [vmem:[%s0 + $0x590] sm:$0xff]
  %v199 = vld [vmem:[%s0 + $0x598] sm:$0xff]
  %v200 = vld [vmem:[%s0 + $0x5a0] sm:$0xff]
  %v201 = vld [vmem:[%s0 + $0x5a8] sm:$0xff]
  %v202 = vld [vmem:[%s0 + $0x5b0] sm:$0xff]
  %v203 = vld [vmem:[%s0 + $0x5b8] sm:$0xff]
  %v204 = vld [vmem:[%s0 + $0x5c0] sm:$0xff]
  %v205 = vld [vmem:[%s0 + $0x5c8] sm:$0xff]
  %v206 = vld [vmem:[%s0 + $0x5d0] sm:$0xff]
  %v207 = vld [vmem:[%s0 + $0x5d8] sm:$0xf]
  %v208 = vld [vmem:[%s1] sm:$0xff]
  %v209 = vld [vmem:[%s1 + $0x8] sm:$0xff]
  %v210 = vld [vmem:[%s1 + $0x10] sm:$0xf]
  %v211 = vld [vmem:[%s2] sm:$0x1]
  %v213 = vlaneseq
  %v214 = vshrl.u32 %v213, 7
  %v215 = vsub.s32 0, %v214
  %v216 = vrot.slane %v211, %v215
  %vm218 = vcmask 162816
  %v220 = vsel %vm218, %v20, 0
  %v223 = vsel %vm218, %v21, 0
  %v226 = vsel %vm218, %v22, 0
  %v229 = vsel %vm218, %v23, 0
  %v232 = vsel %vm218, %v24, 0
  %v235 = vsel %vm218, %v25, 0
  %v238 = vsel %vm218, %v26, 0
  %v241 = vsel %vm218, %v27, 0
  %v244 = vsel %vm218, %v28, 0
  %v247 = vsel %vm218, %v29, 0
  %v250 = vsel %vm218, %v30, 0
  %v253 = vsel %vm218, %v31, 0
  %v256 = vsel %vm218, %v32, 0
  %v259 = vsel %vm218, %v33, 0
  %v262 = vsel %vm218, %v34, 0
  %v265 = vsel %vm218, %v35, 0
  %v268 = vsel %vm218, %v36, 0
  %v271 = vsel %vm218, %v37, 0
  %v274 = vsel %vm218, %v38, 0
  %v277 = vsel %vm218, %v39, 0
  %v280 = vsel %vm218, %v40, 0
  %v283 = vsel %vm218, %v41, 0
  %v286 = vsel %vm218, %v42, 0
  %v289 = vsel %vm218, %v43, 0
  %v292 = vsel %vm218, %v44, 0
  %v295 = vsel %vm218, %v45, 0
  %v298 = vsel %vm218, %v46, 0
  %v301 = vsel %vm218, %v47, 0
  %v304 = vsel %vm218, %v48, 0
  %v307 = vsel %vm218, %v49, 0
  %v310 = vsel %vm218, %v50, 0
  %v313 = vsel %vm218, %v51, 0
  %v316 = vsel %vm218, %v52, 0
  %v319 = vsel %vm218, %v53, 0
  %v322 = vsel %vm218, %v54, 0
  %v325 = vsel %vm218, %v55, 0
  %v328 = vsel %vm218, %v56, 0
  %v331 = vsel %vm218, %v57, 0
  %v334 = vsel %vm218, %v58, 0
  %v337 = vsel %vm218, %v59, 0
  %v340 = vsel %vm218, %v60, 0
  %v343 = vsel %vm218, %v61, 0
  %v346 = vsel %vm218, %v62, 0
  %v349 = vsel %vm218, %v63, 0
  %v352 = vsel %vm218, %v64, 0
  %v355 = vsel %vm218, %v65, 0
  %v358 = vsel %vm218, %v66, 0
  %v361 = vsel %vm218, %v67, 0
  %v364 = vsel %vm218, %v68, 0
  %v367 = vsel %vm218, %v69, 0
  %v370 = vsel %vm218, %v70, 0
  %v373 = vsel %vm218, %v71, 0
  %v376 = vsel %vm218, %v72, 0
  %v379 = vsel %vm218, %v73, 0
  %v382 = vsel %vm218, %v74, 0
  %v385 = vsel %vm218, %v75, 0
  %v388 = vsel %vm218, %v76, 0
  %v391 = vsel %vm218, %v77, 0
  %v394 = vsel %vm218, %v78, 0
  %v397 = vsel %vm218, %v79, 0
  %v400 = vsel %vm218, %v80, 0
  %v403 = vsel %vm218, %v81, 0
  %v406 = vsel %vm218, %v82, 0
  %v409 = vsel %vm218, %v83, 0
  %v412 = vsel %vm218, %v84, 0
  %v415 = vsel %vm218, %v85, 0
  %v418 = vsel %vm218, %v86, 0
  %v421 = vsel %vm218, %v87, 0
  %v424 = vsel %vm218, %v88, 0
  %v427 = vsel %vm218, %v89, 0
  %v430 = vsel %vm218, %v90, 0
  %v433 = vsel %vm218, %v91, 0
  %v436 = vsel %vm218, %v92, 0
  %v439 = vsel %vm218, %v93, 0
  %v442 = vsel %vm218, %v94, 0
  %v445 = vsel %vm218, %v95, 0
  %v448 = vsel %vm218, %v96, 0
  %v451 = vsel %vm218, %v97, 0
  %v454 = vsel %vm218, %v98, 0
  %v457 = vsel %vm218, %v99, 0
  %v460 = vsel %vm218, %v100, 0
  %v463 = vsel %vm218, %v101, 0
  %v466 = vsel %vm218, %v102, 0
  %v469 = vsel %vm218, %v103, 0
  %v472 = vsel %vm218, %v104, 0
  %v475 = vsel %vm218, %v105, 0
  %v478 = vsel %vm218, %v106, 0
  %v481 = vsel %vm218, %v107, 0
  %v484 = vsel %vm218, %v108, 0
  %v487 = vsel %vm218, %v109, 0
  %v490 = vsel %vm218, %v110, 0
  %v493 = vsel %vm218, %v111, 0
  %v496 = vsel %vm218, %v112, 0
  %v499 = vsel %vm218, %v113, 0
  %v502 = vsel %vm218, %v114, 0
  %v505 = vsel %vm218, %v115, 0
  %v508 = vsel %vm218, %v116, 0
  %v511 = vsel %vm218, %v117, 0
  %v514 = vsel %vm218, %v118, 0
  %v517 = vsel %vm218, %v119, 0
  %v520 = vsel %vm218, %v120, 0
  %v523 = vsel %vm218, %v121, 0
  %v526 = vsel %vm218, %v122, 0
  %v529 = vsel %vm218, %v123, 0
  %v532 = vsel %vm218, %v124, 0
  %v535 = vsel %vm218, %v125, 0
  %v538 = vsel %vm218, %v126, 0
  %v541 = vsel %vm218, %v127, 0
  %v544 = vsel %vm218, %v128, 0
  %v547 = vsel %vm218, %v129, 0
  %v550 = vsel %vm218, %v130, 0
  %v553 = vsel %vm218, %v131, 0
  %v556 = vsel %vm218, %v132, 0
  %v559 = vsel %vm218, %v133, 0
  %v562 = vsel %vm218, %v134, 0
  %v565 = vsel %vm218, %v135, 0
  %v568 = vsel %vm218, %v136, 0
  %v571 = vsel %vm218, %v137, 0
  %v574 = vsel %vm218, %v138, 0
  %v577 = vsel %vm218, %v139, 0
  %v580 = vsel %vm218, %v140, 0
  %v583 = vsel %vm218, %v141, 0
  %v586 = vsel %vm218, %v142, 0
  %v589 = vsel %vm218, %v143, 0
  %v592 = vsel %vm218, %v144, 0
  %v595 = vsel %vm218, %v145, 0
  %v598 = vsel %vm218, %v146, 0
  %v601 = vsel %vm218, %v147, 0
  %v604 = vsel %vm218, %v148, 0
  %v607 = vsel %vm218, %v149, 0
  %v610 = vsel %vm218, %v150, 0
  %v613 = vsel %vm218, %v151, 0
  %v616 = vsel %vm218, %v152, 0
  %v619 = vsel %vm218, %v153, 0
  %v622 = vsel %vm218, %v154, 0
  %v625 = vsel %vm218, %v155, 0
  %v628 = vsel %vm218, %v156, 0
  %v631 = vsel %vm218, %v157, 0
  %v634 = vsel %vm218, %v158, 0
  %v637 = vsel %vm218, %v159, 0
  %v640 = vsel %vm218, %v160, 0
  %v643 = vsel %vm218, %v161, 0
  %v646 = vsel %vm218, %v162, 0
  %v649 = vsel %vm218, %v163, 0
  %v652 = vsel %vm218, %v164, 0
  %v655 = vsel %vm218, %v165, 0
  %v658 = vsel %vm218, %v166, 0
  %v661 = vsel %vm218, %v167, 0
  %v664 = vsel %vm218, %v168, 0
  %v667 = vsel %vm218, %v169, 0
  %v670 = vsel %vm218, %v170, 0
  %v673 = vsel %vm218, %v171, 0
  %v676 = vsel %vm218, %v172, 0
  %v679 = vsel %vm218, %v173, 0
  %v682 = vsel %vm218, %v174, 0
  %v685 = vsel %vm218, %v175, 0
  %v688 = vsel %vm218, %v176, 0
  %v691 = vsel %vm218, %v177, 0
  %v694 = vsel %vm218, %v178, 0
  %v697 = vsel %vm218, %v179, 0
  %v700 = vsel %vm218, %v180, 0
  %v703 = vsel %vm218, %v181, 0
  %v706 = vsel %vm218, %v182, 0
  %v709 = vsel %vm218, %v183, 0
  %v712 = vsel %vm218, %v184, 0
  %v715 = vsel %vm218, %v185, 0
  %v718 = vsel %vm218, %v186, 0
  %v721 = vsel %vm218, %v187, 0
  %v724 = vsel %vm218, %v188, 0
  %v727 = vsel %vm218, %v189, 0
  %v730 = vsel %vm218, %v190, 0
  %v733 = vsel %vm218, %v191, 0
  %v736 = vsel %vm218, %v192, 0
  %v739 = vsel %vm218, %v193, 0
  %v742 = vsel %vm218, %v194, 0
  %v745 = vsel %vm218, %v195, 0
  %v748 = vsel %vm218, %v196, 0
  %v751 = vsel %vm218, %v197, 0
  %v754 = vsel %vm218, %v198, 0
  %v757 = vsel %vm218, %v199, 0
  %v760 = vsel %vm218, %v200, 0
  %v763 = vsel %vm218, %v201, 0
  %v766 = vsel %vm218, %v202, 0
  %v769 = vsel %vm218, %v203, 0
  %v772 = vsel %vm218, %v204, 0
  %v775 = vsel %vm218, %v205, 0
  %v778 = vsel %vm218, %v206, 0
  %v781 = vsel %vm218, %v207, 0
  %vm783 = vcmask 1043456
  %v785 = vsel %vm783, %v210, 0
  %787 = vmatprep.subr.mxu0 0.0
  %788 = vmatpush1.msra.mxu0 %v208
  %789 = vmatprep.subr.mxu0 0.0
  %790 = vmatpush1.msra.mxu0 %v209
  %791 = vmatprep.subr.mxu0 0.0
  %792 = vmatpush1.msra.mxu0 %v785
  %793 = vmatprep.subr.mxu0 0.0
  %794 = vmatpush1.msra.mxu0 0.0
  %795 = vmatprep.subr.mxu0 0.0
  %796 = vmatpush1.msra.mxu0 0.0
  %797 = vmatprep.subr.mxu0 0.0
  %798 = vmatpush1.msra.mxu0 0.0
  %799 = vmatprep.subr.mxu0 0.0
  %800 = vmatpush1.msra.mxu0 0.0
  %801 = vmatprep.subr.mxu0 0.0
  %802 = vmatpush1.msra.mxu0 0.0
  %803 = vmatprep.subr.mxu0 0.0
  %804 = vmatpush1.msra.mxu0 0.0
  %805 = vmatprep.subr.mxu0 0.0
  %806 = vmatpush1.msra.mxu0 0.0
  %807 = vmatprep.subr.mxu0 0.0
  %808 = vmatpush1.msra.mxu0 0.0
  %809 = vmatprep.subr.mxu0 0.0
  %810 = vmatpush1.msra.mxu0 0.0
  %811 = vmatprep.subr.mxu0 0.0
  %812 = vmatpush1.msra.mxu0 0.0
  %813 = vmatprep.subr.mxu0 0.0
  %814 = vmatpush1.msra.mxu0 0.0
  %815 = vmatprep.subr.mxu0 0.0
  %816 = vmatpush1.msra.mxu0 0.0
  %817 = vmatprep.subr.mxu0 0.0
  %818 = vmatpush1.msra.mxu0 0.0
  %819 = vmatprep.subr.mxu0 0.0
  %820 = vmatpush1.msra.mxu0 0.0
  %821 = vmatprep.subr.mxu0 0.0
  %822 = vmatpush1.msra.mxu0 0.0
  %823 = vmatprep.subr.mxu0 0.0
  %824 = vmatpush1.msra.mxu0 0.0
  %825 = vmatprep.subr.mxu0 0.0
  %826 = vmatpush1.msra.mxu0 0.0
  %827 = vmatprep.subr.mxu0 0.0
  %828 = vmatpush1.msra.mxu0 0.0
  %829 = vmatprep.subr.mxu0 0.0
  %830 = vmatpush1.msra.mxu0 0.0
  %831 = vmatprep.subr.mxu0 0.0
  %832 = vmatpush1.msra.mxu0 0.0
  %833 = vmatprep.subr.mxu0 0.0
  %834 = vmatpush1.msra.mxu0 0.0
  %835 = vmatprep.subr.mxu0 0.0
  %836 = vmatpush1.msra.mxu0 0.0
  %837 = vmatprep.subr.mxu0 0.0
  %838 = vmatpush1.msra.mxu0 0.0
  %839 = vmatprep.subr.mxu0 0.0
  %840 = vmatpush1.msra.mxu0 0.0
  %841 = vmatprep.subr.mxu0 0.0
  %842 = vmatpush1.msra.mxu0 0.0
  %843 = vmatprep.subr.mxu0 0.0
  %844 = vmatpush1.msra.mxu0 0.0
  %845 = vmatprep.subr.mxu0 0.0
  %846 = vmatpush1.msra.mxu0 0.0
  %847 = vmatprep.subr.mxu0 0.0
  %848 = vmatpush1.msra.mxu0 0.0
  %849 = vmatprep.subr.mxu0 0.0
  %850 = vmatpush1.msra.mxu0 0.0
  %851 = vmatprep.mubr.f32.mxu0 0.0
  %852 = vmatmul.mubr.f32.gmra.mrb[0].mxu0 %v220
  %v853 = vpop.f32.mrb[0].mxu0
  %v854 = vadd.f32 %v216, %v853
  %v855 = vpop.f32.mrb[0].mxu0
  %856 = vmatprep.mubr.f32.mxu0 0.0
  %857 = vmatmul.mubr.f32.gmra.mrb[0].mxu0 %v223
  %v858 = vpop.f32.mrb[0].mxu0
  %v859 = vadd.f32 %v216, %v858
  %v860 = vpop.f32.mrb[0].mxu0
  %861 = vmatprep.mubr.f32.mxu0 0.0
  %862 = vmatmul.mubr.f32.gmra.mrb[0].mxu0 %v226
  %v863 = vpop.f32.mrb[0].mxu0
  %v864 = vadd.f32 %v216, %v863
  %v865 = vpop.f32.mrb[0].mxu0
  %866 = vmatprep.mubr.f32.mxu0 0.0
  %867 = vmatmul.mubr.f32.gmra.mrb[0].mxu0 %v229
  %v868 = vpop.f32.mrb[0].mxu0
  %v869 = vadd.f32 %v216, %v868
  %v870 = vpop.f32.mrb[0].mxu0
  %871 = vmatprep.mubr.f32.mxu0 0.0
  %872 = vmatmul.mubr.f32.gmra.mrb[0].mxu0 %v232
  %v873 = vpop.f32.mrb[0].mxu0
  %v874 = vadd.f32 %v216, %v873
  %v875 = vpop.f32.mrb[0].mxu0
  %876 = vmatprep.mubr.f32.mxu0 0.0
  %877 = vmatmul.mubr.f32.gmra.mrb[0].mxu0 %v235
  %v878 = vpop.f32.mrb[0].mxu0
  %v879 = vadd.f32 %v216, %v878
  %v880 = vpop.f32.mrb[0].mxu0
  %881 = vmatprep.mubr.f32.mxu0 0.0
  %882 = vmatmul.mubr.f32.gmra.mrb[0].mxu0 %v238
  %v883 = vpop.f32.mrb[0].mxu0
  %v884 = vadd.f32 %v216, %v883
  %v885 = vpop.f32.mrb[0].mxu0
  %886 = vmatprep.mubr.f32.mxu0 0.0
  %887 = vmatmul.mubr.f32.gmra.mrb[0].mxu0 %v241
  %v888 = vpop.f32.mrb[0].mxu0
  %v889 = vadd.f32 %v216, %v888
  %v890 = vpop.f32.mrb[0].mxu0
  %891 = vmatprep.mubr.f32.mxu0 0.0
  %892 = vmatmul.mubr.f32.gmra.mrb[0].mxu0 %v244
  %v893 = vpop.f32.mrb[0].mxu0
  %v894 = vadd.f32 %v216, %v893
  %v895 = vpop.f32.mrb[0].mxu0
  %896 = vmatprep.mubr.f32.mxu0 0.0
  %897 = vmatmul.mubr.f32.gmra.mrb[0].mxu0 %v247
  %v898 = vpop.f32.mrb[0].mxu0
  %v899 = vadd.f32 %v216, %v898
  %v900 = vpop.f32.mrb[0].mxu0
  %901 = vmatprep.mubr.f32.mxu0 0.0
  %902 = vmatmul.mubr.f32.gmra.mrb[0].mxu0 %v250
  %v903 = vpop.f32.mrb[0].mxu0
  %v904 = vadd.f32 %v216, %v903
  %v905 = vpop.f32.mrb[0].mxu0
  %906 = vmatprep.mubr.f32.mxu0 0.0
  %907 = vmatmul.mubr.f32.gmra.mrb[0].mxu0 %v253
  %v908 = vpop.f32.mrb[0].mxu0
  %v909 = vadd.f32 %v216, %v908
  %v910 = vpop.f32.mrb[0].mxu0
  %911 = vmatprep.mubr.f32.mxu0 0.0
  %912 = vmatmul.mubr.f32.gmra.mrb[0].mxu0 %v256
  %v913 = vpop.f32.mrb[0].mxu0
  %v914 = vadd.f32 %v216, %v913
  %v915 = vpop.f32.mrb[0].mxu0
  %916 = vmatprep.mubr.f32.mxu0 0.0
  %917 = vmatmul.mubr.f32.gmra.mrb[0].mxu0 %v259
  %v918 = vpop.f32.mrb[0].mxu0
  %v919 = vadd.f32 %v216, %v918
  %v920 = vpop.f32.mrb[0].mxu0
  %921 = vmatprep.mubr.f32.mxu0 0.0
  %922 = vmatmul.mubr.f32.gmra.mrb[0].mxu0 %v262
  %v923 = vpop.f32.mrb[0].mxu0
  %v924 = vadd.f32 %v216, %v923
  %v925 = vpop.f32.mrb[0].mxu0
  %926 = vmatprep.mubr.f32.mxu0 0.0
  %927 = vmatmul.mubr.f32.gmra.mrb[0].mxu0 %v265
  %v928 = vpop.f32.mrb[0].mxu0
  %v929 = vadd.f32 %v216, %v928
  %v930 = vpop.f32.mrb[0].mxu0
  %931 = vmatprep.mubr.f32.mxu0 0.0
  %932 = vmatmul.mubr.f32.gmra.mrb[0].mxu0 %v268
  %v933 = vpop.f32.mrb[0].mxu0
  %v934 = vadd.f32 %v216, %v933
  %v935 = vpop.f32.mrb[0].mxu0
  %936 = vmatprep.mubr.f32.mxu0 0.0
  %937 = vmatmul.mubr.f32.gmra.mrb[0].mxu0 %v271
  %v938 = vpop.f32.mrb[0].mxu0
  %v939 = vadd.f32 %v216, %v938
  %v940 = vpop.f32.mrb[0].mxu0
  %941 = vmatprep.mubr.f32.mxu0 0.0
  %942 = vmatmul.mubr.f32.gmra.mrb[0].mxu0 %v274
  %v943 = vpop.f32.mrb[0].mxu0
  %v944 = vadd.f32 %v216, %v943
  %v945 = vpop.f32.mrb[0].mxu0
  %946 = vmatprep.mubr.f32.mxu0 0.0
  %947 = vmatmul.mubr.f32.gmra.mrb[0].mxu0 %v277
  %v948 = vpop.f32.mrb[0].mxu0
  %v949 = vadd.f32 %v216, %v948
  %v950 = vpop.f32.mrb[0].mxu0
  %951 = vmatprep.mubr.f32.mxu0 0.0
  %952 = vmatmul.mubr.f32.gmra.mrb[0].mxu0 %v280
  %v953 = vpop.f32.mrb[0].mxu0
  %v954 = vadd.f32 %v216, %v953
  %v955 = vpop.f32.mrb[0].mxu0
  %956 = vmatprep.mubr.f32.mxu0 0.0
  %957 = vmatmul.mubr.f32.gmra.mrb[0].mxu0 %v283
  %v958 = vpop.f32.mrb[0].mxu0
  %v959 = vadd.f32 %v216, %v958
  %v960 = vpop.f32.mrb[0].mxu0
  %961 = vmatprep.mubr.f32.mxu0 0.0
  %962 = vmatmul.mubr.f32.gmra.mrb[0].mxu0 %v286
  %v963 = vpop.f32.mrb[0].mxu0
  %v964 = vadd.f32 %v216, %v963
  %v965 = vpop.f32.mrb[0].mxu0
  %966 = vmatprep.mubr.f32.mxu0 0.0
  %967 = vmatmul.mubr.f32.gmra.mrb[0].mxu0 %v289
  %v968 = vpop.f32.mrb[0].mxu0
  %v969 = vadd.f32 %v216, %v968
  %v970 = vpop.f32.mrb[0].mxu0
  %971 = vmatprep.mubr.f32.mxu0 0.0
  %972 = vmatmul.mubr.f32.gmra.mrb[0].mxu0 %v292
  %v973 = vpop.f32.mrb[0].mxu0
  %v974 = vadd.f32 %v216, %v973
  %v975 = vpop.f32.mrb[0].mxu0
  %976 = vmatprep.mubr.f32.mxu0 0.0
  %977 = vmatmul.mubr.f32.gmra.mrb[0].mxu0 %v295
  %v978 = vpop.f32.mrb[0].mxu0
  %v979 = vadd.f32 %v216, %v978
  %v980 = vpop.f32.mrb[0].mxu0
  %981 = vmatprep.mubr.f32.mxu0 0.0
  %982 = vmatmul.mubr.f32.gmra.mrb[0].mxu0 %v298
  %v983 = vpop.f32.mrb[0].mxu0
  %v984 = vadd.f32 %v216, %v983
  %v985 = vpop.f32.mrb[0].mxu0
  %986 = vmatprep.mubr.f32.mxu0 0.0
  %987 = vmatmul.mubr.f32.gmra.mrb[0].mxu0 %v301
  %v988 = vpop.f32.mrb[0].mxu0
  %v989 = vadd.f32 %v216, %v988
  %v990 = vpop.f32.mrb[0].mxu0
  %991 = vmatprep.mubr.f32.mxu0 0.0
  %992 = vmatmul.mubr.f32.gmra.mrb[0].mxu0 %v304
  %v993 = vpop.f32.mrb[0].mxu0
  %v994 = vadd.f32 %v216, %v993
  %v995 = vpop.f32.mrb[0].mxu0
  %996 = vmatprep.mubr.f32.mxu0 0.0
  %997 = vmatmul.mubr.f32.gmra.mrb[0].mxu0 %v307
  %v998 = vpop.f32.mrb[0].mxu0
  %v999 = vadd.f32 %v216, %v998
  %v1000 = vpop.f32.mrb[0].mxu0
  %1001 = vmatprep.mubr.f32.mxu0 0.0
  %1002 = vmatmul.mubr.f32.gmra.mrb[0].mxu0 %v310
  %v1003 = vpop.f32.mrb[0].mxu0
  %v1004 = vadd.f32 %v216, %v1003
  %v1005 = vpop.f32.mrb[0].mxu0
  %1006 = vmatprep.mubr.f32.mxu0 0.0
  %1007 = vmatmul.mubr.f32.gmra.mrb[0].mxu0 %v313
  %v1008 = vpop.f32.mrb[0].mxu0
  %v1009 = vadd.f32 %v216, %v1008
  %v1010 = vpop.f32.mrb[0].mxu0
  %1011 = vmatprep.mubr.f32.mxu0 0.0
  %1012 = vmatmul.mubr.f32.gmra.mrb[0].mxu0 %v316
  %v1013 = vpop.f32.mrb[0].mxu0
  %v1014 = vadd.f32 %v216, %v1013
  %v1015 = vpop.f32.mrb[0].mxu0
  %1016 = vmatprep.mubr.f32.mxu0 0.0
  %1017 = vmatmul.mubr.f32.gmra.mrb[0].mxu0 %v319
  %v1018 = vpop.f32.mrb[0].mxu0
  %v1019 = vadd.f32 %v216, %v1018
  %v1020 = vpop.f32.mrb[0].mxu0
  %1021 = vmatprep.mubr.f32.mxu0 0.0
  %1022 = vmatmul.mubr.f32.gmra.mrb[0].mxu0 %v322
  %v1023 = vpop.f32.mrb[0].mxu0
  %v1024 = vadd.f32 %v216, %v1023
  %v1025 = vpop.f32.mrb[0].mxu0
  %1026 = vmatprep.mubr.f32.mxu0 0.0
  %1027 = vmatmul.mubr.f32.gmra.mrb[0].mxu0 %v325
  %v1028 = vpop.f32.mrb[0].mxu0
  %v1029 = vadd.f32 %v216, %v1028
  %v1030 = vpop.f32.mrb[0].mxu0
  %1031 = vmatprep.mubr.f32.mxu0 0.0
  %1032 = vmatmul.mubr.f32.gmra.mrb[0].mxu0 %v328
  %v1033 = vpop.f32.mrb[0].mxu0
  %v1034 = vadd.f32 %v216, %v1033
  %v1035 = vpop.f32.mrb[0].mxu0
  %1036 = vmatprep.mubr.f32.mxu0 0.0
  %1037 = vmatmul.mubr.f32.gmra.mrb[0].mxu0 %v331
  %v1038 = vpop.f32.mrb[0].mxu0
  %v1039 = vadd.f32 %v216, %v1038
  %v1040 = vpop.f32.mrb[0].mxu0
  %1041 = vmatprep.mubr.f32.mxu0 0.0
  %1042 = vmatmul.mubr.f32.gmra.mrb[0].mxu0 %v334
  %v1043 = vpop.f32.mrb[0].mxu0
  %v1044 = vadd.f32 %v216, %v1043
  %v1045 = vpop.f32.mrb[0].mxu0
  %1046 = vmatprep.mubr.f32.mxu0 0.0
  %1047 = vmatmul.mubr.f32.gmra.mrb[0].mxu0 %v337
  %v1048 = vpop.f32.mrb[0].mxu0
  %v1049 = vadd.f32 %v216, %v1048
  %v1050 = vpop.f32.mrb[0].mxu0
  %1051 = vmatprep.mubr.f32.mxu0 0.0
  %1052 = vmatmul.mubr.f32.gmra.mrb[0].mxu0 %v340
  %v1053 = vpop.f32.mrb[0].mxu0
  %v1054 = vadd.f32 %v216, %v1053
  %v1055 = vpop.f32.mrb[0].mxu0
  %1056 = vmatprep.mubr.f32.mxu0 0.0
  %1057 = vmatmul.mubr.f32.gmra.mrb[0].mxu0 %v343
  %v1058 = vpop.f32.mrb[0].mxu0
  %v1059 = vadd.f32 %v216, %v1058
  %v1060 = vpop.f32.mrb[0].mxu0
  %1061 = vmatprep.mubr.f32.mxu0 0.0
  %1062 = vmatmul.mubr.f32.gmra.mrb[0].mxu0 %v346
  %v1063 = vpop.f32.mrb[0].mxu0
  %v1064 = vadd.f32 %v216, %v1063
  %v1065 = vpop.f32.mrb[0].mxu0
  %1066 = vmatprep.mubr.f32.mxu0 0.0
  %1067 = vmatmul.mubr.f32.gmra.mrb[0].mxu0 %v349
  %v1068 = vpop.f32.mrb[0].mxu0
  %v1069 = vadd.f32 %v216, %v1068
  %v1070 = vpop.f32.mrb[0].mxu0
  %1071 = vmatprep.mubr.f32.mxu0 0.0
  %1072 = vmatmul.mubr.f32.gmra.mrb[0].mxu0 %v352
  %v1073 = vpop.f32.mrb[0].mxu0
  %v1074 = vadd.f32 %v216, %v1073
  %v1075 = vpop.f32.mrb[0].mxu0
  %1076 = vmatprep.mubr.f32.mxu0 0.0
  %1077 = vmatmul.mubr.f32.gmra.mrb[0].mxu0 %v355
  %v1078 = vpop.f32.mrb[0].mxu0
  %v1079 = vadd.f32 %v216, %v1078
  %v1080 = vpop.f32.mrb[0].mxu0
  %1081 = vmatprep.mubr.f32.mxu0 0.0
  %1082 = vmatmul.mubr.f32.gmra.mrb[0].mxu0 %v358
  %v1083 = vpop.f32.mrb[0].mxu0
  %v1084 = vadd.f32 %v216, %v1083
  %v1085 = vpop.f32.mrb[0].mxu0
  %1086 = vmatprep.mubr.f32.mxu0 0.0
  %1087 = vmatmul.mubr.f32.gmra.mrb[0].mxu0 %v361
  %v1088 = vpop.f32.mrb[0].mxu0
  %v1089 = vadd.f32 %v216, %v1088
  %v1090 = vpop.f32.mrb[0].mxu0
  %1091 = vmatprep.mubr.f32.mxu0 0.0
  %1092 = vmatmul.mubr.f32.gmra.mrb[0].mxu0 %v364
  %v1093 = vpop.f32.mrb[0].mxu0
  %v1094 = vadd.f32 %v216, %v1093
  %v1095 = vpop.f32.mrb[0].mxu0
  %1096 = vmatprep.mubr.f32.mxu0 0.0
  %1097 = vmatmul.mubr.f32.gmra.mrb[0].mxu0 %v367
  %v1098 = vpop.f32.mrb[0].mxu0
  %v1099 = vadd.f32 %v216, %v1098
  %v1100 = vpop.f32.mrb[0].mxu0
  %1101 = vmatprep.mubr.f32.mxu0 0.0
  %1102 = vmatmul.mubr.f32.gmra.mrb[0].mxu0 %v370
  %v1103 = vpop.f32.mrb[0].mxu0
  %v1104 = vadd.f32 %v216, %v1103
  %v1105 = vpop.f32.mrb[0].mxu0
  %1106 = vmatprep.mubr.f32.mxu0 0.0
  %1107 = vmatmul.mubr.f32.gmra.mrb[0].mxu0 %v373
  %v1108 = vpop.f32.mrb[0].mxu0
  %v1109 = vadd.f32 %v216, %v1108
  %v1110 = vpop.f32.mrb[0].mxu0
  %1111 = vmatprep.mubr.f32.mxu0 0.0
  %1112 = vmatmul.mubr.f32.gmra.mrb[0].mxu0 %v376
  %v1113 = vpop.f32.mrb[0].mxu0
  %v1114 = vadd.f32 %v216, %v1113
  %v1115 = vpop.f32.mrb[0].mxu0
  %1116 = vmatprep.mubr.f32.mxu0 0.0
  %1117 = vmatmul.mubr.f32.gmra.mrb[0].mxu0 %v379
  %v1118 = vpop.f32.mrb[0].mxu0
  %v1119 = vadd.f32 %v216, %v1118
  %v1120 = vpop.f32.mrb[0].mxu0
  %1121 = vmatprep.mubr.f32.mxu0 0.0
  %1122 = vmatmul.mubr.f32.gmra.mrb[0].mxu0 %v382
  %v1123 = vpop.f32.mrb[0].mxu0
  %v1124 = vadd.f32 %v216, %v1123
  %v1125 = vpop.f32.mrb[0].mxu0
  %1126 = vmatprep.mubr.f32.mxu0 0.0
  %1127 = vmatmul.mubr.f32.gmra.mrb[0].mxu0 %v385
  %v1128 = vpop.f32.mrb[0].mxu0
  %v1129 = vadd.f32 %v216, %v1128
  %v1130 = vpop.f32.mrb[0].mxu0
  %1131 = vmatprep.mubr.f32.mxu0 0.0
  %1132 = vmatmul.mubr.f32.gmra.mrb[0].mxu0 %v388
  %v1133 = vpop.f32.mrb[0].mxu0
  %v1134 = vadd.f32 %v216, %v1133
  %v1135 = vpop.f32.mrb[0].mxu0
  %1136 = vmatprep.mubr.f32.mxu0 0.0
  %1137 = vmatmul.mubr.f32.gmra.mrb[0].mxu0 %v391
  %v1138 = vpop.f32.mrb[0].mxu0
  %v1139 = vadd.f32 %v216, %v1138
  %v1140 = vpop.f32.mrb[0].mxu0
  %1141 = vmatprep.mubr.f32.mxu0 0.0
  %1142 = vmatmul.mubr.f32.gmra.mrb[0].mxu0 %v394
  %v1143 = vpop.f32.mrb[0].mxu0
  %v1144 = vadd.f32 %v216, %v1143
  %v1145 = vpop.f32.mrb[0].mxu0
  %1146 = vmatprep.mubr.f32.mxu0 0.0
  %1147 = vmatmul.mubr.f32.gmra.mrb[0].mxu0 %v397
  %v1148 = vpop.f32.mrb[0].mxu0
  %v1149 = vadd.f32 %v216, %v1148
  %v1150 = vpop.f32.mrb[0].mxu0
  %1151 = vmatprep.mubr.f32.mxu0 0.0
  %1152 = vmatmul.mubr.f32.gmra.mrb[0].mxu0 %v400
  %v1153 = vpop.f32.mrb[0].mxu0
  %v1154 = vadd.f32 %v216, %v1153
  %v1155 = vpop.f32.mrb[0].mxu0
  %1156 = vmatprep.mubr.f32.mxu0 0.0
  %1157 = vmatmul.mubr.f32.gmra.mrb[0].mxu0 %v403
  %v1158 = vpop.f32.mrb[0].mxu0
  %v1159 = vadd.f32 %v216, %v1158
  %v1160 = vpop.f32.mrb[0].mxu0
  %1161 = vmatprep.mubr.f32.mxu0 0.0
  %1162 = vmatmul.mubr.f32.gmra.mrb[0].mxu0 %v406
  %v1163 = vpop.f32.mrb[0].mxu0
  %v1164 = vadd.f32 %v216, %v1163
  %v1165 = vpop.f32.mrb[0].mxu0
  %1166 = vmatprep.mubr.f32.mxu0 0.0
  %1167 = vmatmul.mubr.f32.gmra.mrb[0].mxu0 %v409
  %v1168 = vpop.f32.mrb[0].mxu0
  %v1169 = vadd.f32 %v216, %v1168
  %v1170 = vpop.f32.mrb[0].mxu0
  %1171 = vmatprep.mubr.f32.mxu0 0.0
  %1172 = vmatmul.mubr.f32.gmra.mrb[0].mxu0 %v412
  %v1173 = vpop.f32.mrb[0].mxu0
  %v1174 = vadd.f32 %v216, %v1173
  %v1175 = vpop.f32.mrb[0].mxu0
  %1176 = vmatprep.mubr.f32.mxu0 0.0
  %1177 = vmatmul.mubr.f32.gmra.mrb[0].mxu0 %v415
  %v1178 = vpop.f32.mrb[0].mxu0
  %v1179 = vadd.f32 %v216, %v1178
  %v1180 = vpop.f32.mrb[0].mxu0
  %1181 = vmatprep.mubr.f32.mxu0 0.0
  %1182 = vmatmul.mubr.f32.gmra.mrb[0].mxu0 %v418
  %v1183 = vpop.f32.mrb[0].mxu0
  %v1184 = vadd.f32 %v216, %v1183
  %v1185 = vpop.f32.mrb[0].mxu0
  %1186 = vmatprep.mubr.f32.mxu0 0.0
  %1187 = vmatmul.mubr.f32.gmra.mrb[0].mxu0 %v421
  %v1188 = vpop.f32.mrb[0].mxu0
  %v1189 = vadd.f32 %v216, %v1188
  %v1190 = vpop.f32.mrb[0].mxu0
  %1191 = vmatprep.mubr.f32.mxu0 0.0
  %1192 = vmatmul.mubr.f32.gmra.mrb[0].mxu0 %v424
  %v1193 = vpop.f32.mrb[0].mxu0
  %v1194 = vadd.f32 %v216, %v1193
  %v1195 = vpop.f32.mrb[0].mxu0
  %1196 = vmatprep.mubr.f32.mxu0 0.0
  %1197 = vmatmul.mubr.f32.gmra.mrb[0].mxu0 %v427
  %v1198 = vpop.f32.mrb[0].mxu0
  %v1199 = vadd.f32 %v216, %v1198
  %v1200 = vpop.f32.mrb[0].mxu0
  %1201 = vmatprep.mubr.f32.mxu0 0.0
  %1202 = vmatmul.mubr.f32.gmra.mrb[0].mxu0 %v430
  %v1203 = vpop.f32.mrb[0].mxu0
  %v1204 = vadd.f32 %v216, %v1203
  %v1205 = vpop.f32.mrb[0].mxu0
  %1206 = vmatprep.mubr.f32.mxu0 0.0
  %1207 = vmatmul.mubr.f32.gmra.mrb[0].mxu0 %v433
  %v1208 = vpop.f32.mrb[0].mxu0
  %v1209 = vadd.f32 %v216, %v1208
  %v1210 = vpop.f32.mrb[0].mxu0
  %1211 = vmatprep.mubr.f32.mxu0 0.0
  %1212 = vmatmul.mubr.f32.gmra.mrb[0].mxu0 %v436
  %v1213 = vpop.f32.mrb[0].mxu0
  %v1214 = vadd.f32 %v216, %v1213
  %v1215 = vpop.f32.mrb[0].mxu0
  %1216 = vmatprep.mubr.f32.mxu0 0.0
  %1217 = vmatmul.mubr.f32.gmra.mrb[0].mxu0 %v439
  %v1218 = vpop.f32.mrb[0].mxu0
  %v1219 = vadd.f32 %v216, %v1218
  %v1220 = vpop.f32.mrb[0].mxu0
  %1221 = vmatprep.mubr.f32.mxu0 0.0
  %1222 = vmatmul.mubr.f32.gmra.mrb[0].mxu0 %v442
  %v1223 = vpop.f32.mrb[0].mxu0
  %v1224 = vadd.f32 %v216, %v1223
  %v1225 = vpop.f32.mrb[0].mxu0
  %1226 = vmatprep.mubr.f32.mxu0 0.0
  %1227 = vmatmul.mubr.f32.gmra.mrb[0].mxu0 %v445
  %v1228 = vpop.f32.mrb[0].mxu0
  %v1229 = vadd.f32 %v216, %v1228
  %v1230 = vpop.f32.mrb[0].mxu0
  %1231 = vmatprep.mubr.f32.mxu0 0.0
  %1232 = vmatmul.mubr.f32.gmra.mrb[0].mxu0 %v448
  %v1233 = vpop.f32.mrb[0].mxu0
  %v1234 = vadd.f32 %v216, %v1233
  %v1235 = vpop.f32.mrb[0].mxu0
  %1236 = vmatprep.mubr.f32.mxu0 0.0
  %1237 = vmatmul.mubr.f32.gmra.mrb[0].mxu0 %v451
  %v1238 = vpop.f32.mrb[0].mxu0
  %v1239 = vadd.f32 %v216, %v1238
  %v1240 = vpop.f32.mrb[0].mxu0
  %1241 = vmatprep.mubr.f32.mxu0 0.0
  %1242 = vmatmul.mubr.f32.gmra.mrb[0].mxu0 %v454
  %v1243 = vpop.f32.mrb[0].mxu0
  %v1244 = vadd.f32 %v216, %v1243
  %v1245 = vpop.f32.mrb[0].mxu0
  %1246 = vmatprep.mubr.f32.mxu0 0.0
  %1247 = vmatmul.mubr.f32.gmra.mrb[0].mxu0 %v457
  %v1248 = vpop.f32.mrb[0].mxu0
  %v1249 = vadd.f32 %v216, %v1248
  %v1250 = vpop.f32.mrb[0].mxu0
  %1251 = vmatprep.mubr.f32.mxu0 0.0
  %1252 = vmatmul.mubr.f32.gmra.mrb[0].mxu0 %v460
  %v1253 = vpop.f32.mrb[0].mxu0
  %v1254 = vadd.f32 %v216, %v1253
  %v1255 = vpop.f32.mrb[0].mxu0
  %1256 = vmatprep.mubr.f32.mxu0 0.0
  %1257 = vmatmul.mubr.f32.gmra.mrb[0].mxu0 %v463
  %v1258 = vpop.f32.mrb[0].mxu0
  %v1259 = vadd.f32 %v216, %v1258
  %v1260 = vpop.f32.mrb[0].mxu0
  %1261 = vmatprep.mubr.f32.mxu0 0.0
  %1262 = vmatmul.mubr.f32.gmra.mrb[0].mxu0 %v466
  %v1263 = vpop.f32.mrb[0].mxu0
  %v1264 = vadd.f32 %v216, %v1263
  %v1265 = vpop.f32.mrb[0].mxu0
  %1266 = vmatprep.mubr.f32.mxu0 0.0
  %1267 = vmatmul.mubr.f32.gmra.mrb[0].mxu0 %v469
  %v1268 = vpop.f32.mrb[0].mxu0
  %v1269 = vadd.f32 %v216, %v1268
  %v1270 = vpop.f32.mrb[0].mxu0
  %1271 = vmatprep.mubr.f32.mxu0 0.0
  %1272 = vmatmul.mubr.f32.gmra.mrb[0].mxu0 %v472
  %v1273 = vpop.f32.mrb[0].mxu0
  %v1274 = vadd.f32 %v216, %v1273
  %v1275 = vpop.f32.mrb[0].mxu0
  %1276 = vmatprep.mubr.f32.mxu0 0.0
  %1277 = vmatmul.mubr.f32.gmra.mrb[0].mxu0 %v475
  %v1278 = vpop.f32.mrb[0].mxu0
  %v1279 = vadd.f32 %v216, %v1278
  %v1280 = vpop.f32.mrb[0].mxu0
  %1281 = vmatprep.mubr.f32.mxu0 0.0
  %1282 = vmatmul.mubr.f32.gmra.mrb[0].mxu0 %v478
  %v1283 = vpop.f32.mrb[0].mxu0
  %v1284 = vadd.f32 %v216, %v1283
  %v1285 = vpop.f32.mrb[0].mxu0
  %1286 = vmatprep.mubr.f32.mxu0 0.0
  %1287 = vmatmul.mubr.f32.gmra.mrb[0].mxu0 %v481
  %v1288 = vpop.f32.mrb[0].mxu0
  %v1289 = vadd.f32 %v216, %v1288
  %v1290 = vpop.f32.mrb[0].mxu0
  %1291 = vmatprep.mubr.f32.mxu0 0.0
  %1292 = vmatmul.mubr.f32.gmra.mrb[0].mxu0 %v484
  %v1293 = vpop.f32.mrb[0].mxu0
  %v1294 = vadd.f32 %v216, %v1293
  %v1295 = vpop.f32.mrb[0].mxu0
  %1296 = vmatprep.mubr.f32.mxu0 0.0
  %1297 = vmatmul.mubr.f32.gmra.mrb[0].mxu0 %v487
  %v1298 = vpop.f32.mrb[0].mxu0
  %v1299 = vadd.f32 %v216, %v1298
  %v1300 = vpop.f32.mrb[0].mxu0
  %1301 = vmatprep.mubr.f32.mxu0 0.0
  %1302 = vmatmul.mubr.f32.gmra.mrb[0].mxu0 %v490
  %v1303 = vpop.f32.mrb[0].mxu0
  %v1304 = vadd.f32 %v216, %v1303
  %v1305 = vpop.f32.mrb[0].mxu0
  %1306 = vmatprep.mubr.f32.mxu0 0.0
  %1307 = vmatmul.mubr.f32.gmra.mrb[0].mxu0 %v493
  %v1308 = vpop.f32.mrb[0].mxu0
  %v1309 = vadd.f32 %v216, %v1308
  %v1310 = vpop.f32.mrb[0].mxu0
  %1311 = vmatprep.mubr.f32.mxu0 0.0
  %1312 = vmatmul.mubr.f32.gmra.mrb[0].mxu0 %v496
  %v1313 = vpop.f32.mrb[0].mxu0
  %v1314 = vadd.f32 %v216, %v1313
  %v1315 = vpop.f32.mrb[0].mxu0
  %1316 = vmatprep.mubr.f32.mxu0 0.0
  %1317 = vmatmul.mubr.f32.gmra.mrb[0].mxu0 %v499
  %v1318 = vpop.f32.mrb[0].mxu0
  %v1319 = vadd.f32 %v216, %v1318
  %v1320 = vpop.f32.mrb[0].mxu0
  %1321 = vmatprep.mubr.f32.mxu0 0.0
  %1322 = vmatmul.mubr.f32.gmra.mrb[0].mxu0 %v502
  %v1323 = vpop.f32.mrb[0].mxu0
  %v1324 = vadd.f32 %v216, %v1323
  %v1325 = vpop.f32.mrb[0].mxu0
  %1326 = vmatprep.mubr.f32.mxu0 0.0
  %1327 = vmatmul.mubr.f32.gmra.mrb[0].mxu0 %v505
  %v1328 = vpop.f32.mrb[0].mxu0
  %v1329 = vadd.f32 %v216, %v1328
  %v1330 = vpop.f32.mrb[0].mxu0
  %1331 = vmatprep.mubr.f32.mxu0 0.0
  %1332 = vmatmul.mubr.f32.gmra.mrb[0].mxu0 %v508
  %v1333 = vpop.f32.mrb[0].mxu0
  %v1334 = vadd.f32 %v216, %v1333
  %v1335 = vpop.f32.mrb[0].mxu0
  %1336 = vmatprep.mubr.f32.mxu0 0.0
  %1337 = vmatmul.mubr.f32.gmra.mrb[0].mxu0 %v511
  %v1338 = vpop.f32.mrb[0].mxu0
  %v1339 = vadd.f32 %v216, %v1338
  %v1340 = vpop.f32.mrb[0].mxu0
  %1341 = vmatprep.mubr.f32.mxu0 0.0
  %1342 = vmatmul.mubr.f32.gmra.mrb[0].mxu0 %v514
  %v1343 = vpop.f32.mrb[0].mxu0
  %v1344 = vadd.f32 %v216, %v1343
  %v1345 = vpop.f32.mrb[0].mxu0
  %1346 = vmatprep.mubr.f32.mxu0 0.0
  %1347 = vmatmul.mubr.f32.gmra.mrb[0].mxu0 %v517
  %v1348 = vpop.f32.mrb[0].mxu0
  %v1349 = vadd.f32 %v216, %v1348
  %v1350 = vpop.f32.mrb[0].mxu0
  %1351 = vmatprep.mubr.f32.mxu0 0.0
  %1352 = vmatmul.mubr.f32.gmra.mrb[0].mxu0 %v520
  %v1353 = vpop.f32.mrb[0].mxu0
  %v1354 = vadd.f32 %v216, %v1353
  %v1355 = vpop.f32.mrb[0].mxu0
  %1356 = vmatprep.mubr.f32.mxu0 0.0
  %1357 = vmatmul.mubr.f32.gmra.mrb[0].mxu0 %v523
  %v1358 = vpop.f32.mrb[0].mxu0
  %v1359 = vadd.f32 %v216, %v1358
  %v1360 = vpop.f32.mrb[0].mxu0
  %1361 = vmatprep.mubr.f32.mxu0 0.0
  %1362 = vmatmul.mubr.f32.gmra.mrb[0].mxu0 %v526
  %v1363 = vpop.f32.mrb[0].mxu0
  %v1364 = vadd.f32 %v216, %v1363
  %v1365 = vpop.f32.mrb[0].mxu0
  %1366 = vmatprep.mubr.f32.mxu0 0.0
  %1367 = vmatmul.mubr.f32.gmra.mrb[0].mxu0 %v529
  %v1368 = vpop.f32.mrb[0].mxu0
  %v1369 = vadd.f32 %v216, %v1368
  %v1370 = vpop.f32.mrb[0].mxu0
  %1371 = vmatprep.mubr.f32.mxu0 0.0
  %1372 = vmatmul.mubr.f32.gmra.mrb[0].mxu0 %v532
  %v1373 = vpop.f32.mrb[0].mxu0
  %v1374 = vadd.f32 %v216, %v1373
  %v1375 = vpop.f32.mrb[0].mxu0
  %1376 = vmatprep.mubr.f32.mxu0 0.0
  %1377 = vmatmul.mubr.f32.gmra.mrb[0].mxu0 %v535
  %v1378 = vpop.f32.mrb[0].mxu0
  %v1379 = vadd.f32 %v216, %v1378
  %v1380 = vpop.f32.mrb[0].mxu0
  %1381 = vmatprep.mubr.f32.mxu0 0.0
  %1382 = vmatmul.mubr.f32.gmra.mrb[0].mxu0 %v538
  %v1383 = vpop.f32.mrb[0].mxu0
  %v1384 = vadd.f32 %v216, %v1383
  %v1385 = vpop.f32.mrb[0].mxu0
  %1386 = vmatprep.mubr.f32.mxu0 0.0
  %1387 = vmatmul.mubr.f32.gmra.mrb[0].mxu0 %v541
  %v1388 = vpop.f32.mrb[0].mxu0
  %v1389 = vadd.f32 %v216, %v1388
  %v1390 = vpop.f32.mrb[0].mxu0
  %1391 = vmatprep.mubr.f32.mxu0 0.0
  %1392 = vmatmul.mubr.f32.gmra.mrb[0].mxu0 %v544
  %v1393 = vpop.f32.mrb[0].mxu0
  %v1394 = vadd.f32 %v216, %v1393
  %v1395 = vpop.f32.mrb[0].mxu0
  %1396 = vmatprep.mubr.f32.mxu0 0.0
  %1397 = vmatmul.mubr.f32.gmra.mrb[0].mxu0 %v547
  %v1398 = vpop.f32.mrb[0].mxu0
  %v1399 = vadd.f32 %v216, %v1398
  %v1400 = vpop.f32.mrb[0].mxu0
  %1401 = vmatprep.mubr.f32.mxu0 0.0
  %1402 = vmatmul.mubr.f32.gmra.mrb[0].mxu0 %v550
  %v1403 = vpop.f32.mrb[0].mxu0
  %v1404 = vadd.f32 %v216, %v1403
  %v1405 = vpop.f32.mrb[0].mxu0
  %1406 = vmatprep.mubr.f32.mxu0 0.0
  %1407 = vmatmul.mubr.f32.gmra.mrb[0].mxu0 %v553
  %v1408 = vpop.f32.mrb[0].mxu0
  %v1409 = vadd.f32 %v216, %v1408
  %v1410 = vpop.f32.mrb[0].mxu0
  %1411 = vmatprep.mubr.f32.mxu0 0.0
  %1412 = vmatmul.mubr.f32.gmra.mrb[0].mxu0 %v556
  %v1413 = vpop.f32.mrb[0].mxu0
  %v1414 = vadd.f32 %v216, %v1413
  %v1415 = vpop.f32.mrb[0].mxu0
  %1416 = vmatprep.mubr.f32.mxu0 0.0
  %1417 = vmatmul.mubr.f32.gmra.mrb[0].mxu0 %v559
  %v1418 = vpop.f32.mrb[0].mxu0
  %v1419 = vadd.f32 %v216, %v1418
  %v1420 = vpop.f32.mrb[0].mxu0
  %1421 = vmatprep.mubr.f32.mxu0 0.0
  %1422 = vmatmul.mubr.f32.gmra.mrb[0].mxu0 %v562
  %v1423 = vpop.f32.mrb[0].mxu0
  %v1424 = vadd.f32 %v216, %v1423
  %v1425 = vpop.f32.mrb[0].mxu0
  %1426 = vmatprep.mubr.f32.mxu0 0.0
  %1427 = vmatmul.mubr.f32.gmra.mrb[0].mxu0 %v565
  %v1428 = vpop.f32.mrb[0].mxu0
  %v1429 = vadd.f32 %v216, %v1428
  %v1430 = vpop.f32.mrb[0].mxu0
  %1431 = vmatprep.mubr.f32.mxu0 0.0
  %1432 = vmatmul.mubr.f32.gmra.mrb[0].mxu0 %v568
  %v1433 = vpop.f32.mrb[0].mxu0
  %v1434 = vadd.f32 %v216, %v1433
  %v1435 = vpop.f32.mrb[0].mxu0
  %1436 = vmatprep.mubr.f32.mxu0 0.0
  %1437 = vmatmul.mubr.f32.gmra.mrb[0].mxu0 %v571
  %v1438 = vpop.f32.mrb[0].mxu0
  %v1439 = vadd.f32 %v216, %v1438
  %v1440 = vpop.f32.mrb[0].mxu0
  %1441 = vmatprep.mubr.f32.mxu0 0.0
  %1442 = vmatmul.mubr.f32.gmra.mrb[0].mxu0 %v574
  %v1443 = vpop.f32.mrb[0].mxu0
  %v1444 = vadd.f32 %v216, %v1443
  %v1445 = vpop.f32.mrb[0].mxu0
  %1446 = vmatprep.mubr.f32.mxu0 0.0
  %1447 = vmatmul.mubr.f32.gmra.mrb[0].mxu0 %v577
  %v1448 = vpop.f32.mrb[0].mxu0
  %v1449 = vadd.f32 %v216, %v1448
  %v1450 = vpop.f32.mrb[0].mxu0
  %1451 = vmatprep.mubr.f32.mxu0 0.0
  %1452 = vmatmul.mubr.f32.gmra.mrb[0].mxu0 %v580
  %v1453 = vpop.f32.mrb[0].mxu0
  %v1454 = vadd.f32 %v216, %v1453
  %v1455 = vpop.f32.mrb[0].mxu0
  %1456 = vmatprep.mubr.f32.mxu0 0.0
  %1457 = vmatmul.mubr.f32.gmra.mrb[0].mxu0 %v583
  %v1458 = vpop.f32.mrb[0].mxu0
  %v1459 = vadd.f32 %v216, %v1458
  %v1460 = vpop.f32.mrb[0].mxu0
  %1461 = vmatprep.mubr.f32.mxu0 0.0
  %1462 = vmatmul.mubr.f32.gmra.mrb[0].mxu0 %v586
  %v1463 = vpop.f32.mrb[0].mxu0
  %v1464 = vadd.f32 %v216, %v1463
  %v1465 = vpop.f32.mrb[0].mxu0
  %1466 = vmatprep.mubr.f32.mxu0 0.0
  %1467 = vmatmul.mubr.f32.gmra.mrb[0].mxu0 %v589
  %v1468 = vpop.f32.mrb[0].mxu0
  %v1469 = vadd.f32 %v216, %v1468
  %v1470 = vpop.f32.mrb[0].mxu0
  %1471 = vmatprep.mubr.f32.mxu0 0.0
  %1472 = vmatmul.mubr.f32.gmra.mrb[0].mxu0 %v592
  %v1473 = vpop.f32.mrb[0].mxu0
  %v1474 = vadd.f32 %v216, %v1473
  %v1475 = vpop.f32.mrb[0].mxu0
  %1476 = vmatprep.mubr.f32.mxu0 0.0
  %1477 = vmatmul.mubr.f32.gmra.mrb[0].mxu0 %v595
  %v1478 = vpop.f32.mrb[0].mxu0
  %v1479 = vadd.f32 %v216, %v1478
  %v1480 = vpop.f32.mrb[0].mxu0
  %1481 = vmatprep.mubr.f32.mxu0 0.0
  %1482 = vmatmul.mubr.f32.gmra.mrb[0].mxu0 %v598
  %v1483 = vpop.f32.mrb[0].mxu0
  %v1484 = vadd.f32 %v216, %v1483
  %v1485 = vpop.f32.mrb[0].mxu0
  %1486 = vmatprep.mubr.f32.mxu0 0.0
  %1487 = vmatmul.mubr.f32.gmra.mrb[0].mxu0 %v601
  %v1488 = vpop.f32.mrb[0].mxu0
  %v1489 = vadd.f32 %v216, %v1488
  %v1490 = vpop.f32.mrb[0].mxu0
  %1491 = vmatprep.mubr.f32.mxu0 0.0
  %1492 = vmatmul.mubr.f32.gmra.mrb[0].mxu0 %v604
  %v1493 = vpop.f32.mrb[0].mxu0
  %v1494 = vadd.f32 %v216, %v1493
  %v1495 = vpop.f32.mrb[0].mxu0
  %1496 = vmatprep.mubr.f32.mxu0 0.0
  %1497 = vmatmul.mubr.f32.gmra.mrb[0].mxu0 %v607
  %v1498 = vpop.f32.mrb[0].mxu0
  %v1499 = vadd.f32 %v216, %v1498
  %v1500 = vpop.f32.mrb[0].mxu0
  %1501 = vmatprep.mubr.f32.mxu0 0.0
  %1502 = vmatmul.mubr.f32.gmra.mrb[0].mxu0 %v610
  %v1503 = vpop.f32.mrb[0].mxu0
  %v1504 = vadd.f32 %v216, %v1503
  %v1505 = vpop.f32.mrb[0].mxu0
  %1506 = vmatprep.mubr.f32.mxu0 0.0
  %1507 = vmatmul.mubr.f32.gmra.mrb[0].mxu0 %v613
  %v1508 = vpop.f32.mrb[0].mxu0
  %v1509 = vadd.f32 %v216, %v1508
  %v1510 = vpop.f32.mrb[0].mxu0
  %1511 = vmatprep.mubr.f32.mxu0 0.0
  %1512 = vmatmul.mubr.f32.gmra.mrb[0].mxu0 %v616
  %v1513 = vpop.f32.mrb[0].mxu0
  %v1514 = vadd.f32 %v216, %v1513
  %v1515 = vpop.f32.mrb[0].mxu0
  %1516 = vmatprep.mubr.f32.mxu0 0.0
  %1517 = vmatmul.mubr.f32.gmra.mrb[0].mxu0 %v619
  %v1518 = vpop.f32.mrb[0].mxu0
  %v1519 = vadd.f32 %v216, %v1518
  %v1520 = vpop.f32.mrb[0].mxu0
  %1521 = vmatprep.mubr.f32.mxu0 0.0
  %1522 = vmatmul.mubr.f32.gmra.mrb[0].mxu0 %v622
  %v1523 = vpop.f32.mrb[0].mxu0
  %v1524 = vadd.f32 %v216, %v1523
  %v1525 = vpop.f32.mrb[0].mxu0
  %1526 = vmatprep.mubr.f32.mxu0 0.0
  %1527 = vmatmul.mubr.f32.gmra.mrb[0].mxu0 %v625
  %v1528 = vpop.f32.mrb[0].mxu0
  %v1529 = vadd.f32 %v216, %v1528
  %v1530 = vpop.f32.mrb[0].mxu0
  %1531 = vmatprep.mubr.f32.mxu0 0.0
  %1532 = vmatmul.mubr.f32.gmra.mrb[0].mxu0 %v628
  %v1533 = vpop.f32.mrb[0].mxu0
  %v1534 = vadd.f32 %v216, %v1533
  %v1535 = vpop.f32.mrb[0].mxu0
  %1536 = vmatprep.mubr.f32.mxu0 0.0
  %1537 = vmatmul.mubr.f32.gmra.mrb[0].mxu0 %v631
  %v1538 = vpop.f32.mrb[0].mxu0
  %v1539 = vadd.f32 %v216, %v1538
  %v1540 = vpop.f32.mrb[0].mxu0
  %1541 = vmatprep.mubr.f32.mxu0 0.0
  %1542 = vmatmul.mubr.f32.gmra.mrb[0].mxu0 %v634
  %v1543 = vpop.f32.mrb[0].mxu0
  %v1544 = vadd.f32 %v216, %v1543
  %v1545 = vpop.f32.mrb[0].mxu0
  %1546 = vmatprep.mubr.f32.mxu0 0.0
  %1547 = vmatmul.mubr.f32.gmra.mrb[0].mxu0 %v637
  %v1548 = vpop.f32.mrb[0].mxu0
  %v1549 = vadd.f32 %v216, %v1548
  %v1550 = vpop.f32.mrb[0].mxu0
  %1551 = vmatprep.mubr.f32.mxu0 0.0
  %1552 = vmatmul.mubr.f32.gmra.mrb[0].mxu0 %v640
  %v1553 = vpop.f32.mrb[0].mxu0
  %v1554 = vadd.f32 %v216, %v1553
  %v1555 = vpop.f32.mrb[0].mxu0
  %1556 = vmatprep.mubr.f32.mxu0 0.0
  %1557 = vmatmul.mubr.f32.gmra.mrb[0].mxu0 %v643
  %v1558 = vpop.f32.mrb[0].mxu0
  %v1559 = vadd.f32 %v216, %v1558
  %v1560 = vpop.f32.mrb[0].mxu0
  %1561 = vmatprep.mubr.f32.mxu0 0.0
  %1562 = vmatmul.mubr.f32.gmra.mrb[0].mxu0 %v646
  %v1563 = vpop.f32.mrb[0].mxu0
  %v1564 = vadd.f32 %v216, %v1563
  %v1565 = vpop.f32.mrb[0].mxu0
  %1566 = vmatprep.mubr.f32.mxu0 0.0
  %1567 = vmatmul.mubr.f32.gmra.mrb[0].mxu0 %v649
  %v1568 = vpop.f32.mrb[0].mxu0
  %v1569 = vadd.f32 %v216, %v1568
  %v1570 = vpop.f32.mrb[0].mxu0
  %1571 = vmatprep.mubr.f32.mxu0 0.0
  %1572 = vmatmul.mubr.f32.gmra.mrb[0].mxu0 %v652
  %v1573 = vpop.f32.mrb[0].mxu0
  %v1574 = vadd.f32 %v216, %v1573
  %v1575 = vpop.f32.mrb[0].mxu0
  %1576 = vmatprep.mubr.f32.mxu0 0.0
  %1577 = vmatmul.mubr.f32.gmra.mrb[0].mxu0 %v655
  %v1578 = vpop.f32.mrb[0].mxu0
  %v1579 = vadd.f32 %v216, %v1578
  %v1580 = vpop.f32.mrb[0].mxu0
  %1581 = vmatprep.mubr.f32.mxu0 0.0
  %1582 = vmatmul.mubr.f32.gmra.mrb[0].mxu0 %v658
  %v1583 = vpop.f32.mrb[0].mxu0
  %v1584 = vadd.f32 %v216, %v1583
  %v1585 = vpop.f32.mrb[0].mxu0
  %1586 = vmatprep.mubr.f32.mxu0 0.0
  %1587 = vmatmul.mubr.f32.gmra.mrb[0].mxu0 %v661
  %v1588 = vpop.f32.mrb[0].mxu0
  %v1589 = vadd.f32 %v216, %v1588
  %v1590 = vpop.f32.mrb[0].mxu0
  %1591 = vmatprep.mubr.f32.mxu0 0.0
  %1592 = vmatmul.mubr.f32.gmra.mrb[0].mxu0 %v664
  %v1593 = vpop.f32.mrb[0].mxu0
  %v1594 = vadd.f32 %v216, %v1593
  %v1595 = vpop.f32.mrb[0].mxu0
  %1596 = vmatprep.mubr.f32.mxu0 0.0
  %1597 = vmatmul.mubr.f32.gmra.mrb[0].mxu0 %v667
  %v1598 = vpop.f32.mrb[0].mxu0
  %v1599 = vadd.f32 %v216, %v1598
  %v1600 = vpop.f32.mrb[0].mxu0
  %1601 = vmatprep.mubr.f32.mxu0 0.0
  %1602 = vmatmul.mubr.f32.gmra.mrb[0].mxu0 %v670
  %v1603 = vpop.f32.mrb[0].mxu0
  %v1604 = vadd.f32 %v216, %v1603
  %v1605 = vpop.f32.mrb[0].mxu0
  %1606 = vmatprep.mubr.f32.mxu0 0.0
  %1607 = vmatmul.mubr.f32.gmra.mrb[0].mxu0 %v673
  %v1608 = vpop.f32.mrb[0].mxu0
  %v1609 = vadd.f32 %v216, %v1608
  %v1610 = vpop.f32.mrb[0].mxu0
  %1611 = vmatprep.mubr.f32.mxu0 0.0
  %1612 = vmatmul.mubr.f32.gmra.mrb[0].mxu0 %v676
  %v1613 = vpop.f32.mrb[0].mxu0
  %v1614 = vadd.f32 %v216, %v1613
  %v1615 = vpop.f32.mrb[0].mxu0
  %1616 = vmatprep.mubr.f32.mxu0 0.0
  %1617 = vmatmul.mubr.f32.gmra.mrb[0].mxu0 %v679
  %v1618 = vpop.f32.mrb[0].mxu0
  %v1619 = vadd.f32 %v216, %v1618
  %v1620 = vpop.f32.mrb[0].mxu0
  %1621 = vmatprep.mubr.f32.mxu0 0.0
  %1622 = vmatmul.mubr.f32.gmra.mrb[0].mxu0 %v682
  %v1623 = vpop.f32.mrb[0].mxu0
  %v1624 = vadd.f32 %v216, %v1623
  %v1625 = vpop.f32.mrb[0].mxu0
  %1626 = vmatprep.mubr.f32.mxu0 0.0
  %1627 = vmatmul.mubr.f32.gmra.mrb[0].mxu0 %v685
  %v1628 = vpop.f32.mrb[0].mxu0
  %v1629 = vadd.f32 %v216, %v1628
  %v1630 = vpop.f32.mrb[0].mxu0
  %1631 = vmatprep.mubr.f32.mxu0 0.0
  %1632 = vmatmul.mubr.f32.gmra.mrb[0].mxu0 %v688
  %v1633 = vpop.f32.mrb[0].mxu0
  %v1634 = vadd.f32 %v216, %v1633
  %v1635 = vpop.f32.mrb[0].mxu0
  %1636 = vmatprep.mubr.f32.mxu0 0.0
  %1637 = vmatmul.mubr.f32.gmra.mrb[0].mxu0 %v691
  %v1638 = vpop.f32.mrb[0].mxu0
  %v1639 = vadd.f32 %v216, %v1638
  %v1640 = vpop.f32.mrb[0].mxu0
  %1641 = vmatprep.mubr.f32.mxu0 0.0
  %1642 = vmatmul.mubr.f32.gmra.mrb[0].mxu0 %v694
  %v1643 = vpop.f32.mrb[0].mxu0
  %v1644 = vadd.f32 %v216, %v1643
  %v1645 = vpop.f32.mrb[0].mxu0
  %1646 = vmatprep.mubr.f32.mxu0 0.0
  %1647 = vmatmul.mubr.f32.gmra.mrb[0].mxu0 %v697
  %v1648 = vpop.f32.mrb[0].mxu0
  %v1649 = vadd.f32 %v216, %v1648
  %v1650 = vpop.f32.mrb[0].mxu0
  %1651 = vmatprep.mubr.f32.mxu0 0.0
  %1652 = vmatmul.mubr.f32.gmra.mrb[0].mxu0 %v700
  %v1653 = vpop.f32.mrb[0].mxu0
  %v1654 = vadd.f32 %v216, %v1653
  %v1655 = vpop.f32.mrb[0].mxu0
  %1656 = vmatprep.mubr.f32.mxu0 0.0
  %1657 = vmatmul.mubr.f32.gmra.mrb[0].mxu0 %v703
  %v1658 = vpop.f32.mrb[0].mxu0
  %v1659 = vadd.f32 %v216, %v1658
  %v1660 = vpop.f32.mrb[0].mxu0
  %1661 = vmatprep.mubr.f32.mxu0 0.0
  %1662 = vmatmul.mubr.f32.gmra.mrb[0].mxu0 %v706
  %v1663 = vpop.f32.mrb[0].mxu0
  %v1664 = vadd.f32 %v216, %v1663
  %v1665 = vpop.f32.mrb[0].mxu0
  %1666 = vmatprep.mubr.f32.mxu0 0.0
  %1667 = vmatmul.mubr.f32.gmra.mrb[0].mxu0 %v709
  %v1668 = vpop.f32.mrb[0].mxu0
  %v1669 = vadd.f32 %v216, %v1668
  %v1670 = vpop.f32.mrb[0].mxu0
  %1671 = vmatprep.mubr.f32.mxu0 0.0
  %1672 = vmatmul.mubr.f32.gmra.mrb[0].mxu0 %v712
  %v1673 = vpop.f32.mrb[0].mxu0
  %v1674 = vadd.f32 %v216, %v1673
  %v1675 = vpop.f32.mrb[0].mxu0
  %1676 = vmatprep.mubr.f32.mxu0 0.0
  %1677 = vmatmul.mubr.f32.gmra.mrb[0].mxu0 %v715
  %v1678 = vpop.f32.mrb[0].mxu0
  %v1679 = vadd.f32 %v216, %v1678
  %v1680 = vpop.f32.mrb[0].mxu0
  %1681 = vmatprep.mubr.f32.mxu0 0.0
  %1682 = vmatmul.mubr.f32.gmra.mrb[0].mxu0 %v718
  %v1683 = vpop.f32.mrb[0].mxu0
  %v1684 = vadd.f32 %v216, %v1683
  %v1685 = vpop.f32.mrb[0].mxu0
  %1686 = vmatprep.mubr.f32.mxu0 0.0
  %1687 = vmatmul.mubr.f32.gmra.mrb[0].mxu0 %v721
  %v1688 = vpop.f32.mrb[0].mxu0
  %v1689 = vadd.f32 %v216, %v1688
  %v1690 = vpop.f32.mrb[0].mxu0
  %1691 = vmatprep.mubr.f32.mxu0 0.0
  %1692 = vmatmul.mubr.f32.gmra.mrb[0].mxu0 %v724
  %v1693 = vpop.f32.mrb[0].mxu0
  %v1694 = vadd.f32 %v216, %v1693
  %v1695 = vpop.f32.mrb[0].mxu0
  %1696 = vmatprep.mubr.f32.mxu0 0.0
  %1697 = vmatmul.mubr.f32.gmra.mrb[0].mxu0 %v727
  %v1698 = vpop.f32.mrb[0].mxu0
  %v1699 = vadd.f32 %v216, %v1698
  %v1700 = vpop.f32.mrb[0].mxu0
  %1701 = vmatprep.mubr.f32.mxu0 0.0
  %1702 = vmatmul.mubr.f32.gmra.mrb[0].mxu0 %v730
  %v1703 = vpop.f32.mrb[0].mxu0
  %v1704 = vadd.f32 %v216, %v1703
  %v1705 = vpop.f32.mrb[0].mxu0
  %1706 = vmatprep.mubr.f32.mxu0 0.0
  %1707 = vmatmul.mubr.f32.gmra.mrb[0].mxu0 %v733
  %v1708 = vpop.f32.mrb[0].mxu0
  %v1709 = vadd.f32 %v216, %v1708
  %v1710 = vpop.f32.mrb[0].mxu0
  %1711 = vmatprep.mubr.f32.mxu0 0.0
  %1712 = vmatmul.mubr.f32.gmra.mrb[0].mxu0 %v736
  %v1713 = vpop.f32.mrb[0].mxu0
  %v1714 = vadd.f32 %v216, %v1713
  %v1715 = vpop.f32.mrb[0].mxu0
  %1716 = vmatprep.mubr.f32.mxu0 0.0
  %1717 = vmatmul.mubr.f32.gmra.mrb[0].mxu0 %v739
  %v1718 = vpop.f32.mrb[0].mxu0
  %v1719 = vadd.f32 %v216, %v1718
  %v1720 = vpop.f32.mrb[0].mxu0
  %1721 = vmatprep.mubr.f32.mxu0 0.0
  %1722 = vmatmul.mubr.f32.gmra.mrb[0].mxu0 %v742
  %v1723 = vpop.f32.mrb[0].mxu0
  %v1724 = vadd.f32 %v216, %v1723
  %v1725 = vpop.f32.mrb[0].mxu0
  %1726 = vmatprep.mubr.f32.mxu0 0.0
  %1727 = vmatmul.mubr.f32.gmra.mrb[0].mxu0 %v745
  %v1728 = vpop.f32.mrb[0].mxu0
  %v1729 = vadd.f32 %v216, %v1728
  %v1730 = vpop.f32.mrb[0].mxu0
  %1731 = vmatprep.mubr.f32.mxu0 0.0
  %1732 = vmatmul.mubr.f32.gmra.mrb[0].mxu0 %v748
  %v1733 = vpop.f32.mrb[0].mxu0
  %v1734 = vadd.f32 %v216, %v1733
  %v1735 = vpop.f32.mrb[0].mxu0
  %1736 = vmatprep.mubr.f32.mxu0 0.0
  %1737 = vmatmul.mubr.f32.gmra.mrb[0].mxu0 %v751
  %v1738 = vpop.f32.mrb[0].mxu0
  %v1739 = vadd.f32 %v216, %v1738
  %v1740 = vpop.f32.mrb[0].mxu0
  %1741 = vmatprep.mubr.f32.mxu0 0.0
  %1742 = vmatmul.mubr.f32.gmra.mrb[0].mxu0 %v754
  %v1743 = vpop.f32.mrb[0].mxu0
  %v1744 = vadd.f32 %v216, %v1743
  %v1745 = vpop.f32.mrb[0].mxu0
  %1746 = vmatprep.mubr.f32.mxu0 0.0
  %1747 = vmatmul.mubr.f32.gmra.mrb[0].mxu0 %v757
  %v1748 = vpop.f32.mrb[0].mxu0
  %v1749 = vadd.f32 %v216, %v1748
  %v1750 = vpop.f32.mrb[0].mxu0
  %1751 = vmatprep.mubr.f32.mxu0 0.0
  %1752 = vmatmul.mubr.f32.gmra.mrb[0].mxu0 %v760
  %v1753 = vpop.f32.mrb[0].mxu0
  %v1754 = vadd.f32 %v216, %v1753
  %v1755 = vpop.f32.mrb[0].mxu0
  %1756 = vmatprep.mubr.f32.mxu0 0.0
  %1757 = vmatmul.mubr.f32.gmra.mrb[0].mxu0 %v763
  %v1758 = vpop.f32.mrb[0].mxu0
  %v1759 = vadd.f32 %v216, %v1758
  %v1760 = vpop.f32.mrb[0].mxu0
  %1761 = vmatprep.mubr.f32.mxu0 0.0
  %1762 = vmatmul.mubr.f32.gmra.mrb[0].mxu0 %v766
  %v1763 = vpop.f32.mrb[0].mxu0
  %v1764 = vadd.f32 %v216, %v1763
  %v1765 = vpop.f32.mrb[0].mxu0
  %1766 = vmatprep.mubr.f32.mxu0 0.0
  %1767 = vmatmul.mubr.f32.gmra.mrb[0].mxu0 %v769
  %v1768 = vpop.f32.mrb[0].mxu0
  %v1769 = vadd.f32 %v216, %v1768
  %v1770 = vpop.f32.mrb[0].mxu0
  %1771 = vmatprep.mubr.f32.mxu0 0.0
  %1772 = vmatmul.mubr.f32.gmra.mrb[0].mxu0 %v772
  %v1773 = vpop.f32.mrb[0].mxu0
  %v1774 = vadd.f32 %v216, %v1773
  %v1775 = vpop.f32.mrb[0].mxu0
  %1776 = vmatprep.mubr.f32.mxu0 0.0
  %1777 = vmatmul.mubr.f32.gmra.mrb[0].mxu0 %v775
  %v1778 = vpop.f32.mrb[0].mxu0
  %v1779 = vadd.f32 %v216, %v1778
  %v1780 = vpop.f32.mrb[0].mxu0
  %1781 = vmatprep.mubr.f32.mxu0 0.0
  %1782 = vmatmul.mubr.f32.gmra.mrb[0].mxu0 %v778
  %v1783 = vpop.f32.mrb[0].mxu0
  %v1784 = vadd.f32 %v216, %v1783
  %v1785 = vpop.f32.mrb[0].mxu0
  %1786 = vmatprep.mubr.f32.mxu0 0.0
  %1787 = vmatmul.mubr.f32.gmra.mrb[0].mxu0 %v781
  %v1788 = vpop.f32.mrb[0].mxu0
  %v1789 = vadd.f32 %v216, %v1788
  %v1790 = vpop.f32.mrb[0].mxu0
  %1791 = vdwg.mxu0
  %v1792 = vmax.f32 %v854, 0.0
  %v1793 = vmax.f32 %v859, 0.0
  %v1794 = vmax.f32 %v864, 0.0
  %v1795 = vmax.f32 %v869, 0.0
  %v1796 = vmax.f32 %v874, 0.0
  %v1797 = vmax.f32 %v879, 0.0
  %v1798 = vmax.f32 %v884, 0.0
  %v1799 = vmax.f32 %v889, 0.0
  %v1800 = vmax.f32 %v894, 0.0
  %v1801 = vmax.f32 %v899, 0.0
  %v1802 = vmax.f32 %v904, 0.0
  %v1803 = vmax.f32 %v909, 0.0
  %v1804 = vmax.f32 %v914, 0.0
  %v1805 = vmax.f32 %v919, 0.0
  %v1806 = vmax.f32 %v924, 0.0
  %v1807 = vmax.f32 %v929, 0.0
  %v1808 = vmax.f32 %v934, 0.0
  %v1809 = vmax.f32 %v939, 0.0
  %v1810 = vmax.f32 %v944, 0.0
  %v1811 = vmax.f32 %v949, 0.0
  %v1812 = vmax.f32 %v954, 0.0
  %v1813 = vmax.f32 %v959, 0.0
  %v1814 = vmax.f32 %v964, 0.0
  %v1815 = vmax.f32 %v969, 0.0
  %v1816 = vmax.f32 %v974, 0.0
  %v1817 = vmax.f32 %v979, 0.0
  %v1818 = vmax.f32 %v984, 0.0
  %v1819 = vmax.f32 %v989, 0.0
  %v1820 = vmax.f32 %v994, 0.0
  %v1821 = vmax.f32 %v999, 0.0
  %v1822 = vmax.f32 %v1004, 0.0
  %v1823 = vmax.f32 %v1009, 0.0
  %v1824 = vmax.f32 %v1014, 0.0
  %v1825 = vmax.f32 %v1019, 0.0
  %v1826 = vmax.f32 %v1024, 0.0
  %v1827 = vmax.f32 %v1029, 0.0
  %v1828 = vmax.f32 %v1034, 0.0
  %v1829 = vmax.f32 %v1039, 0.0
  %v1830 = vmax.f32 %v1044, 0.0
  %v1831 = vmax.f32 %v1049, 0.0
  %v1832 = vmax.f32 %v1054, 0.0
  %v1833 = vmax.f32 %v1059, 0.0
  %v1834 = vmax.f32 %v1064, 0.0
  %v1835 = vmax.f32 %v1069, 0.0
  %v1836 = vmax.f32 %v1074, 0.0
  %v1837 = vmax.f32 %v1079, 0.0
  %v1838 = vmax.f32 %v1084, 0.0
  %v1839 = vmax.f32 %v1089, 0.0
  %v1840 = vmax.f32 %v1094, 0.0
  %v1841 = vmax.f32 %v1099, 0.0
  %v1842 = vmax.f32 %v1104, 0.0
  %v1843 = vmax.f32 %v1109, 0.0
  %v1844 = vmax.f32 %v1114, 0.0
  %v1845 = vmax.f32 %v1119, 0.0
  %v1846 = vmax.f32 %v1124, 0.0
  %v1847 = vmax.f32 %v1129, 0.0
  %v1848 = vmax.f32 %v1134, 0.0
  %v1849 = vmax.f32 %v1139, 0.0
  %v1850 = vmax.f32 %v1144, 0.0
  %v1851 = vmax.f32 %v1149, 0.0
  %v1852 = vmax.f32 %v1154, 0.0
  %v1853 = vmax.f32 %v1159, 0.0
  %v1854 = vmax.f32 %v1164, 0.0
  %v1855 = vmax.f32 %v1169, 0.0
  %v1856 = vmax.f32 %v1174, 0.0
  %v1857 = vmax.f32 %v1179, 0.0
  %v1858 = vmax.f32 %v1184, 0.0
  %v1859 = vmax.f32 %v1189, 0.0
  %v1860 = vmax.f32 %v1194, 0.0
  %v1861 = vmax.f32 %v1199, 0.0
  %v1862 = vmax.f32 %v1204, 0.0
  %v1863 = vmax.f32 %v1209, 0.0
  %v1864 = vmax.f32 %v1214, 0.0
  %v1865 = vmax.f32 %v1219, 0.0
  %v1866 = vmax.f32 %v1224, 0.0
  %v1867 = vmax.f32 %v1229, 0.0
  %v1868 = vmax.f32 %v1234, 0.0
  %v1869 = vmax.f32 %v1239, 0.0
  %v1870 = vmax.f32 %v1244, 0.0
  %v1871 = vmax.f32 %v1249, 0.0
  %v1872 = vmax.f32 %v1254, 0.0
  %v1873 = vmax.f32 %v1259, 0.0
  %v1874 = vmax.f32 %v1264, 0.0
  %v1875 = vmax.f32 %v1269, 0.0
  %v1876 = vmax.f32 %v1274, 0.0
  %v1877 = vmax.f32 %v1279, 0.0
  %v1878 = vmax.f32 %v1284, 0.0
  %v1879 = vmax.f32 %v1289, 0.0
  %v1880 = vmax.f32 %v1294, 0.0
  %v1881 = vmax.f32 %v1299, 0.0
  %v1882 = vmax.f32 %v1304, 0.0
  %v1883 = vmax.f32 %v1309, 0.0
  %v1884 = vmax.f32 %v1314, 0.0
  %v1885 = vmax.f32 %v1319, 0.0
  %v1886 = vmax.f32 %v1324, 0.0
  %v1887 = vmax.f32 %v1329, 0.0
  %v1888 = vmax.f32 %v1334, 0.0
  %v1889 = vmax.f32 %v1339, 0.0
  %v1890 = vmax.f32 %v1344, 0.0
  %v1891 = vmax.f32 %v1349, 0.0
  %v1892 = vmax.f32 %v1354, 0.0
  %v1893 = vmax.f32 %v1359, 0.0
  %v1894 = vmax.f32 %v1364, 0.0
  %v1895 = vmax.f32 %v1369, 0.0
  %v1896 = vmax.f32 %v1374, 0.0
  %v1897 = vmax.f32 %v1379, 0.0
  %v1898 = vmax.f32 %v1384, 0.0
  %v1899 = vmax.f32 %v1389, 0.0
  %v1900 = vmax.f32 %v1394, 0.0
  %v1901 = vmax.f32 %v1399, 0.0
  %v1902 = vmax.f32 %v1404, 0.0
  %v1903 = vmax.f32 %v1409, 0.0
  %v1904 = vmax.f32 %v1414, 0.0
  %v1905 = vmax.f32 %v1419, 0.0
  %v1906 = vmax.f32 %v1424, 0.0
  %v1907 = vmax.f32 %v1429, 0.0
  %v1908 = vmax.f32 %v1434, 0.0
  %v1909 = vmax.f32 %v1439, 0.0
  %v1910 = vmax.f32 %v1444, 0.0
  %v1911 = vmax.f32 %v1449, 0.0
  %v1912 = vmax.f32 %v1454, 0.0
  %v1913 = vmax.f32 %v1459, 0.0
  %v1914 = vmax.f32 %v1464, 0.0
  %v1915 = vmax.f32 %v1469, 0.0
  %v1916 = vmax.f32 %v1474, 0.0
  %v1917 = vmax.f32 %v1479, 0.0
  %v1918 = vmax.f32 %v1484, 0.0
  %v1919 = vmax.f32 %v1489, 0.0
  %v1920 = vmax.f32 %v1494, 0.0
  %v1921 = vmax.f32 %v1499, 0.0
  %v1922 = vmax.f32 %v1504, 0.0
  %v1923 = vmax.f32 %v1509, 0.0
  %v1924 = vmax.f32 %v1514, 0.0
  %v1925 = vmax.f32 %v1519, 0.0
  %v1926 = vmax.f32 %v1524, 0.0
  %v1927 = vmax.f32 %v1529, 0.0
  %v1928 = vmax.f32 %v1534, 0.0
  %v1929 = vmax.f32 %v1539, 0.0
  %v1930 = vmax.f32 %v1544, 0.0
  %v1931 = vmax.f32 %v1549, 0.0
  %v1932 = vmax.f32 %v1554, 0.0
  %v1933 = vmax.f32 %v1559, 0.0
  %v1934 = vmax.f32 %v1564, 0.0
  %v1935 = vmax.f32 %v1569, 0.0
  %v1936 = vmax.f32 %v1574, 0.0
  %v1937 = vmax.f32 %v1579, 0.0
  %v1938 = vmax.f32 %v1584, 0.0
  %v1939 = vmax.f32 %v1589, 0.0
  %v1940 = vmax.f32 %v1594, 0.0
  %v1941 = vmax.f32 %v1599, 0.0
  %v1942 = vmax.f32 %v1604, 0.0
  %v1943 = vmax.f32 %v1609, 0.0
  %v1944 = vmax.f32 %v1614, 0.0
  %v1945 = vmax.f32 %v1619, 0.0
  %v1946 = vmax.f32 %v1624, 0.0
  %v1947 = vmax.f32 %v1629, 0.0
  %v1948 = vmax.f32 %v1634, 0.0
  %v1949 = vmax.f32 %v1639, 0.0
  %v1950 = vmax.f32 %v1644, 0.0
  %v1951 = vmax.f32 %v1649, 0.0
  %v1952 = vmax.f32 %v1654, 0.0
  %v1953 = vmax.f32 %v1659, 0.0
  %v1954 = vmax.f32 %v1664, 0.0
  %v1955 = vmax.f32 %v1669, 0.0
  %v1956 = vmax.f32 %v1674, 0.0
  %v1957 = vmax.f32 %v1679, 0.0
  %v1958 = vmax.f32 %v1684, 0.0
  %v1959 = vmax.f32 %v1689, 0.0
  %v1960 = vmax.f32 %v1694, 0.0
  %v1961 = vmax.f32 %v1699, 0.0
  %v1962 = vmax.f32 %v1704, 0.0
  %v1963 = vmax.f32 %v1709, 0.0
  %v1964 = vmax.f32 %v1714, 0.0
  %v1965 = vmax.f32 %v1719, 0.0
  %v1966 = vmax.f32 %v1724, 0.0
  %v1967 = vmax.f32 %v1729, 0.0
  %v1968 = vmax.f32 %v1734, 0.0
  %v1969 = vmax.f32 %v1739, 0.0
  %v1970 = vmax.f32 %v1744, 0.0
  %v1971 = vmax.f32 %v1749, 0.0
  %v1972 = vmax.f32 %v1754, 0.0
  %v1973 = vmax.f32 %v1759, 0.0
  %v1974 = vmax.f32 %v1764, 0.0
  %v1975 = vmax.f32 %v1769, 0.0
  %v1976 = vmax.f32 %v1774, 0.0
  %v1977 = vmax.f32 %v1779, 0.0
  %v1978 = vmax.f32 %v1784, 0.0
  %v1979 = vmax.f32 %v1789, 0.0
  %v1980 = vld [vmem:[%s3] sm:$0xff]
  %v1981 = vld [vmem:[%s3 + $0x8] sm:$0xff]
  %v1982 = vld [vmem:[%s3 + $0x10] sm:$0xf]
  %v1983 = vld [vmem:[%s4] sm:$0x1]
  %v1985 = vlaneseq
  %v1986 = vshrl.u32 %v1985, 7
  %v1987 = vsub.s32 0, %v1986
  %v1988 = vrot.slane %v1983, %v1987
  %v1991 = vsel %vm218, %v1792, 0
  %v1994 = vsel %vm218, %v1793, 0
  %v1997 = vsel %vm218, %v1794, 0
  %v2000 = vsel %vm218, %v1795, 0
  %v2003 = vsel %vm218, %v1796, 0
  %v2006 = vsel %vm218, %v1797, 0
  %v2009 = vsel %vm218, %v1798, 0
  %v2012 = vsel %vm218, %v1799, 0
  %v2015 = vsel %vm218, %v1800, 0
  %v2018 = vsel %vm218, %v1801, 0
  %v2021 = vsel %vm218, %v1802, 0
  %v2024 = vsel %vm218, %v1803, 0
  %v2027 = vsel %vm218, %v1804, 0
  %v2030 = vsel %vm218, %v1805, 0
  %v2033 = vsel %vm218, %v1806, 0
  %v2036 = vsel %vm218, %v1807, 0
  %v2039 = vsel %vm218, %v1808, 0
  %v2042 = vsel %vm218, %v1809, 0
  %v2045 = vsel %vm218, %v1810, 0
  %v2048 = vsel %vm218, %v1811, 0
  %v2051 = vsel %vm218, %v1812, 0
  %v2054 = vsel %vm218, %v1813, 0
  %v2057 = vsel %vm218, %v1814, 0
  %v2060 = vsel %vm218, %v1815, 0
  %v2063 = vsel %vm218, %v1816, 0
  %v2066 = vsel %vm218, %v1817, 0
  %v2069 = vsel %vm218, %v1818, 0
  %v2072 = vsel %vm218, %v1819, 0
  %v2075 = vsel %vm218, %v1820, 0
  %v2078 = vsel %vm218, %v1821, 0
  %v2081 = vsel %vm218, %v1822, 0
  %v2084 = vsel %vm218, %v1823, 0
  %v2087 = vsel %vm218, %v1824, 0
  %v2090 = vsel %vm218, %v1825, 0
  %v2093 = vsel %vm218, %v1826, 0
  %v2096 = vsel %vm218, %v1827, 0
  %v2099 = vsel %vm218, %v1828, 0
  %v2102 = vsel %vm218, %v1829, 0
  %v2105 = vsel %vm218, %v1830, 0
  %v2108 = vsel %vm218, %v1831, 0
  %v2111 = vsel %vm218, %v1832, 0
  %v2114 = vsel %vm218, %v1833, 0
  %v2117 = vsel %vm218, %v1834, 0
  %v2120 = vsel %vm218, %v1835, 0
  %v2123 = vsel %vm218, %v1836, 0
  %v2126 = vsel %vm218, %v1837, 0
  %v2129 = vsel %vm218, %v1838, 0
  %v2132 = vsel %vm218, %v1839, 0
  %v2135 = vsel %vm218, %v1840, 0
  %v2138 = vsel %vm218, %v1841, 0
  %v2141 = vsel %vm218, %v1842, 0
  %v2144 = vsel %vm218, %v1843, 0
  %v2147 = vsel %vm218, %v1844, 0
  %v2150 = vsel %vm218, %v1845, 0
  %v2153 = vsel %vm218, %v1846, 0
  %v2156 = vsel %vm218, %v1847, 0
  %v2159 = vsel %vm218, %v1848, 0
  %v2162 = vsel %vm218, %v1849, 0
  %v2165 = vsel %vm218, %v1850, 0
  %v2168 = vsel %vm218, %v1851, 0
  %v2171 = vsel %vm218, %v1852, 0
  %v2174 = vsel %vm218, %v1853, 0
  %v2177 = vsel %vm218, %v1854, 0
  %v2180 = vsel %vm218, %v1855, 0
  %v2183 = vsel %vm218, %v1856, 0
  %v2186 = vsel %vm218, %v1857, 0
  %v2189 = vsel %vm218, %v1858, 0
  %v2192 = vsel %vm218, %v1859, 0
  %v2195 = vsel %vm218, %v1860, 0
  %v2198 = vsel %vm218, %v1861, 0
  %v2201 = vsel %vm218, %v1862, 0
  %v2204 = vsel %vm218, %v1863, 0
  %v2207 = vsel %vm218, %v1864, 0
  %v2210 = vsel %vm218, %v1865, 0
  %v2213 = vsel %vm218, %v1866, 0
  %v2216 = vsel %vm218, %v1867, 0
  %v2219 = vsel %vm218, %v1868, 0
  %v2222 = vsel %vm218, %v1869, 0
  %v2225 = vsel %vm218, %v1870, 0
  %v2228 = vsel %vm218, %v1871, 0
  %v2231 = vsel %vm218, %v1872, 0
  %v2234 = vsel %vm218, %v1873, 0
  %v2237 = vsel %vm218, %v1874, 0
  %v2240 = vsel %vm218, %v1875, 0
  %v2243 = vsel %vm218, %v1876, 0
  %v2246 = vsel %vm218, %v1877, 0
  %v2249 = vsel %vm218, %v1878, 0
  %v2252 = vsel %vm218, %v1879, 0
  %v2255 = vsel %vm218, %v1880, 0
  %v2258 = vsel %vm218, %v1881, 0
  %v2261 = vsel %vm218, %v1882, 0
  %v2264 = vsel %vm218, %v1883, 0
  %v2267 = vsel %vm218, %v1884, 0
  %v2270 = vsel %vm218, %v1885, 0
  %v2273 = vsel %vm218, %v1886, 0
  %v2276 = vsel %vm218, %v1887, 0
  %v2279 = vsel %vm218, %v1888, 0
  %v2282 = vsel %vm218, %v1889, 0
  %v2285 = vsel %vm218, %v1890, 0
  %v2288 = vsel %vm218, %v1891, 0
  %v2291 = vsel %vm218, %v1892, 0
  %v2294 = vsel %vm218, %v1893, 0
  %v2297 = vsel %vm218, %v1894, 0
  %v2300 = vsel %vm218, %v1895, 0
  %v2303 = vsel %vm218, %v1896, 0
  %v2306 = vsel %vm218, %v1897, 0
  %v2309 = vsel %vm218, %v1898, 0
  %v2312 = vsel %vm218, %v1899, 0
  %v2315 = vsel %vm218, %v1900, 0
  %v2318 = vsel %vm218, %v1901, 0
  %v2321 = vsel %vm218, %v1902, 0
  %v2324 = vsel %vm218, %v1903, 0
  %v2327 = vsel %vm218, %v1904, 0
  %v2330 = vsel %vm218, %v1905, 0
  %v2333 = vsel %vm218, %v1906, 0
  %v2336 = vsel %vm218, %v1907, 0
  %v2339 = vsel %vm218, %v1908, 0
  %v2342 = vsel %vm218, %v1909, 0
  %v2345 = vsel %vm218, %v1910, 0
  %v2348 = vsel %vm218, %v1911, 0
  %v2351 = vsel %vm218, %v1912, 0
  %v2354 = vsel %vm218, %v1913, 0
  %v2357 = vsel %vm218, %v1914, 0
  %v2360 = vsel %vm218, %v1915, 0
  %v2363 = vsel %vm218, %v1916, 0
  %v2366 = vsel %vm218, %v1917, 0
  %v2369 = vsel %vm218, %v1918, 0
  %v2372 = vsel %vm218, %v1919, 0
  %v2375 = vsel %vm218, %v1920, 0
  %v2378 = vsel %vm218, %v1921, 0
  %v2381 = vsel %vm218, %v1922, 0
  %v2384 = vsel %vm218, %v1923, 0
  %v2387 = vsel %vm218, %v1924, 0
  %v2390 = vsel %vm218, %v1925, 0
  %v2393 = vsel %vm218, %v1926, 0
  %v2396 = vsel %vm218, %v1927, 0
  %v2399 = vsel %vm218, %v1928, 0
  %v2402 = vsel %vm218, %v1929, 0
  %v2405 = vsel %vm218, %v1930, 0
  %v2408 = vsel %vm218, %v1931, 0
  %v2411 = vsel %vm218, %v1932, 0
  %v2414 = vsel %vm218, %v1933, 0
  %v2417 = vsel %vm218, %v1934, 0
  %v2420 = vsel %vm218, %v1935, 0
  %v2423 = vsel %vm218, %v1936, 0
  %v2426 = vsel %vm218, %v1937, 0
  %v2429 = vsel %vm218, %v1938, 0
  %v2432 = vsel %vm218, %v1939, 0
  %v2435 = vsel %vm218, %v1940, 0
  %v2438 = vsel %vm218, %v1941, 0
  %v2441 = vsel %vm218, %v1942, 0
  %v2444 = vsel %vm218, %v1943, 0
  %v2447 = vsel %vm218, %v1944, 0
  %v2450 = vsel %vm218, %v1945, 0
  %v2453 = vsel %vm218, %v1946, 0
  %v2456 = vsel %vm218, %v1947, 0
  %v2459 = vsel %vm218, %v1948, 0
  %v2462 = vsel %vm218, %v1949, 0
  %v2465 = vsel %vm218, %v1950, 0
  %v2468 = vsel %vm218, %v1951, 0
  %v2471 = vsel %vm218, %v1952, 0
  %v2474 = vsel %vm218, %v1953, 0
  %v2477 = vsel %vm218, %v1954, 0
  %v2480 = vsel %vm218, %v1955, 0
  %v2483 = vsel %vm218, %v1956, 0
  %v2486 = vsel %vm218, %v1957, 0
  %v2489 = vsel %vm218, %v1958, 0
  %v2492 = vsel %vm218, %v1959, 0
  %v2495 = vsel %vm218, %v1960, 0
  %v2498 = vsel %vm218, %v1961, 0
  %v2501 = vsel %vm218, %v1962, 0
  %v2504 = vsel %vm218, %v1963, 0
  %v2507 = vsel %vm218, %v1964, 0
  %v2510 = vsel %vm218, %v1965, 0
  %v2513 = vsel %vm218, %v1966, 0
  %v2516 = vsel %vm218, %v1967, 0
  %v2519 = vsel %vm218, %v1968, 0
  %v2522 = vsel %vm218, %v1969, 0
  %v2525 = vsel %vm218, %v1970, 0
  %v2528 = vsel %vm218, %v1971, 0
  %v2531 = vsel %vm218, %v1972, 0
  %v2534 = vsel %vm218, %v1973, 0
  %v2537 = vsel %vm218, %v1974, 0
  %v2540 = vsel %vm218, %v1975, 0
  %v2543 = vsel %vm218, %v1976, 0
  %v2546 = vsel %vm218, %v1977, 0
  %v2549 = vsel %vm218, %v1978, 0
  %v2552 = vsel %vm218, %v1979, 0
  %v2555 = vsel %vm783, %v1982, 0
  %2557 = vmatprep.subr.mxu0 0.0
  %2558 = vmatpush1.msra.mxu0 %v1980
  %2559 = vmatprep.subr.mxu0 0.0
  %2560 = vmatpush1.msra.mxu0 %v1981
  %2561 = vmatprep.subr.mxu0 0.0
  %2562 = vmatpush1.msra.mxu0 %v2555
  %2563 = vmatprep.subr.mxu0 0.0
  %2564 = vmatpush1.msra.mxu0 0.0
  %2565 = vmatprep.subr.mxu0 0.0
  %2566 = vmatpush1.msra.mxu0 0.0
  %2567 = vmatprep.subr.mxu0 0.0
  %2568 = vmatpush1.msra.mxu0 0.0
  %2569 = vmatprep.subr.mxu0 0.0
  %2570 = vmatpush1.msra.mxu0 0.0
  %2571 = vmatprep.subr.mxu0 0.0
  %2572 = vmatpush1.msra.mxu0 0.0
  %2573 = vmatprep.subr.mxu0 0.0
  %2574 = vmatpush1.msra.mxu0 0.0
  %2575 = vmatprep.subr.mxu0 0.0
  %2576 = vmatpush1.msra.mxu0 0.0
  %2577 = vmatprep.subr.mxu0 0.0
  %2578 = vmatpush1.msra.mxu0 0.0
  %2579 = vmatprep.subr.mxu0 0.0
  %2580 = vmatpush1.msra.mxu0 0.0
  %2581 = vmatprep.subr.mxu0 0.0
  %2582 = vmatpush1.msra.mxu0 0.0
  %2583 = vmatprep.subr.mxu0 0.0
  %2584 = vmatpush1.msra.mxu0 0.0
  %2585 = vmatprep.subr.mxu0 0.0
  %2586 = vmatpush1.msra.mxu0 0.0
  %2587 = vmatprep.subr.mxu0 0.0
  %2588 = vmatpush1.msra.mxu0 0.0
  %2589 = vmatprep.subr.mxu0 0.0
  %2590 = vmatpush1.msra.mxu0 0.0
  %2591 = vmatprep.subr.mxu0 0.0
  %2592 = vmatpush1.msra.mxu0 0.0
  %2593 = vmatprep.subr.mxu0 0.0
  %2594 = vmatpush1.msra.mxu0 0.0
  %2595 = vmatprep.subr.mxu0 0.0
  %2596 = vmatpush1.msra.mxu0 0.0
  %2597 = vmatprep.subr.mxu0 0.0
  %2598 = vmatpush1.msra.mxu0 0.0
  %2599 = vmatprep.subr.mxu0 0.0
  %2600 = vmatpush1.msra.mxu0 0.0
  %2601 = vmatprep.subr.mxu0 0.0
  %2602 = vmatpush1.msra.mxu0 0.0
  %2603 = vmatprep.subr.mxu0 0.0
  %2604 = vmatpush1.msra.mxu0 0.0
  %2605 = vmatprep.subr.mxu0 0.0
  %2606 = vmatpush1.msra.mxu0 0.0
  %2607 = vmatprep.subr.mxu0 0.0
  %2608 = vmatpush1.msra.mxu0 0.0
  %2609 = vmatprep.subr.mxu0 0.0
  %2610 = vmatpush1.msra.mxu0 0.0
  %2611 = vmatprep.subr.mxu0 0.0
  %2612 = vmatpush1.msra.mxu0 0.0
  %2613 = vmatprep.subr.mxu0 0.0
  %2614 = vmatpush1.msra.mxu0 0.0
  %2615 = vmatprep.subr.mxu0 0.0
  %2616 = vmatpush1.msra.mxu0 0.0
  %2617 = vmatprep.subr.mxu0 0.0
  %2618 = vmatpush1.msra.mxu0 0.0
  %2619 = vmatprep.subr.mxu0 0.0
  %2620 = vmatpush1.msra.mxu0 0.0
  %2621 = vmatprep.mubr.f32.mxu0 0.0
  %2622 = vmatmul.mubr.f32.gmra.mrb[0].mxu0 %v1991
  %v2623 = vpop.f32.mrb[0].mxu0
  %v2624 = vadd.f32 %v1988, %v2623
  %v2625 = vpop.f32.mrb[0].mxu0
  %2626 = vmatprep.mubr.f32.mxu0 0.0
  %2627 = vmatmul.mubr.f32.gmra.mrb[0].mxu0 %v1994
  %v2628 = vpop.f32.mrb[0].mxu0
  %v2629 = vadd.f32 %v1988, %v2628
  %v2630 = vpop.f32.mrb[0].mxu0
  %2631 = vmatprep.mubr.f32.mxu0 0.0
  %2632 = vmatmul.mubr.f32.gmra.mrb[0].mxu0 %v1997
  %v2633 = vpop.f32.mrb[0].mxu0
  %v2634 = vadd.f32 %v1988, %v2633
  %v2635 = vpop.f32.mrb[0].mxu0
  %2636 = vmatprep.mubr.f32.mxu0 0.0
  %2637 = vmatmul.mubr.f32.gmra.mrb[0].mxu0 %v2000
  %v2638 = vpop.f32.mrb[0].mxu0
  %v2639 = vadd.f32 %v1988, %v2638
  %v2640 = vpop.f32.mrb[0].mxu0
  %2641 = vmatprep.mubr.f32.mxu0 0.0
  %2642 = vmatmul.mubr.f32.gmra.mrb[0].mxu0 %v2003
  %v2643 = vpop.f32.mrb[0].mxu0
  %v2644 = vadd.f32 %v1988, %v2643
  %v2645 = vpop.f32.mrb[0].mxu0
  %2646 = vmatprep.mubr.f32.mxu0 0.0
  %2647 = vmatmul.mubr.f32.gmra.mrb[0].mxu0 %v2006
  %v2648 = vpop.f32.mrb[0].mxu0
  %v2649 = vadd.f32 %v1988, %v2648
  %v2650 = vpop.f32.mrb[0].mxu0
  %2651 = vmatprep.mubr.f32.mxu0 0.0
  %2652 = vmatmul.mubr.f32.gmra.mrb[0].mxu0 %v2009
  %v2653 = vpop.f32.mrb[0].mxu0
  %v2654 = vadd.f32 %v1988, %v2653
  %v2655 = vpop.f32.mrb[0].mxu0
  %2656 = vmatprep.mubr.f32.mxu0 0.0
  %2657 = vmatmul.mubr.f32.gmra.mrb[0].mxu0 %v2012
  %v2658 = vpop.f32.mrb[0].mxu0
  %v2659 = vadd.f32 %v1988, %v2658
  %v2660 = vpop.f32.mrb[0].mxu0
  %2661 = vmatprep.mubr.f32.mxu0 0.0
  %2662 = vmatmul.mubr.f32.gmra.mrb[0].mxu0 %v2015
  %v2663 = vpop.f32.mrb[0].mxu0
  %v2664 = vadd.f32 %v1988, %v2663
  %v2665 = vpop.f32.mrb[0].mxu0
  %2666 = vmatprep.mubr.f32.mxu0 0.0
  %2667 = vmatmul.mubr.f32.gmra.mrb[0].mxu0 %v2018
  %v2668 = vpop.f32.mrb[0].mxu0
  %v2669 = vadd.f32 %v1988, %v2668
  %v2670 = vpop.f32.mrb[0].mxu0
  %2671 = vmatprep.mubr.f32.mxu0 0.0
  %2672 = vmatmul.mubr.f32.gmra.mrb[0].mxu0 %v2021
  %v2673 = vpop.f32.mrb[0].mxu0
  %v2674 = vadd.f32 %v1988, %v2673
  %v2675 = vpop.f32.mrb[0].mxu0
  %2676 = vmatprep.mubr.f32.mxu0 0.0
  %2677 = vmatmul.mubr.f32.gmra.mrb[0].mxu0 %v2024
  %v2678 = vpop.f32.mrb[0].mxu0
  %v2679 = vadd.f32 %v1988, %v2678
  %v2680 = vpop.f32.mrb[0].mxu0
  %2681 = vmatprep.mubr.f32.mxu0 0.0
  %2682 = vmatmul.mubr.f32.gmra.mrb[0].mxu0 %v2027
  %v2683 = vpop.f32.mrb[0].mxu0
  %v2684 = vadd.f32 %v1988, %v2683
  %v2685 = vpop.f32.mrb[0].mxu0
  %2686 = vmatprep.mubr.f32.mxu0 0.0
  %2687 = vmatmul.mubr.f32.gmra.mrb[0].mxu0 %v2030
  %v2688 = vpop.f32.mrb[0].mxu0
  %v2689 = vadd.f32 %v1988, %v2688
  %v2690 = vpop.f32.mrb[0].mxu0
  %2691 = vmatprep.mubr.f32.mxu0 0.0
  %2692 = vmatmul.mubr.f32.gmra.mrb[0].mxu0 %v2033
  %v2693 = vpop.f32.mrb[0].mxu0
  %v2694 = vadd.f32 %v1988, %v2693
  %v2695 = vpop.f32.mrb[0].mxu0
  %2696 = vmatprep.mubr.f32.mxu0 0.0
  %2697 = vmatmul.mubr.f32.gmra.mrb[0].mxu0 %v2036
  %v2698 = vpop.f32.mrb[0].mxu0
  %v2699 = vadd.f32 %v1988, %v2698
  %v2700 = vpop.f32.mrb[0].mxu0
  %2701 = vmatprep.mubr.f32.mxu0 0.0
  %2702 = vmatmul.mubr.f32.gmra.mrb[0].mxu0 %v2039
  %v2703 = vpop.f32.mrb[0].mxu0
  %v2704 = vadd.f32 %v1988, %v2703
  %v2705 = vpop.f32.mrb[0].mxu0
  %2706 = vmatprep.mubr.f32.mxu0 0.0
  %2707 = vmatmul.mubr.f32.gmra.mrb[0].mxu0 %v2042
  %v2708 = vpop.f32.mrb[0].mxu0
  %v2709 = vadd.f32 %v1988, %v2708
  %v2710 = vpop.f32.mrb[0].mxu0
  %2711 = vmatprep.mubr.f32.mxu0 0.0
  %2712 = vmatmul.mubr.f32.gmra.mrb[0].mxu0 %v2045
  %v2713 = vpop.f32.mrb[0].mxu0
  %v2714 = vadd.f32 %v1988, %v2713
  %v2715 = vpop.f32.mrb[0].mxu0
  %2716 = vmatprep.mubr.f32.mxu0 0.0
  %2717 = vmatmul.mubr.f32.gmra.mrb[0].mxu0 %v2048
  %v2718 = vpop.f32.mrb[0].mxu0
  %v2719 = vadd.f32 %v1988, %v2718
  %v2720 = vpop.f32.mrb[0].mxu0
  %2721 = vmatprep.mubr.f32.mxu0 0.0
  %2722 = vmatmul.mubr.f32.gmra.mrb[0].mxu0 %v2051
  %v2723 = vpop.f32.mrb[0].mxu0
  %v2724 = vadd.f32 %v1988, %v2723
  %v2725 = vpop.f32.mrb[0].mxu0
  %2726 = vmatprep.mubr.f32.mxu0 0.0
  %2727 = vmatmul.mubr.f32.gmra.mrb[0].mxu0 %v2054
  %v2728 = vpop.f32.mrb[0].mxu0
  %v2729 = vadd.f32 %v1988, %v2728
  %v2730 = vpop.f32.mrb[0].mxu0
  %2731 = vmatprep.mubr.f32.mxu0 0.0
  %2732 = vmatmul.mubr.f32.gmra.mrb[0].mxu0 %v2057
  %v2733 = vpop.f32.mrb[0].mxu0
  %v2734 = vadd.f32 %v1988, %v2733
  %v2735 = vpop.f32.mrb[0].mxu0
  %2736 = vmatprep.mubr.f32.mxu0 0.0
  %2737 = vmatmul.mubr.f32.gmra.mrb[0].mxu0 %v2060
  %v2738 = vpop.f32.mrb[0].mxu0
  %v2739 = vadd.f32 %v1988, %v2738
  %v2740 = vpop.f32.mrb[0].mxu0
  %2741 = vmatprep.mubr.f32.mxu0 0.0
  %2742 = vmatmul.mubr.f32.gmra.mrb[0].mxu0 %v2063
  %v2743 = vpop.f32.mrb[0].mxu0
  %v2744 = vadd.f32 %v1988, %v2743
  %v2745 = vpop.f32.mrb[0].mxu0
  %2746 = vmatprep.mubr.f32.mxu0 0.0
  %2747 = vmatmul.mubr.f32.gmra.mrb[0].mxu0 %v2066
  %v2748 = vpop.f32.mrb[0].mxu0
  %v2749 = vadd.f32 %v1988, %v2748
  %v2750 = vpop.f32.mrb[0].mxu0
  %2751 = vmatprep.mubr.f32.mxu0 0.0
  %2752 = vmatmul.mubr.f32.gmra.mrb[0].mxu0 %v2069
  %v2753 = vpop.f32.mrb[0].mxu0
  %v2754 = vadd.f32 %v1988, %v2753
  %v2755 = vpop.f32.mrb[0].mxu0
  %2756 = vmatprep.mubr.f32.mxu0 0.0
  %2757 = vmatmul.mubr.f32.gmra.mrb[0].mxu0 %v2072
  %v2758 = vpop.f32.mrb[0].mxu0
  %v2759 = vadd.f32 %v1988, %v2758
  %v2760 = vpop.f32.mrb[0].mxu0
  %2761 = vmatprep.mubr.f32.mxu0 0.0
  %2762 = vmatmul.mubr.f32.gmra.mrb[0].mxu0 %v2075
  %v2763 = vpop.f32.mrb[0].mxu0
  %v2764 = vadd.f32 %v1988, %v2763
  %v2765 = vpop.f32.mrb[0].mxu0
  %2766 = vmatprep.mubr.f32.mxu0 0.0
  %2767 = vmatmul.mubr.f32.gmra.mrb[0].mxu0 %v2078
  %v2768 = vpop.f32.mrb[0].mxu0
  %v2769 = vadd.f32 %v1988, %v2768
  %v2770 = vpop.f32.mrb[0].mxu0
  %2771 = vmatprep.mubr.f32.mxu0 0.0
  %2772 = vmatmul.mubr.f32.gmra.mrb[0].mxu0 %v2081
  %v2773 = vpop.f32.mrb[0].mxu0
  %v2774 = vadd.f32 %v1988, %v2773
  %v2775 = vpop.f32.mrb[0].mxu0
  %2776 = vmatprep.mubr.f32.mxu0 0.0
  %2777 = vmatmul.mubr.f32.gmra.mrb[0].mxu0 %v2084
  %v2778 = vpop.f32.mrb[0].mxu0
  %v2779 = vadd.f32 %v1988, %v2778
  %v2780 = vpop.f32.mrb[0].mxu0
  %2781 = vmatprep.mubr.f32.mxu0 0.0
  %2782 = vmatmul.mubr.f32.gmra.mrb[0].mxu0 %v2087
  %v2783 = vpop.f32.mrb[0].mxu0
  %v2784 = vadd.f32 %v1988, %v2783
  %v2785 = vpop.f32.mrb[0].mxu0
  %2786 = vmatprep.mubr.f32.mxu0 0.0
  %2787 = vmatmul.mubr.f32.gmra.mrb[0].mxu0 %v2090
  %v2788 = vpop.f32.mrb[0].mxu0
  %v2789 = vadd.f32 %v1988, %v2788
  %v2790 = vpop.f32.mrb[0].mxu0
  %2791 = vmatprep.mubr.f32.mxu0 0.0
  %2792 = vmatmul.mubr.f32.gmra.mrb[0].mxu0 %v2093
  %v2793 = vpop.f32.mrb[0].mxu0
  %v2794 = vadd.f32 %v1988, %v2793
  %v2795 = vpop.f32.mrb[0].mxu0
  %2796 = vmatprep.mubr.f32.mxu0 0.0
  %2797 = vmatmul.mubr.f32.gmra.mrb[0].mxu0 %v2096
  %v2798 = vpop.f32.mrb[0].mxu0
  %v2799 = vadd.f32 %v1988, %v2798
  %v2800 = vpop.f32.mrb[0].mxu0
  %2801 = vmatprep.mubr.f32.mxu0 0.0
  %2802 = vmatmul.mubr.f32.gmra.mrb[0].mxu0 %v2099
  %v2803 = vpop.f32.mrb[0].mxu0
  %v2804 = vadd.f32 %v1988, %v2803
  %v2805 = vpop.f32.mrb[0].mxu0
  %2806 = vmatprep.mubr.f32.mxu0 0.0
  %2807 = vmatmul.mubr.f32.gmra.mrb[0].mxu0 %v2102
  %v2808 = vpop.f32.mrb[0].mxu0
  %v2809 = vadd.f32 %v1988, %v2808
  %v2810 = vpop.f32.mrb[0].mxu0
  %2811 = vmatprep.mubr.f32.mxu0 0.0
  %2812 = vmatmul.mubr.f32.gmra.mrb[0].mxu0 %v2105
  %v2813 = vpop.f32.mrb[0].mxu0
  %v2814 = vadd.f32 %v1988, %v2813
  %v2815 = vpop.f32.mrb[0].mxu0
  %2816 = vmatprep.mubr.f32.mxu0 0.0
  %2817 = vmatmul.mubr.f32.gmra.mrb[0].mxu0 %v2108
  %v2818 = vpop.f32.mrb[0].mxu0
  %v2819 = vadd.f32 %v1988, %v2818
  %v2820 = vpop.f32.mrb[0].mxu0
  %2821 = vmatprep.mubr.f32.mxu0 0.0
  %2822 = vmatmul.mubr.f32.gmra.mrb[0].mxu0 %v2111
  %v2823 = vpop.f32.mrb[0].mxu0
  %v2824 = vadd.f32 %v1988, %v2823
  %v2825 = vpop.f32.mrb[0].mxu0
  %2826 = vmatprep.mubr.f32.mxu0 0.0
  %2827 = vmatmul.mubr.f32.gmra.mrb[0].mxu0 %v2114
  %v2828 = vpop.f32.mrb[0].mxu0
  %v2829 = vadd.f32 %v1988, %v2828
  %v2830 = vpop.f32.mrb[0].mxu0
  %2831 = vmatprep.mubr.f32.mxu0 0.0
  %2832 = vmatmul.mubr.f32.gmra.mrb[0].mxu0 %v2117
  %v2833 = vpop.f32.mrb[0].mxu0
  %v2834 = vadd.f32 %v1988, %v2833
  %v2835 = vpop.f32.mrb[0].mxu0
  %2836 = vmatprep.mubr.f32.mxu0 0.0
  %2837 = vmatmul.mubr.f32.gmra.mrb[0].mxu0 %v2120
  %v2838 = vpop.f32.mrb[0].mxu0
  %v2839 = vadd.f32 %v1988, %v2838
  %v2840 = vpop.f32.mrb[0].mxu0
  %2841 = vmatprep.mubr.f32.mxu0 0.0
  %2842 = vmatmul.mubr.f32.gmra.mrb[0].mxu0 %v2123
  %v2843 = vpop.f32.mrb[0].mxu0
  %v2844 = vadd.f32 %v1988, %v2843
  %v2845 = vpop.f32.mrb[0].mxu0
  %2846 = vmatprep.mubr.f32.mxu0 0.0
  %2847 = vmatmul.mubr.f32.gmra.mrb[0].mxu0 %v2126
  %v2848 = vpop.f32.mrb[0].mxu0
  %v2849 = vadd.f32 %v1988, %v2848
  %v2850 = vpop.f32.mrb[0].mxu0
  %2851 = vmatprep.mubr.f32.mxu0 0.0
  %2852 = vmatmul.mubr.f32.gmra.mrb[0].mxu0 %v2129
  %v2853 = vpop.f32.mrb[0].mxu0
  %v2854 = vadd.f32 %v1988, %v2853
  %v2855 = vpop.f32.mrb[0].mxu0
  %2856 = vmatprep.mubr.f32.mxu0 0.0
  %2857 = vmatmul.mubr.f32.gmra.mrb[0].mxu0 %v2132
  %v2858 = vpop.f32.mrb[0].mxu0
  %v2859 = vadd.f32 %v1988, %v2858
  %v2860 = vpop.f32.mrb[0].mxu0
  %2861 = vmatprep.mubr.f32.mxu0 0.0
  %2862 = vmatmul.mubr.f32.gmra.mrb[0].mxu0 %v2135
  %v2863 = vpop.f32.mrb[0].mxu0
  %v2864 = vadd.f32 %v1988, %v2863
  %v2865 = vpop.f32.mrb[0].mxu0
  %2866 = vmatprep.mubr.f32.mxu0 0.0
  %2867 = vmatmul.mubr.f32.gmra.mrb[0].mxu0 %v2138
  %v2868 = vpop.f32.mrb[0].mxu0
  %v2869 = vadd.f32 %v1988, %v2868
  %v2870 = vpop.f32.mrb[0].mxu0
  %2871 = vmatprep.mubr.f32.mxu0 0.0
  %2872 = vmatmul.mubr.f32.gmra.mrb[0].mxu0 %v2141
  %v2873 = vpop.f32.mrb[0].mxu0
  %v2874 = vadd.f32 %v1988, %v2873
  %v2875 = vpop.f32.mrb[0].mxu0
  %2876 = vmatprep.mubr.f32.mxu0 0.0
  %2877 = vmatmul.mubr.f32.gmra.mrb[0].mxu0 %v2144
  %v2878 = vpop.f32.mrb[0].mxu0
  %v2879 = vadd.f32 %v1988, %v2878
  %v2880 = vpop.f32.mrb[0].mxu0
  %2881 = vmatprep.mubr.f32.mxu0 0.0
  %2882 = vmatmul.mubr.f32.gmra.mrb[0].mxu0 %v2147
  %v2883 = vpop.f32.mrb[0].mxu0
  %v2884 = vadd.f32 %v1988, %v2883
  %v2885 = vpop.f32.mrb[0].mxu0
  %2886 = vmatprep.mubr.f32.mxu0 0.0
  %2887 = vmatmul.mubr.f32.gmra.mrb[0].mxu0 %v2150
  %v2888 = vpop.f32.mrb[0].mxu0
  %v2889 = vadd.f32 %v1988, %v2888
  %v2890 = vpop.f32.mrb[0].mxu0
  %2891 = vmatprep.mubr.f32.mxu0 0.0
  %2892 = vmatmul.mubr.f32.gmra.mrb[0].mxu0 %v2153
  %v2893 = vpop.f32.mrb[0].mxu0
  %v2894 = vadd.f32 %v1988, %v2893
  %v2895 = vpop.f32.mrb[0].mxu0
  %2896 = vmatprep.mubr.f32.mxu0 0.0
  %2897 = vmatmul.mubr.f32.gmra.mrb[0].mxu0 %v2156
  %v2898 = vpop.f32.mrb[0].mxu0
  %v2899 = vadd.f32 %v1988, %v2898
  %v2900 = vpop.f32.mrb[0].mxu0
  %2901 = vmatprep.mubr.f32.mxu0 0.0
  %2902 = vmatmul.mubr.f32.gmra.mrb[0].mxu0 %v2159
  %v2903 = vpop.f32.mrb[0].mxu0
  %v2904 = vadd.f32 %v1988, %v2903
  %v2905 = vpop.f32.mrb[0].mxu0
  %2906 = vmatprep.mubr.f32.mxu0 0.0
  %2907 = vmatmul.mubr.f32.gmra.mrb[0].mxu0 %v2162
  %v2908 = vpop.f32.mrb[0].mxu0
  %v2909 = vadd.f32 %v1988, %v2908
  %v2910 = vpop.f32.mrb[0].mxu0
  %2911 = vmatprep.mubr.f32.mxu0 0.0
  %2912 = vmatmul.mubr.f32.gmra.mrb[0].mxu0 %v2165
  %v2913 = vpop.f32.mrb[0].mxu0
  %v2914 = vadd.f32 %v1988, %v2913
  %v2915 = vpop.f32.mrb[0].mxu0
  %2916 = vmatprep.mubr.f32.mxu0 0.0
  %2917 = vmatmul.mubr.f32.gmra.mrb[0].mxu0 %v2168
  %v2918 = vpop.f32.mrb[0].mxu0
  %v2919 = vadd.f32 %v1988, %v2918
  %v2920 = vpop.f32.mrb[0].mxu0
  %2921 = vmatprep.mubr.f32.mxu0 0.0
  %2922 = vmatmul.mubr.f32.gmra.mrb[0].mxu0 %v2171
  %v2923 = vpop.f32.mrb[0].mxu0
  %v2924 = vadd.f32 %v1988, %v2923
  %v2925 = vpop.f32.mrb[0].mxu0
  %2926 = vmatprep.mubr.f32.mxu0 0.0
  %2927 = vmatmul.mubr.f32.gmra.mrb[0].mxu0 %v2174
  %v2928 = vpop.f32.mrb[0].mxu0
  %v2929 = vadd.f32 %v1988, %v2928
  %v2930 = vpop.f32.mrb[0].mxu0
  %2931 = vmatprep.mubr.f32.mxu0 0.0
  %2932 = vmatmul.mubr.f32.gmra.mrb[0].mxu0 %v2177
  %v2933 = vpop.f32.mrb[0].mxu0
  %v2934 = vadd.f32 %v1988, %v2933
  %v2935 = vpop.f32.mrb[0].mxu0
  %2936 = vmatprep.mubr.f32.mxu0 0.0
  %2937 = vmatmul.mubr.f32.gmra.mrb[0].mxu0 %v2180
  %v2938 = vpop.f32.mrb[0].mxu0
  %v2939 = vadd.f32 %v1988, %v2938
  %v2940 = vpop.f32.mrb[0].mxu0
  %2941 = vmatprep.mubr.f32.mxu0 0.0
  %2942 = vmatmul.mubr.f32.gmra.mrb[0].mxu0 %v2183
  %v2943 = vpop.f32.mrb[0].mxu0
  %v2944 = vadd.f32 %v1988, %v2943
  %v2945 = vpop.f32.mrb[0].mxu0
  %2946 = vmatprep.mubr.f32.mxu0 0.0
  %2947 = vmatmul.mubr.f32.gmra.mrb[0].mxu0 %v2186
  %v2948 = vpop.f32.mrb[0].mxu0
  %v2949 = vadd.f32 %v1988, %v2948
  %v2950 = vpop.f32.mrb[0].mxu0
  %2951 = vmatprep.mubr.f32.mxu0 0.0
  %2952 = vmatmul.mubr.f32.gmra.mrb[0].mxu0 %v2189
  %v2953 = vpop.f32.mrb[0].mxu0
  %v2954 = vadd.f32 %v1988, %v2953
  %v2955 = vpop.f32.mrb[0].mxu0
  %2956 = vmatprep.mubr.f32.mxu0 0.0
  %2957 = vmatmul.mubr.f32.gmra.mrb[0].mxu0 %v2192
  %v2958 = vpop.f32.mrb[0].mxu0
  %v2959 = vadd.f32 %v1988, %v2958
  %v2960 = vpop.f32.mrb[0].mxu0
  %2961 = vmatprep.mubr.f32.mxu0 0.0
  %2962 = vmatmul.mubr.f32.gmra.mrb[0].mxu0 %v2195
  %v2963 = vpop.f32.mrb[0].mxu0
  %v2964 = vadd.f32 %v1988, %v2963
  %v2965 = vpop.f32.mrb[0].mxu0
  %2966 = vmatprep.mubr.f32.mxu0 0.0
  %2967 = vmatmul.mubr.f32.gmra.mrb[0].mxu0 %v2198
  %v2968 = vpop.f32.mrb[0].mxu0
  %v2969 = vadd.f32 %v1988, %v2968
  %v2970 = vpop.f32.mrb[0].mxu0
  %2971 = vmatprep.mubr.f32.mxu0 0.0
  %2972 = vmatmul.mubr.f32.gmra.mrb[0].mxu0 %v2201
  %v2973 = vpop.f32.mrb[0].mxu0
  %v2974 = vadd.f32 %v1988, %v2973
  %v2975 = vpop.f32.mrb[0].mxu0
  %2976 = vmatprep.mubr.f32.mxu0 0.0
  %2977 = vmatmul.mubr.f32.gmra.mrb[0].mxu0 %v2204
  %v2978 = vpop.f32.mrb[0].mxu0
  %v2979 = vadd.f32 %v1988, %v2978
  %v2980 = vpop.f32.mrb[0].mxu0
  %2981 = vmatprep.mubr.f32.mxu0 0.0
  %2982 = vmatmul.mubr.f32.gmra.mrb[0].mxu0 %v2207
  %v2983 = vpop.f32.mrb[0].mxu0
  %v2984 = vadd.f32 %v1988, %v2983
  %v2985 = vpop.f32.mrb[0].mxu0
  %2986 = vmatprep.mubr.f32.mxu0 0.0
  %2987 = vmatmul.mubr.f32.gmra.mrb[0].mxu0 %v2210
  %v2988 = vpop.f32.mrb[0].mxu0
  %v2989 = vadd.f32 %v1988, %v2988
  %v2990 = vpop.f32.mrb[0].mxu0
  %2991 = vmatprep.mubr.f32.mxu0 0.0
  %2992 = vmatmul.mubr.f32.gmra.mrb[0].mxu0 %v2213
  %v2993 = vpop.f32.mrb[0].mxu0
  %v2994 = vadd.f32 %v1988, %v2993
  %v2995 = vpop.f32.mrb[0].mxu0
  %2996 = vmatprep.mubr.f32.mxu0 0.0
  %2997 = vmatmul.mubr.f32.gmra.mrb[0].mxu0 %v2216
  %v2998 = vpop.f32.mrb[0].mxu0
  %v2999 = vadd.f32 %v1988, %v2998
  %v3000 = vpop.f32.mrb[0].mxu0
  %3001 = vmatprep.mubr.f32.mxu0 0.0
  %3002 = vmatmul.mubr.f32.gmra.mrb[0].mxu0 %v2219
  %v3003 = vpop.f32.mrb[0].mxu0
  %v3004 = vadd.f32 %v1988, %v3003
  %v3005 = vpop.f32.mrb[0].mxu0
  %3006 = vmatprep.mubr.f32.mxu0 0.0
  %3007 = vmatmul.mubr.f32.gmra.mrb[0].mxu0 %v2222
  %v3008 = vpop.f32.mrb[0].mxu0
  %v3009 = vadd.f32 %v1988, %v3008
  %v3010 = vpop.f32.mrb[0].mxu0
  %3011 = vmatprep.mubr.f32.mxu0 0.0
  %3012 = vmatmul.mubr.f32.gmra.mrb[0].mxu0 %v2225
  %v3013 = vpop.f32.mrb[0].mxu0
  %v3014 = vadd.f32 %v1988, %v3013
  %v3015 = vpop.f32.mrb[0].mxu0
  %3016 = vmatprep.mubr.f32.mxu0 0.0
  %3017 = vmatmul.mubr.f32.gmra.mrb[0].mxu0 %v2228
  %v3018 = vpop.f32.mrb[0].mxu0
  %v3019 = vadd.f32 %v1988, %v3018
  %v3020 = vpop.f32.mrb[0].mxu0
  %3021 = vmatprep.mubr.f32.mxu0 0.0
  %3022 = vmatmul.mubr.f32.gmra.mrb[0].mxu0 %v2231
  %v3023 = vpop.f32.mrb[0].mxu0
  %v3024 = vadd.f32 %v1988, %v3023
  %v3025 = vpop.f32.mrb[0].mxu0
  %3026 = vmatprep.mubr.f32.mxu0 0.0
  %3027 = vmatmul.mubr.f32.gmra.mrb[0].mxu0 %v2234
  %v3028 = vpop.f32.mrb[0].mxu0
  %v3029 = vadd.f32 %v1988, %v3028
  %v3030 = vpop.f32.mrb[0].mxu0
  %3031 = vmatprep.mubr.f32.mxu0 0.0
  %3032 = vmatmul.mubr.f32.gmra.mrb[0].mxu0 %v2237
  %v3033 = vpop.f32.mrb[0].mxu0
  %v3034 = vadd.f32 %v1988, %v3033
  %v3035 = vpop.f32.mrb[0].mxu0
  %3036 = vmatprep.mubr.f32.mxu0 0.0
  %3037 = vmatmul.mubr.f32.gmra.mrb[0].mxu0 %v2240
  %v3038 = vpop.f32.mrb[0].mxu0
  %v3039 = vadd.f32 %v1988, %v3038
  %v3040 = vpop.f32.mrb[0].mxu0
  %3041 = vmatprep.mubr.f32.mxu0 0.0
  %3042 = vmatmul.mubr.f32.gmra.mrb[0].mxu0 %v2243
  %v3043 = vpop.f32.mrb[0].mxu0
  %v3044 = vadd.f32 %v1988, %v3043
  %v3045 = vpop.f32.mrb[0].mxu0
  %3046 = vmatprep.mubr.f32.mxu0 0.0
  %3047 = vmatmul.mubr.f32.gmra.mrb[0].mxu0 %v2246
  %v3048 = vpop.f32.mrb[0].mxu0
  %v3049 = vadd.f32 %v1988, %v3048
  %v3050 = vpop.f32.mrb[0].mxu0
  %3051 = vmatprep.mubr.f32.mxu0 0.0
  %3052 = vmatmul.mubr.f32.gmra.mrb[0].mxu0 %v2249
  %v3053 = vpop.f32.mrb[0].mxu0
  %v3054 = vadd.f32 %v1988, %v3053
  %v3055 = vpop.f32.mrb[0].mxu0
  %3056 = vmatprep.mubr.f32.mxu0 0.0
  %3057 = vmatmul.mubr.f32.gmra.mrb[0].mxu0 %v2252
  %v3058 = vpop.f32.mrb[0].mxu0
  %v3059 = vadd.f32 %v1988, %v3058
  %v3060 = vpop.f32.mrb[0].mxu0
  %3061 = vmatprep.mubr.f32.mxu0 0.0
  %3062 = vmatmul.mubr.f32.gmra.mrb[0].mxu0 %v2255
  %v3063 = vpop.f32.mrb[0].mxu0
  %v3064 = vadd.f32 %v1988, %v3063
  %v3065 = vpop.f32.mrb[0].mxu0
  %3066 = vmatprep.mubr.f32.mxu0 0.0
  %3067 = vmatmul.mubr.f32.gmra.mrb[0].mxu0 %v2258
  %v3068 = vpop.f32.mrb[0].mxu0
  %v3069 = vadd.f32 %v1988, %v3068
  %v3070 = vpop.f32.mrb[0].mxu0
  %3071 = vmatprep.mubr.f32.mxu0 0.0
  %3072 = vmatmul.mubr.f32.gmra.mrb[0].mxu0 %v2261
  %v3073 = vpop.f32.mrb[0].mxu0
  %v3074 = vadd.f32 %v1988, %v3073
  %v3075 = vpop.f32.mrb[0].mxu0
  %3076 = vmatprep.mubr.f32.mxu0 0.0
  %3077 = vmatmul.mubr.f32.gmra.mrb[0].mxu0 %v2264
  %v3078 = vpop.f32.mrb[0].mxu0
  %v3079 = vadd.f32 %v1988, %v3078
  %v3080 = vpop.f32.mrb[0].mxu0
  %3081 = vmatprep.mubr.f32.mxu0 0.0
  %3082 = vmatmul.mubr.f32.gmra.mrb[0].mxu0 %v2267
  %v3083 = vpop.f32.mrb[0].mxu0
  %v3084 = vadd.f32 %v1988, %v3083
  %v3085 = vpop.f32.mrb[0].mxu0
  %3086 = vmatprep.mubr.f32.mxu0 0.0
  %3087 = vmatmul.mubr.f32.gmra.mrb[0].mxu0 %v2270
  %v3088 = vpop.f32.mrb[0].mxu0
  %v3089 = vadd.f32 %v1988, %v3088
  %v3090 = vpop.f32.mrb[0].mxu0
  %3091 = vmatprep.mubr.f32.mxu0 0.0
  %3092 = vmatmul.mubr.f32.gmra.mrb[0].mxu0 %v2273
  %v3093 = vpop.f32.mrb[0].mxu0
  %v3094 = vadd.f32 %v1988, %v3093
  %v3095 = vpop.f32.mrb[0].mxu0
  %3096 = vmatprep.mubr.f32.mxu0 0.0
  %3097 = vmatmul.mubr.f32.gmra.mrb[0].mxu0 %v2276
  %v3098 = vpop.f32.mrb[0].mxu0
  %v3099 = vadd.f32 %v1988, %v3098
  %v3100 = vpop.f32.mrb[0].mxu0
  %3101 = vmatprep.mubr.f32.mxu0 0.0
  %3102 = vmatmul.mubr.f32.gmra.mrb[0].mxu0 %v2279
  %v3103 = vpop.f32.mrb[0].mxu0
  %v3104 = vadd.f32 %v1988, %v3103
  %v3105 = vpop.f32.mrb[0].mxu0
  %3106 = vmatprep.mubr.f32.mxu0 0.0
  %3107 = vmatmul.mubr.f32.gmra.mrb[0].mxu0 %v2282
  %v3108 = vpop.f32.mrb[0].mxu0
  %v3109 = vadd.f32 %v1988, %v3108
  %v3110 = vpop.f32.mrb[0].mxu0
  %3111 = vmatprep.mubr.f32.mxu0 0.0
  %3112 = vmatmul.mubr.f32.gmra.mrb[0].mxu0 %v2285
  %v3113 = vpop.f32.mrb[0].mxu0
  %v3114 = vadd.f32 %v1988, %v3113
  %v3115 = vpop.f32.mrb[0].mxu0
  %3116 = vmatprep.mubr.f32.mxu0 0.0
  %3117 = vmatmul.mubr.f32.gmra.mrb[0].mxu0 %v2288
  %v3118 = vpop.f32.mrb[0].mxu0
  %v3119 = vadd.f32 %v1988, %v3118
  %v3120 = vpop.f32.mrb[0].mxu0
  %3121 = vmatprep.mubr.f32.mxu0 0.0
  %3122 = vmatmul.mubr.f32.gmra.mrb[0].mxu0 %v2291
  %v3123 = vpop.f32.mrb[0].mxu0
  %v3124 = vadd.f32 %v1988, %v3123
  %v3125 = vpop.f32.mrb[0].mxu0
  %3126 = vmatprep.mubr.f32.mxu0 0.0
  %3127 = vmatmul.mubr.f32.gmra.mrb[0].mxu0 %v2294
  %v3128 = vpop.f32.mrb[0].mxu0
  %v3129 = vadd.f32 %v1988, %v3128
  %v3130 = vpop.f32.mrb[0].mxu0
  %3131 = vmatprep.mubr.f32.mxu0 0.0
  %3132 = vmatmul.mubr.f32.gmra.mrb[0].mxu0 %v2297
  %v3133 = vpop.f32.mrb[0].mxu0
  %v3134 = vadd.f32 %v1988, %v3133
  %v3135 = vpop.f32.mrb[0].mxu0
  %3136 = vmatprep.mubr.f32.mxu0 0.0
  %3137 = vmatmul.mubr.f32.gmra.mrb[0].mxu0 %v2300
  %v3138 = vpop.f32.mrb[0].mxu0
  %v3139 = vadd.f32 %v1988, %v3138
  %v3140 = vpop.f32.mrb[0].mxu0
  %3141 = vmatprep.mubr.f32.mxu0 0.0
  %3142 = vmatmul.mubr.f32.gmra.mrb[0].mxu0 %v2303
  %v3143 = vpop.f32.mrb[0].mxu0
  %v3144 = vadd.f32 %v1988, %v3143
  %v3145 = vpop.f32.mrb[0].mxu0
  %3146 = vmatprep.mubr.f32.mxu0 0.0
  %3147 = vmatmul.mubr.f32.gmra.mrb[0].mxu0 %v2306
  %v3148 = vpop.f32.mrb[0].mxu0
  %v3149 = vadd.f32 %v1988, %v3148
  %v3150 = vpop.f32.mrb[0].mxu0
  %3151 = vmatprep.mubr.f32.mxu0 0.0
  %3152 = vmatmul.mubr.f32.gmra.mrb[0].mxu0 %v2309
  %v3153 = vpop.f32.mrb[0].mxu0
  %v3154 = vadd.f32 %v1988, %v3153
  %v3155 = vpop.f32.mrb[0].mxu0
  %3156 = vmatprep.mubr.f32.mxu0 0.0
  %3157 = vmatmul.mubr.f32.gmra.mrb[0].mxu0 %v2312
  %v3158 = vpop.f32.mrb[0].mxu0
  %v3159 = vadd.f32 %v1988, %v3158
  %v3160 = vpop.f32.mrb[0].mxu0
  %3161 = vmatprep.mubr.f32.mxu0 0.0
  %3162 = vmatmul.mubr.f32.gmra.mrb[0].mxu0 %v2315
  %v3163 = vpop.f32.mrb[0].mxu0
  %v3164 = vadd.f32 %v1988, %v3163
  %v3165 = vpop.f32.mrb[0].mxu0
  %3166 = vmatprep.mubr.f32.mxu0 0.0
  %3167 = vmatmul.mubr.f32.gmra.mrb[0].mxu0 %v2318
  %v3168 = vpop.f32.mrb[0].mxu0
  %v3169 = vadd.f32 %v1988, %v3168
  %v3170 = vpop.f32.mrb[0].mxu0
  %3171 = vmatprep.mubr.f32.mxu0 0.0
  %3172 = vmatmul.mubr.f32.gmra.mrb[0].mxu0 %v2321
  %v3173 = vpop.f32.mrb[0].mxu0
  %v3174 = vadd.f32 %v1988, %v3173
  %v3175 = vpop.f32.mrb[0].mxu0
  %3176 = vmatprep.mubr.f32.mxu0 0.0
  %3177 = vmatmul.mubr.f32.gmra.mrb[0].mxu0 %v2324
  %v3178 = vpop.f32.mrb[0].mxu0
  %v3179 = vadd.f32 %v1988, %v3178
  %v3180 = vpop.f32.mrb[0].mxu0
  %3181 = vmatprep.mubr.f32.mxu0 0.0
  %3182 = vmatmul.mubr.f32.gmra.mrb[0].mxu0 %v2327
  %v3183 = vpop.f32.mrb[0].mxu0
  %v3184 = vadd.f32 %v1988, %v3183
  %v3185 = vpop.f32.mrb[0].mxu0
  %3186 = vmatprep.mubr.f32.mxu0 0.0
  %3187 = vmatmul.mubr.f32.gmra.mrb[0].mxu0 %v2330
  %v3188 = vpop.f32.mrb[0].mxu0
  %v3189 = vadd.f32 %v1988, %v3188
  %v3190 = vpop.f32.mrb[0].mxu0
  %3191 = vmatprep.mubr.f32.mxu0 0.0
  %3192 = vmatmul.mubr.f32.gmra.mrb[0].mxu0 %v2333
  %v3193 = vpop.f32.mrb[0].mxu0
  %v3194 = vadd.f32 %v1988, %v3193
  %v3195 = vpop.f32.mrb[0].mxu0
  %3196 = vmatprep.mubr.f32.mxu0 0.0
  %3197 = vmatmul.mubr.f32.gmra.mrb[0].mxu0 %v2336
  %v3198 = vpop.f32.mrb[0].mxu0
  %v3199 = vadd.f32 %v1988, %v3198
  %v3200 = vpop.f32.mrb[0].mxu0
  %3201 = vmatprep.mubr.f32.mxu0 0.0
  %3202 = vmatmul.mubr.f32.gmra.mrb[0].mxu0 %v2339
  %v3203 = vpop.f32.mrb[0].mxu0
  %v3204 = vadd.f32 %v1988, %v3203
  %v3205 = vpop.f32.mrb[0].mxu0
  %3206 = vmatprep.mubr.f32.mxu0 0.0
  %3207 = vmatmul.mubr.f32.gmra.mrb[0].mxu0 %v2342
  %v3208 = vpop.f32.mrb[0].mxu0
  %v3209 = vadd.f32 %v1988, %v3208
  %v3210 = vpop.f32.mrb[0].mxu0
  %3211 = vmatprep.mubr.f32.mxu0 0.0
  %3212 = vmatmul.mubr.f32.gmra.mrb[0].mxu0 %v2345
  %v3213 = vpop.f32.mrb[0].mxu0
  %v3214 = vadd.f32 %v1988, %v3213
  %v3215 = vpop.f32.mrb[0].mxu0
  %3216 = vmatprep.mubr.f32.mxu0 0.0
  %3217 = vmatmul.mubr.f32.gmra.mrb[0].mxu0 %v2348
  %v3218 = vpop.f32.mrb[0].mxu0
  %v3219 = vadd.f32 %v1988, %v3218
  %v3220 = vpop.f32.mrb[0].mxu0
  %3221 = vmatprep.mubr.f32.mxu0 0.0
  %3222 = vmatmul.mubr.f32.gmra.mrb[0].mxu0 %v2351
  %v3223 = vpop.f32.mrb[0].mxu0
  %v3224 = vadd.f32 %v1988, %v3223
  %v3225 = vpop.f32.mrb[0].mxu0
  %3226 = vmatprep.mubr.f32.mxu0 0.0
  %3227 = vmatmul.mubr.f32.gmra.mrb[0].mxu0 %v2354
  %v3228 = vpop.f32.mrb[0].mxu0
  %v3229 = vadd.f32 %v1988, %v3228
  %v3230 = vpop.f32.mrb[0].mxu0
  %3231 = vmatprep.mubr.f32.mxu0 0.0
  %3232 = vmatmul.mubr.f32.gmra.mrb[0].mxu0 %v2357
  %v3233 = vpop.f32.mrb[0].mxu0
  %v3234 = vadd.f32 %v1988, %v3233
  %v3235 = vpop.f32.mrb[0].mxu0
  %3236 = vmatprep.mubr.f32.mxu0 0.0
  %3237 = vmatmul.mubr.f32.gmra.mrb[0].mxu0 %v2360
  %v3238 = vpop.f32.mrb[0].mxu0
  %v3239 = vadd.f32 %v1988, %v3238
  %v3240 = vpop.f32.mrb[0].mxu0
  %3241 = vmatprep.mubr.f32.mxu0 0.0
  %3242 = vmatmul.mubr.f32.gmra.mrb[0].mxu0 %v2363
  %v3243 = vpop.f32.mrb[0].mxu0
  %v3244 = vadd.f32 %v1988, %v3243
  %v3245 = vpop.f32.mrb[0].mxu0
  %3246 = vmatprep.mubr.f32.mxu0 0.0
  %3247 = vmatmul.mubr.f32.gmra.mrb[0].mxu0 %v2366
  %v3248 = vpop.f32.mrb[0].mxu0
  %v3249 = vadd.f32 %v1988, %v3248
  %v3250 = vpop.f32.mrb[0].mxu0
  %3251 = vmatprep.mubr.f32.mxu0 0.0
  %3252 = vmatmul.mubr.f32.gmra.mrb[0].mxu0 %v2369
  %v3253 = vpop.f32.mrb[0].mxu0
  %v3254 = vadd.f32 %v1988, %v3253
  %v3255 = vpop.f32.mrb[0].mxu0
  %3256 = vmatprep.mubr.f32.mxu0 0.0
  %3257 = vmatmul.mubr.f32.gmra.mrb[0].mxu0 %v2372
  %v3258 = vpop.f32.mrb[0].mxu0
  %v3259 = vadd.f32 %v1988, %v3258
  %v3260 = vpop.f32.mrb[0].mxu0
  %3261 = vmatprep.mubr.f32.mxu0 0.0
  %3262 = vmatmul.mubr.f32.gmra.mrb[0].mxu0 %v2375
  %v3263 = vpop.f32.mrb[0].mxu0
  %v3264 = vadd.f32 %v1988, %v3263
  %v3265 = vpop.f32.mrb[0].mxu0
  %3266 = vmatprep.mubr.f32.mxu0 0.0
  %3267 = vmatmul.mubr.f32.gmra.mrb[0].mxu0 %v2378
  %v3268 = vpop.f32.mrb[0].mxu0
  %v3269 = vadd.f32 %v1988, %v3268
  %v3270 = vpop.f32.mrb[0].mxu0
  %3271 = vmatprep.mubr.f32.mxu0 0.0
  %3272 = vmatmul.mubr.f32.gmra.mrb[0].mxu0 %v2381
  %v3273 = vpop.f32.mrb[0].mxu0
  %v3274 = vadd.f32 %v1988, %v3273
  %v3275 = vpop.f32.mrb[0].mxu0
  %3276 = vmatprep.mubr.f32.mxu0 0.0
  %3277 = vmatmul.mubr.f32.gmra.mrb[0].mxu0 %v2384
  %v3278 = vpop.f32.mrb[0].mxu0
  %v3279 = vadd.f32 %v1988, %v3278
  %v3280 = vpop.f32.mrb[0].mxu0
  %3281 = vmatprep.mubr.f32.mxu0 0.0
  %3282 = vmatmul.mubr.f32.gmra.mrb[0].mxu0 %v2387
  %v3283 = vpop.f32.mrb[0].mxu0
  %v3284 = vadd.f32 %v1988, %v3283
  %v3285 = vpop.f32.mrb[0].mxu0
  %3286 = vmatprep.mubr.f32.mxu0 0.0
  %3287 = vmatmul.mubr.f32.gmra.mrb[0].mxu0 %v2390
  %v3288 = vpop.f32.mrb[0].mxu0
  %v3289 = vadd.f32 %v1988, %v3288
  %v3290 = vpop.f32.mrb[0].mxu0
  %3291 = vmatprep.mubr.f32.mxu0 0.0
  %3292 = vmatmul.mubr.f32.gmra.mrb[0].mxu0 %v2393
  %v3293 = vpop.f32.mrb[0].mxu0
  %v3294 = vadd.f32 %v1988, %v3293
  %v3295 = vpop.f32.mrb[0].mxu0
  %3296 = vmatprep.mubr.f32.mxu0 0.0
  %3297 = vmatmul.mubr.f32.gmra.mrb[0].mxu0 %v2396
  %v3298 = vpop.f32.mrb[0].mxu0
  %v3299 = vadd.f32 %v1988, %v3298
  %v3300 = vpop.f32.mrb[0].mxu0
  %3301 = vmatprep.mubr.f32.mxu0 0.0
  %3302 = vmatmul.mubr.f32.gmra.mrb[0].mxu0 %v2399
  %v3303 = vpop.f32.mrb[0].mxu0
  %v3304 = vadd.f32 %v1988, %v3303
  %v3305 = vpop.f32.mrb[0].mxu0
  %3306 = vmatprep.mubr.f32.mxu0 0.0
  %3307 = vmatmul.mubr.f32.gmra.mrb[0].mxu0 %v2402
  %v3308 = vpop.f32.mrb[0].mxu0
  %v3309 = vadd.f32 %v1988, %v3308
  %v3310 = vpop.f32.mrb[0].mxu0
  %3311 = vmatprep.mubr.f32.mxu0 0.0
  %3312 = vmatmul.mubr.f32.gmra.mrb[0].mxu0 %v2405
  %v3313 = vpop.f32.mrb[0].mxu0
  %v3314 = vadd.f32 %v1988, %v3313
  %v3315 = vpop.f32.mrb[0].mxu0
  %3316 = vmatprep.mubr.f32.mxu0 0.0
  %3317 = vmatmul.mubr.f32.gmra.mrb[0].mxu0 %v2408
  %v3318 = vpop.f32.mrb[0].mxu0
  %v3319 = vadd.f32 %v1988, %v3318
  %v3320 = vpop.f32.mrb[0].mxu0
  %3321 = vmatprep.mubr.f32.mxu0 0.0
  %3322 = vmatmul.mubr.f32.gmra.mrb[0].mxu0 %v2411
  %v3323 = vpop.f32.mrb[0].mxu0
  %v3324 = vadd.f32 %v1988, %v3323
  %v3325 = vpop.f32.mrb[0].mxu0
  %3326 = vmatprep.mubr.f32.mxu0 0.0
  %3327 = vmatmul.mubr.f32.gmra.mrb[0].mxu0 %v2414
  %v3328 = vpop.f32.mrb[0].mxu0
  %v3329 = vadd.f32 %v1988, %v3328
  %v3330 = vpop.f32.mrb[0].mxu0
  %3331 = vmatprep.mubr.f32.mxu0 0.0
  %3332 = vmatmul.mubr.f32.gmra.mrb[0].mxu0 %v2417
  %v3333 = vpop.f32.mrb[0].mxu0
  %v3334 = vadd.f32 %v1988, %v3333
  %v3335 = vpop.f32.mrb[0].mxu0
  %3336 = vmatprep.mubr.f32.mxu0 0.0
  %3337 = vmatmul.mubr.f32.gmra.mrb[0].mxu0 %v2420
  %v3338 = vpop.f32.mrb[0].mxu0
  %v3339 = vadd.f32 %v1988, %v3338
  %v3340 = vpop.f32.mrb[0].mxu0
  %3341 = vmatprep.mubr.f32.mxu0 0.0
  %3342 = vmatmul.mubr.f32.gmra.mrb[0].mxu0 %v2423
  %v3343 = vpop.f32.mrb[0].mxu0
  %v3344 = vadd.f32 %v1988, %v3343
  %v3345 = vpop.f32.mrb[0].mxu0
  %3346 = vmatprep.mubr.f32.mxu0 0.0
  %3347 = vmatmul.mubr.f32.gmra.mrb[0].mxu0 %v2426
  %v3348 = vpop.f32.mrb[0].mxu0
  %v3349 = vadd.f32 %v1988, %v3348
  %v3350 = vpop.f32.mrb[0].mxu0
  %3351 = vmatprep.mubr.f32.mxu0 0.0
  %3352 = vmatmul.mubr.f32.gmra.mrb[0].mxu0 %v2429
  %v3353 = vpop.f32.mrb[0].mxu0
  %v3354 = vadd.f32 %v1988, %v3353
  %v3355 = vpop.f32.mrb[0].mxu0
  %3356 = vmatprep.mubr.f32.mxu0 0.0
  %3357 = vmatmul.mubr.f32.gmra.mrb[0].mxu0 %v2432
  %v3358 = vpop.f32.mrb[0].mxu0
  %v3359 = vadd.f32 %v1988, %v3358
  %v3360 = vpop.f32.mrb[0].mxu0
  %3361 = vmatprep.mubr.f32.mxu0 0.0
  %3362 = vmatmul.mubr.f32.gmra.mrb[0].mxu0 %v2435
  %v3363 = vpop.f32.mrb[0].mxu0
  %v3364 = vadd.f32 %v1988, %v3363
  %v3365 = vpop.f32.mrb[0].mxu0
  %3366 = vmatprep.mubr.f32.mxu0 0.0
  %3367 = vmatmul.mubr.f32.gmra.mrb[0].mxu0 %v2438
  %v3368 = vpop.f32.mrb[0].mxu0
  %v3369 = vadd.f32 %v1988, %v3368
  %v3370 = vpop.f32.mrb[0].mxu0
  %3371 = vmatprep.mubr.f32.mxu0 0.0
  %3372 = vmatmul.mubr.f32.gmra.mrb[0].mxu0 %v2441
  %v3373 = vpop.f32.mrb[0].mxu0
  %v3374 = vadd.f32 %v1988, %v3373
  %v3375 = vpop.f32.mrb[0].mxu0
  %3376 = vmatprep.mubr.f32.mxu0 0.0
  %3377 = vmatmul.mubr.f32.gmra.mrb[0].mxu0 %v2444
  %v3378 = vpop.f32.mrb[0].mxu0
  %v3379 = vadd.f32 %v1988, %v3378
  %v3380 = vpop.f32.mrb[0].mxu0
  %3381 = vmatprep.mubr.f32.mxu0 0.0
  %3382 = vmatmul.mubr.f32.gmra.mrb[0].mxu0 %v2447
  %v3383 = vpop.f32.mrb[0].mxu0
  %v3384 = vadd.f32 %v1988, %v3383
  %v3385 = vpop.f32.mrb[0].mxu0
  %3386 = vmatprep.mubr.f32.mxu0 0.0
  %3387 = vmatmul.mubr.f32.gmra.mrb[0].mxu0 %v2450
  %v3388 = vpop.f32.mrb[0].mxu0
  %v3389 = vadd.f32 %v1988, %v3388
  %v3390 = vpop.f32.mrb[0].mxu0
  %3391 = vmatprep.mubr.f32.mxu0 0.0
  %3392 = vmatmul.mubr.f32.gmra.mrb[0].mxu0 %v2453
  %v3393 = vpop.f32.mrb[0].mxu0
  %v3394 = vadd.f32 %v1988, %v3393
  %v3395 = vpop.f32.mrb[0].mxu0
  %3396 = vmatprep.mubr.f32.mxu0 0.0
  %3397 = vmatmul.mubr.f32.gmra.mrb[0].mxu0 %v2456
  %v3398 = vpop.f32.mrb[0].mxu0
  %v3399 = vadd.f32 %v1988, %v3398
  %v3400 = vpop.f32.mrb[0].mxu0
  %3401 = vmatprep.mubr.f32.mxu0 0.0
  %3402 = vmatmul.mubr.f32.gmra.mrb[0].mxu0 %v2459
  %v3403 = vpop.f32.mrb[0].mxu0
  %v3404 = vadd.f32 %v1988, %v3403
  %v3405 = vpop.f32.mrb[0].mxu0
  %3406 = vmatprep.mubr.f32.mxu0 0.0
  %3407 = vmatmul.mubr.f32.gmra.mrb[0].mxu0 %v2462
  %v3408 = vpop.f32.mrb[0].mxu0
  %v3409 = vadd.f32 %v1988, %v3408
  %v3410 = vpop.f32.mrb[0].mxu0
  %3411 = vmatprep.mubr.f32.mxu0 0.0
  %3412 = vmatmul.mubr.f32.gmra.mrb[0].mxu0 %v2465
  %v3413 = vpop.f32.mrb[0].mxu0
  %v3414 = vadd.f32 %v1988, %v3413
  %v3415 = vpop.f32.mrb[0].mxu0
  %3416 = vmatprep.mubr.f32.mxu0 0.0
  %3417 = vmatmul.mubr.f32.gmra.mrb[0].mxu0 %v2468
  %v3418 = vpop.f32.mrb[0].mxu0
  %v3419 = vadd.f32 %v1988, %v3418
  %v3420 = vpop.f32.mrb[0].mxu0
  %3421 = vmatprep.mubr.f32.mxu0 0.0
  %3422 = vmatmul.mubr.f32.gmra.mrb[0].mxu0 %v2471
  %v3423 = vpop.f32.mrb[0].mxu0
  %v3424 = vadd.f32 %v1988, %v3423
  %v3425 = vpop.f32.mrb[0].mxu0
  %3426 = vmatprep.mubr.f32.mxu0 0.0
  %3427 = vmatmul.mubr.f32.gmra.mrb[0].mxu0 %v2474
  %v3428 = vpop.f32.mrb[0].mxu0
  %v3429 = vadd.f32 %v1988, %v3428
  %v3430 = vpop.f32.mrb[0].mxu0
  %3431 = vmatprep.mubr.f32.mxu0 0.0
  %3432 = vmatmul.mubr.f32.gmra.mrb[0].mxu0 %v2477
  %v3433 = vpop.f32.mrb[0].mxu0
  %v3434 = vadd.f32 %v1988, %v3433
  %v3435 = vpop.f32.mrb[0].mxu0
  %3436 = vmatprep.mubr.f32.mxu0 0.0
  %3437 = vmatmul.mubr.f32.gmra.mrb[0].mxu0 %v2480
  %v3438 = vpop.f32.mrb[0].mxu0
  %v3439 = vadd.f32 %v1988, %v3438
  %v3440 = vpop.f32.mrb[0].mxu0
  %3441 = vmatprep.mubr.f32.mxu0 0.0
  %3442 = vmatmul.mubr.f32.gmra.mrb[0].mxu0 %v2483
  %v3443 = vpop.f32.mrb[0].mxu0
  %v3444 = vadd.f32 %v1988, %v3443
  %v3445 = vpop.f32.mrb[0].mxu0
  %3446 = vmatprep.mubr.f32.mxu0 0.0
  %3447 = vmatmul.mubr.f32.gmra.mrb[0].mxu0 %v2486
  %v3448 = vpop.f32.mrb[0].mxu0
  %v3449 = vadd.f32 %v1988, %v3448
  %v3450 = vpop.f32.mrb[0].mxu0
  %3451 = vmatprep.mubr.f32.mxu0 0.0
  %3452 = vmatmul.mubr.f32.gmra.mrb[0].mxu0 %v2489
  %v3453 = vpop.f32.mrb[0].mxu0
  %v3454 = vadd.f32 %v1988, %v3453
  %v3455 = vpop.f32.mrb[0].mxu0
  %3456 = vmatprep.mubr.f32.mxu0 0.0
  %3457 = vmatmul.mubr.f32.gmra.mrb[0].mxu0 %v2492
  %v3458 = vpop.f32.mrb[0].mxu0
  %v3459 = vadd.f32 %v1988, %v3458
  %v3460 = vpop.f32.mrb[0].mxu0
  %3461 = vmatprep.mubr.f32.mxu0 0.0
  %3462 = vmatmul.mubr.f32.gmra.mrb[0].mxu0 %v2495
  %v3463 = vpop.f32.mrb[0].mxu0
  %v3464 = vadd.f32 %v1988, %v3463
  %v3465 = vpop.f32.mrb[0].mxu0
  %3466 = vmatprep.mubr.f32.mxu0 0.0
  %3467 = vmatmul.mubr.f32.gmra.mrb[0].mxu0 %v2498
  %v3468 = vpop.f32.mrb[0].mxu0
  %v3469 = vadd.f32 %v1988, %v3468
  %v3470 = vpop.f32.mrb[0].mxu0
  %3471 = vmatprep.mubr.f32.mxu0 0.0
  %3472 = vmatmul.mubr.f32.gmra.mrb[0].mxu0 %v2501
  %v3473 = vpop.f32.mrb[0].mxu0
  %v3474 = vadd.f32 %v1988, %v3473
  %v3475 = vpop.f32.mrb[0].mxu0
  %3476 = vmatprep.mubr.f32.mxu0 0.0
  %3477 = vmatmul.mubr.f32.gmra.mrb[0].mxu0 %v2504
  %v3478 = vpop.f32.mrb[0].mxu0
  %v3479 = vadd.f32 %v1988, %v3478
  %v3480 = vpop.f32.mrb[0].mxu0
  %3481 = vmatprep.mubr.f32.mxu0 0.0
  %3482 = vmatmul.mubr.f32.gmra.mrb[0].mxu0 %v2507
  %v3483 = vpop.f32.mrb[0].mxu0
  %v3484 = vadd.f32 %v1988, %v3483
  %v3485 = vpop.f32.mrb[0].mxu0
  %3486 = vmatprep.mubr.f32.mxu0 0.0
  %3487 = vmatmul.mubr.f32.gmra.mrb[0].mxu0 %v2510
  %v3488 = vpop.f32.mrb[0].mxu0
  %v3489 = vadd.f32 %v1988, %v3488
  %v3490 = vpop.f32.mrb[0].mxu0
  %3491 = vmatprep.mubr.f32.mxu0 0.0
  %3492 = vmatmul.mubr.f32.gmra.mrb[0].mxu0 %v2513
  %v3493 = vpop.f32.mrb[0].mxu0
  %v3494 = vadd.f32 %v1988, %v3493
  %v3495 = vpop.f32.mrb[0].mxu0
  %3496 = vmatprep.mubr.f32.mxu0 0.0
  %3497 = vmatmul.mubr.f32.gmra.mrb[0].mxu0 %v2516
  %v3498 = vpop.f32.mrb[0].mxu0
  %v3499 = vadd.f32 %v1988, %v3498
  %v3500 = vpop.f32.mrb[0].mxu0
  %3501 = vmatprep.mubr.f32.mxu0 0.0
  %3502 = vmatmul.mubr.f32.gmra.mrb[0].mxu0 %v2519
  %v3503 = vpop.f32.mrb[0].mxu0
  %v3504 = vadd.f32 %v1988, %v3503
  %v3505 = vpop.f32.mrb[0].mxu0
  %3506 = vmatprep.mubr.f32.mxu0 0.0
  %3507 = vmatmul.mubr.f32.gmra.mrb[0].mxu0 %v2522
  %v3508 = vpop.f32.mrb[0].mxu0
  %v3509 = vadd.f32 %v1988, %v3508
  %v3510 = vpop.f32.mrb[0].mxu0
  %3511 = vmatprep.mubr.f32.mxu0 0.0
  %3512 = vmatmul.mubr.f32.gmra.mrb[0].mxu0 %v2525
  %v3513 = vpop.f32.mrb[0].mxu0
  %v3514 = vadd.f32 %v1988, %v3513
  %v3515 = vpop.f32.mrb[0].mxu0
  %3516 = vmatprep.mubr.f32.mxu0 0.0
  %3517 = vmatmul.mubr.f32.gmra.mrb[0].mxu0 %v2528
  %v3518 = vpop.f32.mrb[0].mxu0
  %v3519 = vadd.f32 %v1988, %v3518
  %v3520 = vpop.f32.mrb[0].mxu0
  %3521 = vmatprep.mubr.f32.mxu0 0.0
  %3522 = vmatmul.mubr.f32.gmra.mrb[0].mxu0 %v2531
  %v3523 = vpop.f32.mrb[0].mxu0
  %v3524 = vadd.f32 %v1988, %v3523
  %v3525 = vpop.f32.mrb[0].mxu0
  %3526 = vmatprep.mubr.f32.mxu0 0.0
  %3527 = vmatmul.mubr.f32.gmra.mrb[0].mxu0 %v2534
  %v3528 = vpop.f32.mrb[0].mxu0
  %v3529 = vadd.f32 %v1988, %v3528
  %v3530 = vpop.f32.mrb[0].mxu0
  %3531 = vmatprep.mubr.f32.mxu0 0.0
  %3532 = vmatmul.mubr.f32.gmra.mrb[0].mxu0 %v2537
  %v3533 = vpop.f32.mrb[0].mxu0
  %v3534 = vadd.f32 %v1988, %v3533
  %v3535 = vpop.f32.mrb[0].mxu0
  %3536 = vmatprep.mubr.f32.mxu0 0.0
  %3537 = vmatmul.mubr.f32.gmra.mrb[0].mxu0 %v2540
  %v3538 = vpop.f32.mrb[0].mxu0
  %v3539 = vadd.f32 %v1988, %v3538
  %v3540 = vpop.f32.mrb[0].mxu0
  %3541 = vmatprep.mubr.f32.mxu0 0.0
  %3542 = vmatmul.mubr.f32.gmra.mrb[0].mxu0 %v2543
  %v3543 = vpop.f32.mrb[0].mxu0
  %v3544 = vadd.f32 %v1988, %v3543
  %v3545 = vpop.f32.mrb[0].mxu0
  %3546 = vmatprep.mubr.f32.mxu0 0.0
  %3547 = vmatmul.mubr.f32.gmra.mrb[0].mxu0 %v2546
  %v3548 = vpop.f32.mrb[0].mxu0
  %v3549 = vadd.f32 %v1988, %v3548
  %v3550 = vpop.f32.mrb[0].mxu0
  %3551 = vmatprep.mubr.f32.mxu0 0.0
  %3552 = vmatmul.mubr.f32.gmra.mrb[0].mxu0 %v2549
  %v3553 = vpop.f32.mrb[0].mxu0
  %v3554 = vadd.f32 %v1988, %v3553
  %v3555 = vpop.f32.mrb[0].mxu0
  %3556 = vmatprep.mubr.f32.mxu0 0.0
  %3557 = vmatmul.mubr.f32.gmra.mrb[0].mxu0 %v2552
  %v3558 = vpop.f32.mrb[0].mxu0
  %v3559 = vadd.f32 %v1988, %v3558
  %v3560 = vpop.f32.mrb[0].mxu0
  %3561 = vdwg.mxu0
  %v3562 = vmax.f32 %v2624, 0.0
  %v3563 = vmax.f32 %v2629, 0.0
  %v3564 = vmax.f32 %v2634, 0.0
  %v3565 = vmax.f32 %v2639, 0.0
  %v3566 = vmax.f32 %v2644, 0.0
  %v3567 = vmax.f32 %v2649, 0.0
  %v3568 = vmax.f32 %v2654, 0.0
  %v3569 = vmax.f32 %v2659, 0.0
  %v3570 = vmax.f32 %v2664, 0.0
  %v3571 = vmax.f32 %v2669, 0.0
  %v3572 = vmax.f32 %v2674, 0.0
  %v3573 = vmax.f32 %v2679, 0.0
  %v3574 = vmax.f32 %v2684, 0.0
  %v3575 = vmax.f32 %v2689, 0.0
  %v3576 = vmax.f32 %v2694, 0.0
  %v3577 = vmax.f32 %v2699, 0.0
  %v3578 = vmax.f32 %v2704, 0.0
  %v3579 = vmax.f32 %v2709, 0.0
  %v3580 = vmax.f32 %v2714, 0.0
  %v3581 = vmax.f32 %v2719, 0.0
  %v3582 = vmax.f32 %v2724, 0.0
  %v3583 = vmax.f32 %v2729, 0.0
  %v3584 = vmax.f32 %v2734, 0.0
  %v3585 = vmax.f32 %v2739, 0.0
  %v3586 = vmax.f32 %v2744, 0.0
  %v3587 = vmax.f32 %v2749, 0.0
  %v3588 = vmax.f32 %v2754, 0.0
  %v3589 = vmax.f32 %v2759, 0.0
  %v3590 = vmax.f32 %v2764, 0.0
  %v3591 = vmax.f32 %v2769, 0.0
  %v3592 = vmax.f32 %v2774, 0.0
  %v3593 = vmax.f32 %v2779, 0.0
  %v3594 = vmax.f32 %v2784, 0.0
  %v3595 = vmax.f32 %v2789, 0.0
  %v3596 = vmax.f32 %v2794, 0.0
  %v3597 = vmax.f32 %v2799, 0.0
  %v3598 = vmax.f32 %v2804, 0.0
  %v3599 = vmax.f32 %v2809, 0.0
  %v3600 = vmax.f32 %v2814, 0.0
  %v3601 = vmax.f32 %v2819, 0.0
  %v3602 = vmax.f32 %v2824, 0.0
  %v3603 = vmax.f32 %v2829, 0.0
  %v3604 = vmax.f32 %v2834, 0.0
  %v3605 = vmax.f32 %v2839, 0.0
  %v3606 = vmax.f32 %v2844, 0.0
  %v3607 = vmax.f32 %v2849, 0.0
  %v3608 = vmax.f32 %v2854, 0.0
  %v3609 = vmax.f32 %v2859, 0.0
  %v3610 = vmax.f32 %v2864, 0.0
  %v3611 = vmax.f32 %v2869, 0.0
  %v3612 = vmax.f32 %v2874, 0.0
  %v3613 = vmax.f32 %v2879, 0.0
  %v3614 = vmax.f32 %v2884, 0.0
  %v3615 = vmax.f32 %v2889, 0.0
  %v3616 = vmax.f32 %v2894, 0.0
  %v3617 = vmax.f32 %v2899, 0.0
  %v3618 = vmax.f32 %v2904, 0.0
  %v3619 = vmax.f32 %v2909, 0.0
  %v3620 = vmax.f32 %v2914, 0.0
  %v3621 = vmax.f32 %v2919, 0.0
  %v3622 = vmax.f32 %v2924, 0.0
  %v3623 = vmax.f32 %v2929, 0.0
  %v3624 = vmax.f32 %v2934, 0.0
  %v3625 = vmax.f32 %v2939, 0.0
  %v3626 = vmax.f32 %v2944, 0.0
  %v3627 = vmax.f32 %v2949, 0.0
  %v3628 = vmax.f32 %v2954, 0.0
  %v3629 = vmax.f32 %v2959, 0.0
  %v3630 = vmax.f32 %v2964, 0.0
  %v3631 = vmax.f32 %v2969, 0.0
  %v3632 = vmax.f32 %v2974, 0.0
  %v3633 = vmax.f32 %v2979, 0.0
  %v3634 = vmax.f32 %v2984, 0.0
  %v3635 = vmax.f32 %v2989, 0.0
  %v3636 = vmax.f32 %v2994, 0.0
  %v3637 = vmax.f32 %v2999, 0.0
  %v3638 = vmax.f32 %v3004, 0.0
  %v3639 = vmax.f32 %v3009, 0.0
  %v3640 = vmax.f32 %v3014, 0.0
  %v3641 = vmax.f32 %v3019, 0.0
  %v3642 = vmax.f32 %v3024, 0.0
  %v3643 = vmax.f32 %v3029, 0.0
  %v3644 = vmax.f32 %v3034, 0.0
  %v3645 = vmax.f32 %v3039, 0.0
  %v3646 = vmax.f32 %v3044, 0.0
  %v3647 = vmax.f32 %v3049, 0.0
  %v3648 = vmax.f32 %v3054, 0.0
  %v3649 = vmax.f32 %v3059, 0.0
  %v3650 = vmax.f32 %v3064, 0.0
  %v3651 = vmax.f32 %v3069, 0.0
  %v3652 = vmax.f32 %v3074, 0.0
  %v3653 = vmax.f32 %v3079, 0.0
  %v3654 = vmax.f32 %v3084, 0.0
  %v3655 = vmax.f32 %v3089, 0.0
  %v3656 = vmax.f32 %v3094, 0.0
  %v3657 = vmax.f32 %v3099, 0.0
  %v3658 = vmax.f32 %v3104, 0.0
  %v3659 = vmax.f32 %v3109, 0.0
  %v3660 = vmax.f32 %v3114, 0.0
  %v3661 = vmax.f32 %v3119, 0.0
  %v3662 = vmax.f32 %v3124, 0.0
  %v3663 = vmax.f32 %v3129, 0.0
  %v3664 = vmax.f32 %v3134, 0.0
  %v3665 = vmax.f32 %v3139, 0.0
  %v3666 = vmax.f32 %v3144, 0.0
  %v3667 = vmax.f32 %v3149, 0.0
  %v3668 = vmax.f32 %v3154, 0.0
  %v3669 = vmax.f32 %v3159, 0.0
  %v3670 = vmax.f32 %v3164, 0.0
  %v3671 = vmax.f32 %v3169, 0.0
  %v3672 = vmax.f32 %v3174, 0.0
  %v3673 = vmax.f32 %v3179, 0.0
  %v3674 = vmax.f32 %v3184, 0.0
  %v3675 = vmax.f32 %v3189, 0.0
  %v3676 = vmax.f32 %v3194, 0.0
  %v3677 = vmax.f32 %v3199, 0.0
  %v3678 = vmax.f32 %v3204, 0.0
  %v3679 = vmax.f32 %v3209, 0.0
  %v3680 = vmax.f32 %v3214, 0.0
  %v3681 = vmax.f32 %v3219, 0.0
  %v3682 = vmax.f32 %v3224, 0.0
  %v3683 = vmax.f32 %v3229, 0.0
  %v3684 = vmax.f32 %v3234, 0.0
  %v3685 = vmax.f32 %v3239, 0.0
  %v3686 = vmax.f32 %v3244, 0.0
  %v3687 = vmax.f32 %v3249, 0.0
  %v3688 = vmax.f32 %v3254, 0.0
  %v3689 = vmax.f32 %v3259, 0.0
  %v3690 = vmax.f32 %v3264, 0.0
  %v3691 = vmax.f32 %v3269, 0.0
  %v3692 = vmax.f32 %v3274, 0.0
  %v3693 = vmax.f32 %v3279, 0.0
  %v3694 = vmax.f32 %v3284, 0.0
  %v3695 = vmax.f32 %v3289, 0.0
  %v3696 = vmax.f32 %v3294, 0.0
  %v3697 = vmax.f32 %v3299, 0.0
  %v3698 = vmax.f32 %v3304, 0.0
  %v3699 = vmax.f32 %v3309, 0.0
  %v3700 = vmax.f32 %v3314, 0.0
  %v3701 = vmax.f32 %v3319, 0.0
  %v3702 = vmax.f32 %v3324, 0.0
  %v3703 = vmax.f32 %v3329, 0.0
  %v3704 = vmax.f32 %v3334, 0.0
  %v3705 = vmax.f32 %v3339, 0.0
  %v3706 = vmax.f32 %v3344, 0.0
  %v3707 = vmax.f32 %v3349, 0.0
  %v3708 = vmax.f32 %v3354, 0.0
  %v3709 = vmax.f32 %v3359, 0.0
  %v3710 = vmax.f32 %v3364, 0.0
  %v3711 = vmax.f32 %v3369, 0.0
  %v3712 = vmax.f32 %v3374, 0.0
  %v3713 = vmax.f32 %v3379, 0.0
  %v3714 = vmax.f32 %v3384, 0.0
  %v3715 = vmax.f32 %v3389, 0.0
  %v3716 = vmax.f32 %v3394, 0.0
  %v3717 = vmax.f32 %v3399, 0.0
  %v3718 = vmax.f32 %v3404, 0.0
  %v3719 = vmax.f32 %v3409, 0.0
  %v3720 = vmax.f32 %v3414, 0.0
  %v3721 = vmax.f32 %v3419, 0.0
  %v3722 = vmax.f32 %v3424, 0.0
  %v3723 = vmax.f32 %v3429, 0.0
  %v3724 = vmax.f32 %v3434, 0.0
  %v3725 = vmax.f32 %v3439, 0.0
  %v3726 = vmax.f32 %v3444, 0.0
  %v3727 = vmax.f32 %v3449, 0.0
  %v3728 = vmax.f32 %v3454, 0.0
  %v3729 = vmax.f32 %v3459, 0.0
  %v3730 = vmax.f32 %v3464, 0.0
  %v3731 = vmax.f32 %v3469, 0.0
  %v3732 = vmax.f32 %v3474, 0.0
  %v3733 = vmax.f32 %v3479, 0.0
  %v3734 = vmax.f32 %v3484, 0.0
  %v3735 = vmax.f32 %v3489, 0.0
  %v3736 = vmax.f32 %v3494, 0.0
  %v3737 = vmax.f32 %v3499, 0.0
  %v3738 = vmax.f32 %v3504, 0.0
  %v3739 = vmax.f32 %v3509, 0.0
  %v3740 = vmax.f32 %v3514, 0.0
  %v3741 = vmax.f32 %v3519, 0.0
  %v3742 = vmax.f32 %v3524, 0.0
  %v3743 = vmax.f32 %v3529, 0.0
  %v3744 = vmax.f32 %v3534, 0.0
  %v3745 = vmax.f32 %v3539, 0.0
  %v3746 = vmax.f32 %v3544, 0.0
  %v3747 = vmax.f32 %v3549, 0.0
  %v3748 = vmax.f32 %v3554, 0.0
  %v3749 = vmax.f32 %v3559, 0.0
  %vm3750 = vcmask 80896
  %v3751 = vsel %vm3750, %v3562, -inf
  %3752 = vmax.xlane.f32.xlu0 %v3751
  %v3753 = vpop.xlane.xlu0 %3752
  %v3754 = vsel %vm3750, %v3563, -inf
  %3755 = vmax.xlane.f32.xlu0 %v3754
  %v3756 = vpop.xlane.xlu0 %3755
  %v3757 = vsel %vm3750, %v3564, -inf
  %3758 = vmax.xlane.f32.xlu0 %v3757
  %v3759 = vpop.xlane.xlu0 %3758
  %v3760 = vsel %vm3750, %v3565, -inf
  %3761 = vmax.xlane.f32.xlu0 %v3760
  %v3762 = vpop.xlane.xlu0 %3761
  %v3763 = vsel %vm3750, %v3566, -inf
  %3764 = vmax.xlane.f32.xlu0 %v3763
  %v3765 = vpop.xlane.xlu0 %3764
  %v3766 = vsel %vm3750, %v3567, -inf
  %3767 = vmax.xlane.f32.xlu0 %v3766
  %v3768 = vpop.xlane.xlu0 %3767
  %v3769 = vsel %vm3750, %v3568, -inf
  %3770 = vmax.xlane.f32.xlu0 %v3769
  %v3771 = vpop.xlane.xlu0 %3770
  %v3772 = vsel %vm3750, %v3569, -inf
  %3773 = vmax.xlane.f32.xlu0 %v3772
  %v3774 = vpop.xlane.xlu0 %3773
  %v3775 = vsel %vm3750, %v3570, -inf
  %3776 = vmax.xlane.f32.xlu0 %v3775
  %v3777 = vpop.xlane.xlu0 %3776
  %v3778 = vsel %vm3750, %v3571, -inf
  %3779 = vmax.xlane.f32.xlu0 %v3778
  %v3780 = vpop.xlane.xlu0 %3779
  %v3781 = vsel %vm3750, %v3572, -inf
  %3782 = vmax.xlane.f32.xlu0 %v3781
  %v3783 = vpop.xlane.xlu0 %3782
  %v3784 = vsel %vm3750, %v3573, -inf
  %3785 = vmax.xlane.f32.xlu0 %v3784
  %v3786 = vpop.xlane.xlu0 %3785
  %v3787 = vsel %vm3750, %v3574, -inf
  %3788 = vmax.xlane.f32.xlu0 %v3787
  %v3789 = vpop.xlane.xlu0 %3788
  %v3790 = vsel %vm3750, %v3575, -inf
  %3791 = vmax.xlane.f32.xlu0 %v3790
  %v3792 = vpop.xlane.xlu0 %3791
  %v3793 = vsel %vm3750, %v3576, -inf
  %3794 = vmax.xlane.f32.xlu0 %v3793
  %v3795 = vpop.xlane.xlu0 %3794
  %v3796 = vsel %vm3750, %v3577, -inf
  %3797 = vmax.xlane.f32.xlu0 %v3796
  %v3798 = vpop.xlane.xlu0 %3797
  %v3799 = vsel %vm3750, %v3578, -inf
  %3800 = vmax.xlane.f32.xlu0 %v3799
  %v3801 = vpop.xlane.xlu0 %3800
  %v3802 = vsel %vm3750, %v3579, -inf
  %3803 = vmax.xlane.f32.xlu0 %v3802
  %v3804 = vpop.xlane.xlu0 %3803
  %v3805 = vsel %vm3750, %v3580, -inf
  %3806 = vmax.xlane.f32.xlu0 %v3805
  %v3807 = vpop.xlane.xlu0 %3806
  %v3808 = vsel %vm3750, %v3581, -inf
  %3809 = vmax.xlane.f32.xlu0 %v3808
  %v3810 = vpop.xlane.xlu0 %3809
  %v3811 = vsel %vm3750, %v3582, -inf
  %3812 = vmax.xlane.f32.xlu0 %v3811
  %v3813 = vpop.xlane.xlu0 %3812
  %v3814 = vsel %vm3750, %v3583, -inf
  %3815 = vmax.xlane.f32.xlu0 %v3814
  %v3816 = vpop.xlane.xlu0 %3815
  %v3817 = vsel %vm3750, %v3584, -inf
  %3818 = vmax.xlane.f32.xlu0 %v3817
  %v3819 = vpop.xlane.xlu0 %3818
  %v3820 = vsel %vm3750, %v3585, -inf
  %3821 = vmax.xlane.f32.xlu0 %v3820
  %v3822 = vpop.xlane.xlu0 %3821
  %v3823 = vsel %vm3750, %v3586, -inf
  %3824 = vmax.xlane.f32.xlu0 %v3823
  %v3825 = vpop.xlane.xlu0 %3824
  %v3826 = vsel %vm3750, %v3587, -inf
  %3827 = vmax.xlane.f32.xlu0 %v3826
  %v3828 = vpop.xlane.xlu0 %3827
  %v3829 = vsel %vm3750, %v3588, -inf
  %3830 = vmax.xlane.f32.xlu0 %v3829
  %v3831 = vpop.xlane.xlu0 %3830
  %v3832 = vsel %vm3750, %v3589, -inf
  %3833 = vmax.xlane.f32.xlu0 %v3832
  %v3834 = vpop.xlane.xlu0 %3833
  %v3835 = vsel %vm3750, %v3590, -inf
  %3836 = vmax.xlane.f32.xlu0 %v3835
  %v3837 = vpop.xlane.xlu0 %3836
  %v3838 = vsel %vm3750, %v3591, -inf
  %3839 = vmax.xlane.f32.xlu0 %v3838
  %v3840 = vpop.xlane.xlu0 %3839
  %v3841 = vsel %vm3750, %v3592, -inf
  %3842 = vmax.xlane.f32.xlu0 %v3841
  %v3843 = vpop.xlane.xlu0 %3842
  %v3844 = vsel %vm3750, %v3593, -inf
  %3845 = vmax.xlane.f32.xlu0 %v3844
  %v3846 = vpop.xlane.xlu0 %3845
  %v3847 = vsel %vm3750, %v3594, -inf
  %3848 = vmax.xlane.f32.xlu0 %v3847
  %v3849 = vpop.xlane.xlu0 %3848
  %v3850 = vsel %vm3750, %v3595, -inf
  %3851 = vmax.xlane.f32.xlu0 %v3850
  %v3852 = vpop.xlane.xlu0 %3851
  %v3853 = vsel %vm3750, %v3596, -inf
  %3854 = vmax.xlane.f32.xlu0 %v3853
  %v3855 = vpop.xlane.xlu0 %3854
  %v3856 = vsel %vm3750, %v3597, -inf
  %3857 = vmax.xlane.f32.xlu0 %v3856
  %v3858 = vpop.xlane.xlu0 %3857
  %v3859 = vsel %vm3750, %v3598, -inf
  %3860 = vmax.xlane.f32.xlu0 %v3859
  %v3861 = vpop.xlane.xlu0 %3860
  %v3862 = vsel %vm3750, %v3599, -inf
  %3863 = vmax.xlane.f32.xlu0 %v3862
  %v3864 = vpop.xlane.xlu0 %3863
  %v3865 = vsel %vm3750, %v3600, -inf
  %3866 = vmax.xlane.f32.xlu0 %v3865
  %v3867 = vpop.xlane.xlu0 %3866
  %v3868 = vsel %vm3750, %v3601, -inf
  %3869 = vmax.xlane.f32.xlu0 %v3868
  %v3870 = vpop.xlane.xlu0 %3869
  %v3871 = vsel %vm3750, %v3602, -inf
  %3872 = vmax.xlane.f32.xlu0 %v3871
  %v3873 = vpop.xlane.xlu0 %3872
  %v3874 = vsel %vm3750, %v3603, -inf
  %3875 = vmax.xlane.f32.xlu0 %v3874
  %v3876 = vpop.xlane.xlu0 %3875
  %v3877 = vsel %vm3750, %v3604, -inf
  %3878 = vmax.xlane.f32.xlu0 %v3877
  %v3879 = vpop.xlane.xlu0 %3878
  %v3880 = vsel %vm3750, %v3605, -inf
  %3881 = vmax.xlane.f32.xlu0 %v3880
  %v3882 = vpop.xlane.xlu0 %3881
  %v3883 = vsel %vm3750, %v3606, -inf
  %3884 = vmax.xlane.f32.xlu0 %v3883
  %v3885 = vpop.xlane.xlu0 %3884
  %v3886 = vsel %vm3750, %v3607, -inf
  %3887 = vmax.xlane.f32.xlu0 %v3886
  %v3888 = vpop.xlane.xlu0 %3887
  %v3889 = vsel %vm3750, %v3608, -inf
  %3890 = vmax.xlane.f32.xlu0 %v3889
  %v3891 = vpop.xlane.xlu0 %3890
  %v3892 = vsel %vm3750, %v3609, -inf
  %3893 = vmax.xlane.f32.xlu0 %v3892
  %v3894 = vpop.xlane.xlu0 %3893
  %v3895 = vsel %vm3750, %v3610, -inf
  %3896 = vmax.xlane.f32.xlu0 %v3895
  %v3897 = vpop.xlane.xlu0 %3896
  %v3898 = vsel %vm3750, %v3611, -inf
  %3899 = vmax.xlane.f32.xlu0 %v3898
  %v3900 = vpop.xlane.xlu0 %3899
  %v3901 = vsel %vm3750, %v3612, -inf
  %3902 = vmax.xlane.f32.xlu0 %v3901
  %v3903 = vpop.xlane.xlu0 %3902
  %v3904 = vsel %vm3750, %v3613, -inf
  %3905 = vmax.xlane.f32.xlu0 %v3904
  %v3906 = vpop.xlane.xlu0 %3905
  %v3907 = vsel %vm3750, %v3614, -inf
  %3908 = vmax.xlane.f32.xlu0 %v3907
  %v3909 = vpop.xlane.xlu0 %3908
  %v3910 = vsel %vm3750, %v3615, -inf
  %3911 = vmax.xlane.f32.xlu0 %v3910
  %v3912 = vpop.xlane.xlu0 %3911
  %v3913 = vsel %vm3750, %v3616, -inf
  %3914 = vmax.xlane.f32.xlu0 %v3913
  %v3915 = vpop.xlane.xlu0 %3914
  %v3916 = vsel %vm3750, %v3617, -inf
  %3917 = vmax.xlane.f32.xlu0 %v3916
  %v3918 = vpop.xlane.xlu0 %3917
  %v3919 = vsel %vm3750, %v3618, -inf
  %3920 = vmax.xlane.f32.xlu0 %v3919
  %v3921 = vpop.xlane.xlu0 %3920
  %v3922 = vsel %vm3750, %v3619, -inf
  %3923 = vmax.xlane.f32.xlu0 %v3922
  %v3924 = vpop.xlane.xlu0 %3923
  %v3925 = vsel %vm3750, %v3620, -inf
  %3926 = vmax.xlane.f32.xlu0 %v3925
  %v3927 = vpop.xlane.xlu0 %3926
  %v3928 = vsel %vm3750, %v3621, -inf
  %3929 = vmax.xlane.f32.xlu0 %v3928
  %v3930 = vpop.xlane.xlu0 %3929
  %v3931 = vsel %vm3750, %v3622, -inf
  %3932 = vmax.xlane.f32.xlu0 %v3931
  %v3933 = vpop.xlane.xlu0 %3932
  %v3934 = vsel %vm3750, %v3623, -inf
  %3935 = vmax.xlane.f32.xlu0 %v3934
  %v3936 = vpop.xlane.xlu0 %3935
  %v3937 = vsel %vm3750, %v3624, -inf
  %3938 = vmax.xlane.f32.xlu0 %v3937
  %v3939 = vpop.xlane.xlu0 %3938
  %v3940 = vsel %vm3750, %v3625, -inf
  %3941 = vmax.xlane.f32.xlu0 %v3940
  %v3942 = vpop.xlane.xlu0 %3941
  %v3943 = vsel %vm3750, %v3626, -inf
  %3944 = vmax.xlane.f32.xlu0 %v3943
  %v3945 = vpop.xlane.xlu0 %3944
  %v3946 = vsel %vm3750, %v3627, -inf
  %3947 = vmax.xlane.f32.xlu0 %v3946
  %v3948 = vpop.xlane.xlu0 %3947
  %v3949 = vsel %vm3750, %v3628, -inf
  %3950 = vmax.xlane.f32.xlu0 %v3949
  %v3951 = vpop.xlane.xlu0 %3950
  %v3952 = vsel %vm3750, %v3629, -inf
  %3953 = vmax.xlane.f32.xlu0 %v3952
  %v3954 = vpop.xlane.xlu0 %3953
  %v3955 = vsel %vm3750, %v3630, -inf
  %3956 = vmax.xlane.f32.xlu0 %v3955
  %v3957 = vpop.xlane.xlu0 %3956
  %v3958 = vsel %vm3750, %v3631, -inf
  %3959 = vmax.xlane.f32.xlu0 %v3958
  %v3960 = vpop.xlane.xlu0 %3959
  %v3961 = vsel %vm3750, %v3632, -inf
  %3962 = vmax.xlane.f32.xlu0 %v3961
  %v3963 = vpop.xlane.xlu0 %3962
  %v3964 = vsel %vm3750, %v3633, -inf
  %3965 = vmax.xlane.f32.xlu0 %v3964
  %v3966 = vpop.xlane.xlu0 %3965
  %v3967 = vsel %vm3750, %v3634, -inf
  %3968 = vmax.xlane.f32.xlu0 %v3967
  %v3969 = vpop.xlane.xlu0 %3968
  %v3970 = vsel %vm3750, %v3635, -inf
  %3971 = vmax.xlane.f32.xlu0 %v3970
  %v3972 = vpop.xlane.xlu0 %3971
  %v3973 = vsel %vm3750, %v3636, -inf
  %3974 = vmax.xlane.f32.xlu0 %v3973
  %v3975 = vpop.xlane.xlu0 %3974
  %v3976 = vsel %vm3750, %v3637, -inf
  %3977 = vmax.xlane.f32.xlu0 %v3976
  %v3978 = vpop.xlane.xlu0 %3977
  %v3979 = vsel %vm3750, %v3638, -inf
  %3980 = vmax.xlane.f32.xlu0 %v3979
  %v3981 = vpop.xlane.xlu0 %3980
  %v3982 = vsel %vm3750, %v3639, -inf
  %3983 = vmax.xlane.f32.xlu0 %v3982
  %v3984 = vpop.xlane.xlu0 %3983
  %v3985 = vsel %vm3750, %v3640, -inf
  %3986 = vmax.xlane.f32.xlu0 %v3985
  %v3987 = vpop.xlane.xlu0 %3986
  %v3988 = vsel %vm3750, %v3641, -inf
  %3989 = vmax.xlane.f32.xlu0 %v3988
  %v3990 = vpop.xlane.xlu0 %3989
  %v3991 = vsel %vm3750, %v3642, -inf
  %3992 = vmax.xlane.f32.xlu0 %v3991
  %v3993 = vpop.xlane.xlu0 %3992
  %v3994 = vsel %vm3750, %v3643, -inf
  %3995 = vmax.xlane.f32.xlu0 %v3994
  %v3996 = vpop.xlane.xlu0 %3995
  %v3997 = vsel %vm3750, %v3644, -inf
  %3998 = vmax.xlane.f32.xlu0 %v3997
  %v3999 = vpop.xlane.xlu0 %3998
  %v4000 = vsel %vm3750, %v3645, -inf
  %4001 = vmax.xlane.f32.xlu0 %v4000
  %v4002 = vpop.xlane.xlu0 %4001
  %v4003 = vsel %vm3750, %v3646, -inf
  %4004 = vmax.xlane.f32.xlu0 %v4003
  %v4005 = vpop.xlane.xlu0 %4004
  %v4006 = vsel %vm3750, %v3647, -inf
  %4007 = vmax.xlane.f32.xlu0 %v4006
  %v4008 = vpop.xlane.xlu0 %4007
  %v4009 = vsel %vm3750, %v3648, -inf
  %4010 = vmax.xlane.f32.xlu0 %v4009
  %v4011 = vpop.xlane.xlu0 %4010
  %v4012 = vsel %vm3750, %v3649, -inf
  %4013 = vmax.xlane.f32.xlu0 %v4012
  %v4014 = vpop.xlane.xlu0 %4013
  %v4015 = vsel %vm3750, %v3650, -inf
  %4016 = vmax.xlane.f32.xlu0 %v4015
  %v4017 = vpop.xlane.xlu0 %4016
  %v4018 = vsel %vm3750, %v3651, -inf
  %4019 = vmax.xlane.f32.xlu0 %v4018
  %v4020 = vpop.xlane.xlu0 %4019
  %v4021 = vsel %vm3750, %v3652, -inf
  %4022 = vmax.xlane.f32.xlu0 %v4021
  %v4023 = vpop.xlane.xlu0 %4022
  %v4024 = vsel %vm3750, %v3653, -inf
  %4025 = vmax.xlane.f32.xlu0 %v4024
  %v4026 = vpop.xlane.xlu0 %4025
  %v4027 = vsel %vm3750, %v3654, -inf
  %4028 = vmax.xlane.f32.xlu0 %v4027
  %v4029 = vpop.xlane.xlu0 %4028
  %v4030 = vsel %vm3750, %v3655, -inf
  %4031 = vmax.xlane.f32.xlu0 %v4030
  %v4032 = vpop.xlane.xlu0 %4031
  %v4033 = vsel %vm3750, %v3656, -inf
  %4034 = vmax.xlane.f32.xlu0 %v4033
  %v4035 = vpop.xlane.xlu0 %4034
  %v4036 = vsel %vm3750, %v3657, -inf
  %4037 = vmax.xlane.f32.xlu0 %v4036
  %v4038 = vpop.xlane.xlu0 %4037
  %v4039 = vsel %vm3750, %v3658, -inf
  %4040 = vmax.xlane.f32.xlu0 %v4039
  %v4041 = vpop.xlane.xlu0 %4040
  %v4042 = vsel %vm3750, %v3659, -inf
  %4043 = vmax.xlane.f32.xlu0 %v4042
  %v4044 = vpop.xlane.xlu0 %4043
  %v4045 = vsel %vm3750, %v3660, -inf
  %4046 = vmax.xlane.f32.xlu0 %v4045
  %v4047 = vpop.xlane.xlu0 %4046
  %v4048 = vsel %vm3750, %v3661, -inf
  %4049 = vmax.xlane.f32.xlu0 %v4048
  %v4050 = vpop.xlane.xlu0 %4049
  %v4051 = vsel %vm3750, %v3662, -inf
  %4052 = vmax.xlane.f32.xlu0 %v4051
  %v4053 = vpop.xlane.xlu0 %4052
  %v4054 = vsel %vm3750, %v3663, -inf
  %4055 = vmax.xlane.f32.xlu0 %v4054
  %v4056 = vpop.xlane.xlu0 %4055
  %v4057 = vsel %vm3750, %v3664, -inf
  %4058 = vmax.xlane.f32.xlu0 %v4057
  %v4059 = vpop.xlane.xlu0 %4058
  %v4060 = vsel %vm3750, %v3665, -inf
  %4061 = vmax.xlane.f32.xlu0 %v4060
  %v4062 = vpop.xlane.xlu0 %4061
  %v4063 = vsel %vm3750, %v3666, -inf
  %4064 = vmax.xlane.f32.xlu0 %v4063
  %v4065 = vpop.xlane.xlu0 %4064
  %v4066 = vsel %vm3750, %v3667, -inf
  %4067 = vmax.xlane.f32.xlu0 %v4066
  %v4068 = vpop.xlane.xlu0 %4067
  %v4069 = vsel %vm3750, %v3668, -inf
  %4070 = vmax.xlane.f32.xlu0 %v4069
  %v4071 = vpop.xlane.xlu0 %4070
  %v4072 = vsel %vm3750, %v3669, -inf
  %4073 = vmax.xlane.f32.xlu0 %v4072
  %v4074 = vpop.xlane.xlu0 %4073
  %v4075 = vsel %vm3750, %v3670, -inf
  %4076 = vmax.xlane.f32.xlu0 %v4075
  %v4077 = vpop.xlane.xlu0 %4076
  %v4078 = vsel %vm3750, %v3671, -inf
  %4079 = vmax.xlane.f32.xlu0 %v4078
  %v4080 = vpop.xlane.xlu0 %4079
  %v4081 = vsel %vm3750, %v3672, -inf
  %4082 = vmax.xlane.f32.xlu0 %v4081
  %v4083 = vpop.xlane.xlu0 %4082
  %v4084 = vsel %vm3750, %v3673, -inf
  %4085 = vmax.xlane.f32.xlu0 %v4084
  %v4086 = vpop.xlane.xlu0 %4085
  %v4087 = vsel %vm3750, %v3674, -inf
  %4088 = vmax.xlane.f32.xlu0 %v4087
  %v4089 = vpop.xlane.xlu0 %4088
  %v4090 = vsel %vm3750, %v3675, -inf
  %4091 = vmax.xlane.f32.xlu0 %v4090
  %v4092 = vpop.xlane.xlu0 %4091
  %v4093 = vsel %vm3750, %v3676, -inf
  %4094 = vmax.xlane.f32.xlu0 %v4093
  %v4095 = vpop.xlane.xlu0 %4094
  %v4096 = vsel %vm3750, %v3677, -inf
  %4097 = vmax.xlane.f32.xlu0 %v4096
  %v4098 = vpop.xlane.xlu0 %4097
  %v4099 = vsel %vm3750, %v3678, -inf
  %4100 = vmax.xlane.f32.xlu0 %v4099
  %v4101 = vpop.xlane.xlu0 %4100
  %v4102 = vsel %vm3750, %v3679, -inf
  %4103 = vmax.xlane.f32.xlu0 %v4102
  %v4104 = vpop.xlane.xlu0 %4103
  %v4105 = vsel %vm3750, %v3680, -inf
  %4106 = vmax.xlane.f32.xlu0 %v4105
  %v4107 = vpop.xlane.xlu0 %4106
  %v4108 = vsel %vm3750, %v3681, -inf
  %4109 = vmax.xlane.f32.xlu0 %v4108
  %v4110 = vpop.xlane.xlu0 %4109
  %v4111 = vsel %vm3750, %v3682, -inf
  %4112 = vmax.xlane.f32.xlu0 %v4111
  %v4113 = vpop.xlane.xlu0 %4112
  %v4114 = vsel %vm3750, %v3683, -inf
  %4115 = vmax.xlane.f32.xlu0 %v4114
  %v4116 = vpop.xlane.xlu0 %4115
  %v4117 = vsel %vm3750, %v3684, -inf
  %4118 = vmax.xlane.f32.xlu0 %v4117
  %v4119 = vpop.xlane.xlu0 %4118
  %v4120 = vsel %vm3750, %v3685, -inf
  %4121 = vmax.xlane.f32.xlu0 %v4120
  %v4122 = vpop.xlane.xlu0 %4121
  %v4123 = vsel %vm3750, %v3686, -inf
  %4124 = vmax.xlane.f32.xlu0 %v4123
  %v4125 = vpop.xlane.xlu0 %4124
  %v4126 = vsel %vm3750, %v3687, -inf
  %4127 = vmax.xlane.f32.xlu0 %v4126
  %v4128 = vpop.xlane.xlu0 %4127
  %v4129 = vsel %vm3750, %v3688, -inf
  %4130 = vmax.xlane.f32.xlu0 %v4129
  %v4131 = vpop.xlane.xlu0 %4130
  %v4132 = vsel %vm3750, %v3689, -inf
  %4133 = vmax.xlane.f32.xlu0 %v4132
  %v4134 = vpop.xlane.xlu0 %4133
  %v4135 = vsel %vm3750, %v3690, -inf
  %4136 = vmax.xlane.f32.xlu0 %v4135
  %v4137 = vpop.xlane.xlu0 %4136
  %v4138 = vsel %vm3750, %v3691, -inf
  %4139 = vmax.xlane.f32.xlu0 %v4138
  %v4140 = vpop.xlane.xlu0 %4139
  %v4141 = vsel %vm3750, %v3692, -inf
  %4142 = vmax.xlane.f32.xlu0 %v4141
  %v4143 = vpop.xlane.xlu0 %4142
  %v4144 = vsel %vm3750, %v3693, -inf
  %4145 = vmax.xlane.f32.xlu0 %v4144
  %v4146 = vpop.xlane.xlu0 %4145
  %v4147 = vsel %vm3750, %v3694, -inf
  %4148 = vmax.xlane.f32.xlu0 %v4147
  %v4149 = vpop.xlane.xlu0 %4148
  %v4150 = vsel %vm3750, %v3695, -inf
  %4151 = vmax.xlane.f32.xlu0 %v4150
  %v4152 = vpop.xlane.xlu0 %4151
  %v4153 = vsel %vm3750, %v3696, -inf
  %4154 = vmax.xlane.f32.xlu0 %v4153
  %v4155 = vpop.xlane.xlu0 %4154
  %v4156 = vsel %vm3750, %v3697, -inf
  %4157 = vmax.xlane.f32.xlu0 %v4156
  %v4158 = vpop.xlane.xlu0 %4157
  %v4159 = vsel %vm3750, %v3698, -inf
  %4160 = vmax.xlane.f32.xlu0 %v4159
  %v4161 = vpop.xlane.xlu0 %4160
  %v4162 = vsel %vm3750, %v3699, -inf
  %4163 = vmax.xlane.f32.xlu0 %v4162
  %v4164 = vpop.xlane.xlu0 %4163
  %v4165 = vsel %vm3750, %v3700, -inf
  %4166 = vmax.xlane.f32.xlu0 %v4165
  %v4167 = vpop.xlane.xlu0 %4166
  %v4168 = vsel %vm3750, %v3701, -inf
  %4169 = vmax.xlane.f32.xlu0 %v4168
  %v4170 = vpop.xlane.xlu0 %4169
  %v4171 = vsel %vm3750, %v3702, -inf
  %4172 = vmax.xlane.f32.xlu0 %v4171
  %v4173 = vpop.xlane.xlu0 %4172
  %v4174 = vsel %vm3750, %v3703, -inf
  %4175 = vmax.xlane.f32.xlu0 %v4174
  %v4176 = vpop.xlane.xlu0 %4175
  %v4177 = vsel %vm3750, %v3704, -inf
  %4178 = vmax.xlane.f32.xlu0 %v4177
  %v4179 = vpop.xlane.xlu0 %4178
  %v4180 = vsel %vm3750, %v3705, -inf
  %4181 = vmax.xlane.f32.xlu0 %v4180
  %v4182 = vpop.xlane.xlu0 %4181
  %v4183 = vsel %vm3750, %v3706, -inf
  %4184 = vmax.xlane.f32.xlu0 %v4183
  %v4185 = vpop.xlane.xlu0 %4184
  %v4186 = vsel %vm3750, %v3707, -inf
  %4187 = vmax.xlane.f32.xlu0 %v4186
  %v4188 = vpop.xlane.xlu0 %4187
  %v4189 = vsel %vm3750, %v3708, -inf
  %4190 = vmax.xlane.f32.xlu0 %v4189
  %v4191 = vpop.xlane.xlu0 %4190
  %v4192 = vsel %vm3750, %v3709, -inf
  %4193 = vmax.xlane.f32.xlu0 %v4192
  %v4194 = vpop.xlane.xlu0 %4193
  %v4195 = vsel %vm3750, %v3710, -inf
  %4196 = vmax.xlane.f32.xlu0 %v4195
  %v4197 = vpop.xlane.xlu0 %4196
  %v4198 = vsel %vm3750, %v3711, -inf
  %4199 = vmax.xlane.f32.xlu0 %v4198
  %v4200 = vpop.xlane.xlu0 %4199
  %v4201 = vsel %vm3750, %v3712, -inf
  %4202 = vmax.xlane.f32.xlu0 %v4201
  %v4203 = vpop.xlane.xlu0 %4202
  %v4204 = vsel %vm3750, %v3713, -inf
  %4205 = vmax.xlane.f32.xlu0 %v4204
  %v4206 = vpop.xlane.xlu0 %4205
  %v4207 = vsel %vm3750, %v3714, -inf
  %4208 = vmax.xlane.f32.xlu0 %v4207
  %v4209 = vpop.xlane.xlu0 %4208
  %v4210 = vsel %vm3750, %v3715, -inf
  %4211 = vmax.xlane.f32.xlu0 %v4210
  %v4212 = vpop.xlane.xlu0 %4211
  %v4213 = vsel %vm3750, %v3716, -inf
  %4214 = vmax.xlane.f32.xlu0 %v4213
  %v4215 = vpop.xlane.xlu0 %4214
  %v4216 = vsel %vm3750, %v3717, -inf
  %4217 = vmax.xlane.f32.xlu0 %v4216
  %v4218 = vpop.xlane.xlu0 %4217
  %v4219 = vsel %vm3750, %v3718, -inf
  %4220 = vmax.xlane.f32.xlu0 %v4219
  %v4221 = vpop.xlane.xlu0 %4220
  %v4222 = vsel %vm3750, %v3719, -inf
  %4223 = vmax.xlane.f32.xlu0 %v4222
  %v4224 = vpop.xlane.xlu0 %4223
  %v4225 = vsel %vm3750, %v3720, -inf
  %4226 = vmax.xlane.f32.xlu0 %v4225
  %v4227 = vpop.xlane.xlu0 %4226
  %v4228 = vsel %vm3750, %v3721, -inf
  %4229 = vmax.xlane.f32.xlu0 %v4228
  %v4230 = vpop.xlane.xlu0 %4229
  %v4231 = vsel %vm3750, %v3722, -inf
  %4232 = vmax.xlane.f32.xlu0 %v4231
  %v4233 = vpop.xlane.xlu0 %4232
  %v4234 = vsel %vm3750, %v3723, -inf
  %4235 = vmax.xlane.f32.xlu0 %v4234
  %v4236 = vpop.xlane.xlu0 %4235
  %v4237 = vsel %vm3750, %v3724, -inf
  %4238 = vmax.xlane.f32.xlu0 %v4237
  %v4239 = vpop.xlane.xlu0 %4238
  %v4240 = vsel %vm3750, %v3725, -inf
  %4241 = vmax.xlane.f32.xlu0 %v4240
  %v4242 = vpop.xlane.xlu0 %4241
  %v4243 = vsel %vm3750, %v3726, -inf
  %4244 = vmax.xlane.f32.xlu0 %v4243
  %v4245 = vpop.xlane.xlu0 %4244
  %v4246 = vsel %vm3750, %v3727, -inf
  %4247 = vmax.xlane.f32.xlu0 %v4246
  %v4248 = vpop.xlane.xlu0 %4247
  %v4249 = vsel %vm3750, %v3728, -inf
  %4250 = vmax.xlane.f32.xlu0 %v4249
  %v4251 = vpop.xlane.xlu0 %4250
  %v4252 = vsel %vm3750, %v3729, -inf
  %4253 = vmax.xlane.f32.xlu0 %v4252
  %v4254 = vpop.xlane.xlu0 %4253
  %v4255 = vsel %vm3750, %v3730, -inf
  %4256 = vmax.xlane.f32.xlu0 %v4255
  %v4257 = vpop.xlane.xlu0 %4256
  %v4258 = vsel %vm3750, %v3731, -inf
  %4259 = vmax.xlane.f32.xlu0 %v4258
  %v4260 = vpop.xlane.xlu0 %4259
  %v4261 = vsel %vm3750, %v3732, -inf
  %4262 = vmax.xlane.f32.xlu0 %v4261
  %v4263 = vpop.xlane.xlu0 %4262
  %v4264 = vsel %vm3750, %v3733, -inf
  %4265 = vmax.xlane.f32.xlu0 %v4264
  %v4266 = vpop.xlane.xlu0 %4265
  %v4267 = vsel %vm3750, %v3734, -inf
  %4268 = vmax.xlane.f32.xlu0 %v4267
  %v4269 = vpop.xlane.xlu0 %4268
  %v4270 = vsel %vm3750, %v3735, -inf
  %4271 = vmax.xlane.f32.xlu0 %v4270
  %v4272 = vpop.xlane.xlu0 %4271
  %v4273 = vsel %vm3750, %v3736, -inf
  %4274 = vmax.xlane.f32.xlu0 %v4273
  %v4275 = vpop.xlane.xlu0 %4274
  %v4276 = vsel %vm3750, %v3737, -inf
  %4277 = vmax.xlane.f32.xlu0 %v4276
  %v4278 = vpop.xlane.xlu0 %4277
  %v4279 = vsel %vm3750, %v3738, -inf
  %4280 = vmax.xlane.f32.xlu0 %v4279
  %v4281 = vpop.xlane.xlu0 %4280
  %v4282 = vsel %vm3750, %v3739, -inf
  %4283 = vmax.xlane.f32.xlu0 %v4282
  %v4284 = vpop.xlane.xlu0 %4283
  %v4285 = vsel %vm3750, %v3740, -inf
  %4286 = vmax.xlane.f32.xlu0 %v4285
  %v4287 = vpop.xlane.xlu0 %4286
  %v4288 = vsel %vm3750, %v3741, -inf
  %4289 = vmax.xlane.f32.xlu0 %v4288
  %v4290 = vpop.xlane.xlu0 %4289
  %v4291 = vsel %vm3750, %v3742, -inf
  %4292 = vmax.xlane.f32.xlu0 %v4291
  %v4293 = vpop.xlane.xlu0 %4292
  %v4294 = vsel %vm3750, %v3743, -inf
  %4295 = vmax.xlane.f32.xlu0 %v4294
  %v4296 = vpop.xlane.xlu0 %4295
  %v4297 = vsel %vm3750, %v3744, -inf
  %4298 = vmax.xlane.f32.xlu0 %v4297
  %v4299 = vpop.xlane.xlu0 %4298
  %v4300 = vsel %vm3750, %v3745, -inf
  %4301 = vmax.xlane.f32.xlu0 %v4300
  %v4302 = vpop.xlane.xlu0 %4301
  %v4303 = vsel %vm3750, %v3746, -inf
  %4304 = vmax.xlane.f32.xlu0 %v4303
  %v4305 = vpop.xlane.xlu0 %4304
  %v4306 = vsel %vm3750, %v3747, -inf
  %4307 = vmax.xlane.f32.xlu0 %v4306
  %v4308 = vpop.xlane.xlu0 %4307
  %v4309 = vsel %vm3750, %v3748, -inf
  %4310 = vmax.xlane.f32.xlu0 %v4309
  %v4311 = vpop.xlane.xlu0 %4310
  %vm4312 = vcmask 76800
  %v4313 = vsel %vm4312, %v3749, -inf
  %4314 = vmax.xlane.f32.xlu0 %v4313
  %v4315 = vpop.xlane.xlu0 %4314
  %v4316 = vsub.f32 %v3562, %v3753
  %v4317 = vsub.f32 %v3563, %v3756
  %v4318 = vsub.f32 %v3564, %v3759
  %v4319 = vsub.f32 %v3565, %v3762
  %v4320 = vsub.f32 %v3566, %v3765
  %v4321 = vsub.f32 %v3567, %v3768
  %v4322 = vsub.f32 %v3568, %v3771
  %v4323 = vsub.f32 %v3569, %v3774
  %v4324 = vsub.f32 %v3570, %v3777
  %v4325 = vsub.f32 %v3571, %v3780
  %v4326 = vsub.f32 %v3572, %v3783
  %v4327 = vsub.f32 %v3573, %v3786
  %v4328 = vsub.f32 %v3574, %v3789
  %v4329 = vsub.f32 %v3575, %v3792
  %v4330 = vsub.f32 %v3576, %v3795
  %v4331 = vsub.f32 %v3577, %v3798
  %v4332 = vsub.f32 %v3578, %v3801
  %v4333 = vsub.f32 %v3579, %v3804
  %v4334 = vsub.f32 %v3580, %v3807
  %v4335 = vsub.f32 %v3581, %v3810
  %v4336 = vsub.f32 %v3582, %v3813
  %v4337 = vsub.f32 %v3583, %v3816
  %v4338 = vsub.f32 %v3584, %v3819
  %v4339 = vsub.f32 %v3585, %v3822
  %v4340 = vsub.f32 %v3586, %v3825
  %v4341 = vsub.f32 %v3587, %v3828
  %v4342 = vsub.f32 %v3588, %v3831
  %v4343 = vsub.f32 %v3589, %v3834
  %v4344 = vsub.f32 %v3590, %v3837
  %v4345 = vsub.f32 %v3591, %v3840
  %v4346 = vsub.f32 %v3592, %v3843
  %v4347 = vsub.f32 %v3593, %v3846
  %v4348 = vsub.f32 %v3594, %v3849
  %v4349 = vsub.f32 %v3595, %v3852
  %v4350 = vsub.f32 %v3596, %v3855
  %v4351 = vsub.f32 %v3597, %v3858
  %v4352 = vsub.f32 %v3598, %v3861
  %v4353 = vsub.f32 %v3599, %v3864
  %v4354 = vsub.f32 %v3600, %v3867
  %v4355 = vsub.f32 %v3601, %v3870
  %v4356 = vsub.f32 %v3602, %v3873
  %v4357 = vsub.f32 %v3603, %v3876
  %v4358 = vsub.f32 %v3604, %v3879
  %v4359 = vsub.f32 %v3605, %v3882
  %v4360 = vsub.f32 %v3606, %v3885
  %v4361 = vsub.f32 %v3607, %v3888
  %v4362 = vsub.f32 %v3608, %v3891
  %v4363 = vsub.f32 %v3609, %v3894
  %v4364 = vsub.f32 %v3610, %v3897
  %v4365 = vsub.f32 %v3611, %v3900
  %v4366 = vsub.f32 %v3612, %v3903
  %v4367 = vsub.f32 %v3613, %v3906
  %v4368 = vsub.f32 %v3614, %v3909
  %v4369 = vsub.f32 %v3615, %v3912
  %v4370 = vsub.f32 %v3616, %v3915
  %v4371 = vsub.f32 %v3617, %v3918
  %v4372 = vsub.f32 %v3618, %v3921
  %v4373 = vsub.f32 %v3619, %v3924
  %v4374 = vsub.f32 %v3620, %v3927
  %v4375 = vsub.f32 %v3621, %v3930
  %v4376 = vsub.f32 %v3622, %v3933
  %v4377 = vsub.f32 %v3623, %v3936
  %v4378 = vsub.f32 %v3624, %v3939
  %v4379 = vsub.f32 %v3625, %v3942
  %v4380 = vsub.f32 %v3626, %v3945
  %v4381 = vsub.f32 %v3627, %v3948
  %v4382 = vsub.f32 %v3628, %v3951
  %v4383 = vsub.f32 %v3629, %v3954
  %v4384 = vsub.f32 %v3630, %v3957
  %v4385 = vsub.f32 %v3631, %v3960
  %v4386 = vsub.f32 %v3632, %v3963
  %v4387 = vsub.f32 %v3633, %v3966
  %v4388 = vsub.f32 %v3634, %v3969
  %v4389 = vsub.f32 %v3635, %v3972
  %v4390 = vsub.f32 %v3636, %v3975
  %v4391 = vsub.f32 %v3637, %v3978
  %v4392 = vsub.f32 %v3638, %v3981
  %v4393 = vsub.f32 %v3639, %v3984
  %v4394 = vsub.f32 %v3640, %v3987
  %v4395 = vsub.f32 %v3641, %v3990
  %v4396 = vsub.f32 %v3642, %v3993
  %v4397 = vsub.f32 %v3643, %v3996
  %v4398 = vsub.f32 %v3644, %v3999
  %v4399 = vsub.f32 %v3645, %v4002
  %v4400 = vsub.f32 %v3646, %v4005
  %v4401 = vsub.f32 %v3647, %v4008
  %v4402 = vsub.f32 %v3648, %v4011
  %v4403 = vsub.f32 %v3649, %v4014
  %v4404 = vsub.f32 %v3650, %v4017
  %v4405 = vsub.f32 %v3651, %v4020
  %v4406 = vsub.f32 %v3652, %v4023
  %v4407 = vsub.f32 %v3653, %v4026
  %v4408 = vsub.f32 %v3654, %v4029
  %v4409 = vsub.f32 %v3655, %v4032
  %v4410 = vsub.f32 %v3656, %v4035
  %v4411 = vsub.f32 %v3657, %v4038
  %v4412 = vsub.f32 %v3658, %v4041
  %v4413 = vsub.f32 %v3659, %v4044
  %v4414 = vsub.f32 %v3660, %v4047
  %v4415 = vsub.f32 %v3661, %v4050
  %v4416 = vsub.f32 %v3662, %v4053
  %v4417 = vsub.f32 %v3663, %v4056
  %v4418 = vsub.f32 %v3664, %v4059
  %v4419 = vsub.f32 %v3665, %v4062
  %v4420 = vsub.f32 %v3666, %v4065
  %v4421 = vsub.f32 %v3667, %v4068
  %v4422 = vsub.f32 %v3668, %v4071
  %v4423 = vsub.f32 %v3669, %v4074
  %v4424 = vsub.f32 %v3670, %v4077
  %v4425 = vsub.f32 %v3671, %v4080
  %v4426 = vsub.f32 %v3672, %v4083
  %v4427 = vsub.f32 %v3673, %v4086
  %v4428 = vsub.f32 %v3674, %v4089
  %v4429 = vsub.f32 %v3675, %v4092
  %v4430 = vsub.f32 %v3676, %v4095
  %v4431 = vsub.f32 %v3677, %v4098
  %v4432 = vsub.f32 %v3678, %v4101
  %v4433 = vsub.f32 %v3679, %v4104
  %v4434 = vsub.f32 %v3680, %v4107
  %v4435 = vsub.f32 %v3681, %v4110
  %v4436 = vsub.f32 %v3682, %v4113
  %v4437 = vsub.f32 %v3683, %v4116
  %v4438 = vsub.f32 %v3684, %v4119
  %v4439 = vsub.f32 %v3685, %v4122
  %v4440 = vsub.f32 %v3686, %v4125
  %v4441 = vsub.f32 %v3687, %v4128
  %v4442 = vsub.f32 %v3688, %v4131
  %v4443 = vsub.f32 %v3689, %v4134
  %v4444 = vsub.f32 %v3690, %v4137
  %v4445 = vsub.f32 %v3691, %v4140
  %v4446 = vsub.f32 %v3692, %v4143
  %v4447 = vsub.f32 %v3693, %v4146
  %v4448 = vsub.f32 %v3694, %v4149
  %v4449 = vsub.f32 %v3695, %v4152
  %v4450 = vsub.f32 %v3696, %v4155
  %v4451 = vsub.f32 %v3697, %v4158
  %v4452 = vsub.f32 %v3698, %v4161
  %v4453 = vsub.f32 %v3699, %v4164
  %v4454 = vsub.f32 %v3700, %v4167
  %v4455 = vsub.f32 %v3701, %v4170
  %v4456 = vsub.f32 %v3702, %v4173
  %v4457 = vsub.f32 %v3703, %v4176
  %v4458 = vsub.f32 %v3704, %v4179
  %v4459 = vsub.f32 %v3705, %v4182
  %v4460 = vsub.f32 %v3706, %v4185
  %v4461 = vsub.f32 %v3707, %v4188
  %v4462 = vsub.f32 %v3708, %v4191
  %v4463 = vsub.f32 %v3709, %v4194
  %v4464 = vsub.f32 %v3710, %v4197
  %v4465 = vsub.f32 %v3711, %v4200
  %v4466 = vsub.f32 %v3712, %v4203
  %v4467 = vsub.f32 %v3713, %v4206
  %v4468 = vsub.f32 %v3714, %v4209
  %v4469 = vsub.f32 %v3715, %v4212
  %v4470 = vsub.f32 %v3716, %v4215
  %v4471 = vsub.f32 %v3717, %v4218
  %v4472 = vsub.f32 %v3718, %v4221
  %v4473 = vsub.f32 %v3719, %v4224
  %v4474 = vsub.f32 %v3720, %v4227
  %v4475 = vsub.f32 %v3721, %v4230
  %v4476 = vsub.f32 %v3722, %v4233
  %v4477 = vsub.f32 %v3723, %v4236
  %v4478 = vsub.f32 %v3724, %v4239
  %v4479 = vsub.f32 %v3725, %v4242
  %v4480 = vsub.f32 %v3726, %v4245
  %v4481 = vsub.f32 %v3727, %v4248
  %v4482 = vsub.f32 %v3728, %v4251
  %v4483 = vsub.f32 %v3729, %v4254
  %v4484 = vsub.f32 %v3730, %v4257
  %v4485 = vsub.f32 %v3731, %v4260
  %v4486 = vsub.f32 %v3732, %v4263
  %v4487 = vsub.f32 %v3733, %v4266
  %v4488 = vsub.f32 %v3734, %v4269
  %v4489 = vsub.f32 %v3735, %v4272
  %v4490 = vsub.f32 %v3736, %v4275
  %v4491 = vsub.f32 %v3737, %v4278
  %v4492 = vsub.f32 %v3738, %v4281
  %v4493 = vsub.f32 %v3739, %v4284
  %v4494 = vsub.f32 %v3740, %v4287
  %v4495 = vsub.f32 %v3741, %v4290
  %v4496 = vsub.f32 %v3742, %v4293
  %v4497 = vsub.f32 %v3743, %v4296
  %v4498 = vsub.f32 %v3744, %v4299
  %v4499 = vsub.f32 %v3745, %v4302
  %v4500 = vsub.f32 %v3746, %v4305
  %v4501 = vsub.f32 %v3747, %v4308
  %v4502 = vsub.f32 %v3748, %v4311
  %v4503 = vsub.f32 %v3749, %v4315
  %v4504 = vmul.f32 %v4316, 1.442695
  %v4505 = vpow.pop %v4504
  %v4506 = vmul.f32 %v4317, 1.442695
  %v4507 = vpow.pop %v4506
  %v4508 = vmul.f32 %v4318, 1.442695
  %v4509 = vpow.pop %v4508
  %v4510 = vmul.f32 %v4319, 1.442695
  %v4511 = vpow.pop %v4510
  %v4512 = vmul.f32 %v4320, 1.442695
  %v4513 = vpow.pop %v4512
  %v4514 = vmul.f32 %v4321, 1.442695
  %v4515 = vpow.pop %v4514
  %v4516 = vmul.f32 %v4322, 1.442695
  %v4517 = vpow.pop %v4516
  %v4518 = vmul.f32 %v4323, 1.442695
  %v4519 = vpow.pop %v4518
  %v4520 = vmul.f32 %v4324, 1.442695
  %v4521 = vpow.pop %v4520
  %v4522 = vmul.f32 %v4325, 1.442695
  %v4523 = vpow.pop %v4522
  %v4524 = vmul.f32 %v4326, 1.442695
  %v4525 = vpow.pop %v4524
  %v4526 = vmul.f32 %v4327, 1.442695
  %v4527 = vpow.pop %v4526
  %v4528 = vmul.f32 %v4328, 1.442695
  %v4529 = vpow.pop %v4528
  %v4530 = vmul.f32 %v4329, 1.442695
  %v4531 = vpow.pop %v4530
  %v4532 = vmul.f32 %v4330, 1.442695
  %v4533 = vpow.pop %v4532
  %v4534 = vmul.f32 %v4331, 1.442695
  %v4535 = vpow.pop %v4534
  %v4536 = vmul.f32 %v4332, 1.442695
  %v4537 = vpow.pop %v4536
  %v4538 = vmul.f32 %v4333, 1.442695
  %v4539 = vpow.pop %v4538
  %v4540 = vmul.f32 %v4334, 1.442695
  %v4541 = vpow.pop %v4540
  %v4542 = vmul.f32 %v4335, 1.442695
  %v4543 = vpow.pop %v4542
  %v4544 = vmul.f32 %v4336, 1.442695
  %v4545 = vpow.pop %v4544
  %v4546 = vmul.f32 %v4337, 1.442695
  %v4547 = vpow.pop %v4546
  %v4548 = vmul.f32 %v4338, 1.442695
  %v4549 = vpow.pop %v4548
  %v4550 = vmul.f32 %v4339, 1.442695
  %v4551 = vpow.pop %v4550
  %v4552 = vmul.f32 %v4340, 1.442695
  %v4553 = vpow.pop %v4552
  %v4554 = vmul.f32 %v4341, 1.442695
  %v4555 = vpow.pop %v4554
  %v4556 = vmul.f32 %v4342, 1.442695
  %v4557 = vpow.pop %v4556
  %v4558 = vmul.f32 %v4343, 1.442695
  %v4559 = vpow.pop %v4558
  %v4560 = vmul.f32 %v4344, 1.442695
  %v4561 = vpow.pop %v4560
  %v4562 = vmul.f32 %v4345, 1.442695
  %v4563 = vpow.pop %v4562
  %v4564 = vmul.f32 %v4346, 1.442695
  %v4565 = vpow.pop %v4564
  %v4566 = vmul.f32 %v4347, 1.442695
  %v4567 = vpow.pop %v4566
  %v4568 = vmul.f32 %v4348, 1.442695
  %v4569 = vpow.pop %v4568
  %v4570 = vmul.f32 %v4349, 1.442695
  %v4571 = vpow.pop %v4570
  %v4572 = vmul.f32 %v4350, 1.442695
  %v4573 = vpow.pop %v4572
  %v4574 = vmul.f32 %v4351, 1.442695
  %v4575 = vpow.pop %v4574
  %v4576 = vmul.f32 %v4352, 1.442695
  %v4577 = vpow.pop %v4576
  %v4578 = vmul.f32 %v4353, 1.442695
  %v4579 = vpow.pop %v4578
  %v4580 = vmul.f32 %v4354, 1.442695
  %v4581 = vpow.pop %v4580
  %v4582 = vmul.f32 %v4355, 1.442695
  %v4583 = vpow.pop %v4582
  %v4584 = vmul.f32 %v4356, 1.442695
  %v4585 = vpow.pop %v4584
  %v4586 = vmul.f32 %v4357, 1.442695
  %v4587 = vpow.pop %v4586
  %v4588 = vmul.f32 %v4358, 1.442695
  %v4589 = vpow.pop %v4588
  %v4590 = vmul.f32 %v4359, 1.442695
  %v4591 = vpow.pop %v4590
  %v4592 = vmul.f32 %v4360, 1.442695
  %v4593 = vpow.pop %v4592
  %v4594 = vmul.f32 %v4361, 1.442695
  %v4595 = vpow.pop %v4594
  %v4596 = vmul.f32 %v4362, 1.442695
  %v4597 = vpow.pop %v4596
  %v4598 = vmul.f32 %v4363, 1.442695
  %v4599 = vpow.pop %v4598
  %v4600 = vmul.f32 %v4364, 1.442695
  %v4601 = vpow.pop %v4600
  %v4602 = vmul.f32 %v4365, 1.442695
  %v4603 = vpow.pop %v4602
  %v4604 = vmul.f32 %v4366, 1.442695
  %v4605 = vpow.pop %v4604
  %v4606 = vmul.f32 %v4367, 1.442695
  %v4607 = vpow.pop %v4606
  %v4608 = vmul.f32 %v4368, 1.442695
  %v4609 = vpow.pop %v4608
  %v4610 = vmul.f32 %v4369, 1.442695
  %v4611 = vpow.pop %v4610
  %v4612 = vmul.f32 %v4370, 1.442695
  %v4613 = vpow.pop %v4612
  %v4614 = vmul.f32 %v4371, 1.442695
  %v4615 = vpow.pop %v4614
  %v4616 = vmul.f32 %v4372, 1.442695
  %v4617 = vpow.pop %v4616
  %v4618 = vmul.f32 %v4373, 1.442695
  %v4619 = vpow.pop %v4618
  %v4620 = vmul.f32 %v4374, 1.442695
  %v4621 = vpow.pop %v4620
  %v4622 = vmul.f32 %v4375, 1.442695
  %v4623 = vpow.pop %v4622
  %v4624 = vmul.f32 %v4376, 1.442695
  %v4625 = vpow.pop %v4624
  %v4626 = vmul.f32 %v4377, 1.442695
  %v4627 = vpow.pop %v4626
  %v4628 = vmul.f32 %v4378, 1.442695
  %v4629 = vpow.pop %v4628
  %v4630 = vmul.f32 %v4379, 1.442695
  %v4631 = vpow.pop %v4630
  %v4632 = vmul.f32 %v4380, 1.442695
  %v4633 = vpow.pop %v4632
  %v4634 = vmul.f32 %v4381, 1.442695
  %v4635 = vpow.pop %v4634
  %v4636 = vmul.f32 %v4382, 1.442695
  %v4637 = vpow.pop %v4636
  %v4638 = vmul.f32 %v4383, 1.442695
  %v4639 = vpow.pop %v4638
  %v4640 = vmul.f32 %v4384, 1.442695
  %v4641 = vpow.pop %v4640
  %v4642 = vmul.f32 %v4385, 1.442695
  %v4643 = vpow.pop %v4642
  %v4644 = vmul.f32 %v4386, 1.442695
  %v4645 = vpow.pop %v4644
  %v4646 = vmul.f32 %v4387, 1.442695
  %v4647 = vpow.pop %v4646
  %v4648 = vmul.f32 %v4388, 1.442695
  %v4649 = vpow.pop %v4648
  %v4650 = vmul.f32 %v4389, 1.442695
  %v4651 = vpow.pop %v4650
  %v4652 = vmul.f32 %v4390, 1.442695
  %v4653 = vpow.pop %v4652
  %v4654 = vmul.f32 %v4391, 1.442695
  %v4655 = vpow.pop %v4654
  %v4656 = vmul.f32 %v4392, 1.442695
  %v4657 = vpow.pop %v4656
  %v4658 = vmul.f32 %v4393, 1.442695
  %v4659 = vpow.pop %v4658
  %v4660 = vmul.f32 %v4394, 1.442695
  %v4661 = vpow.pop %v4660
  %v4662 = vmul.f32 %v4395, 1.442695
  %v4663 = vpow.pop %v4662
  %v4664 = vmul.f32 %v4396, 1.442695
  %v4665 = vpow.pop %v4664
  %v4666 = vmul.f32 %v4397, 1.442695
  %v4667 = vpow.pop %v4666
  %v4668 = vmul.f32 %v4398, 1.442695
  %v4669 = vpow.pop %v4668
  %v4670 = vmul.f32 %v4399, 1.442695
  %v4671 = vpow.pop %v4670
  %v4672 = vmul.f32 %v4400, 1.442695
  %v4673 = vpow.pop %v4672
  %v4674 = vmul.f32 %v4401, 1.442695
  %v4675 = vpow.pop %v4674
  %v4676 = vmul.f32 %v4402, 1.442695
  %v4677 = vpow.pop %v4676
  %v4678 = vmul.f32 %v4403, 1.442695
  %v4679 = vpow.pop %v4678
  %v4680 = vmul.f32 %v4404, 1.442695
  %v4681 = vpow.pop %v4680
  %v4682 = vmul.f32 %v4405, 1.442695
  %v4683 = vpow.pop %v4682
  %v4684 = vmul.f32 %v4406, 1.442695
  %v4685 = vpow.pop %v4684
  %v4686 = vmul.f32 %v4407, 1.442695
  %v4687 = vpow.pop %v4686
  %v4688 = vmul.f32 %v4408, 1.442695
  %v4689 = vpow.pop %v4688
  %v4690 = vmul.f32 %v4409, 1.442695
  %v4691 = vpow.pop %v4690
  %v4692 = vmul.f32 %v4410, 1.442695
  %v4693 = vpow.pop %v4692
  %v4694 = vmul.f32 %v4411, 1.442695
  %v4695 = vpow.pop %v4694
  %v4696 = vmul.f32 %v4412, 1.442695
  %v4697 = vpow.pop %v4696
  %v4698 = vmul.f32 %v4413, 1.442695
  %v4699 = vpow.pop %v4698
  %v4700 = vmul.f32 %v4414, 1.442695
  %v4701 = vpow.pop %v4700
  %v4702 = vmul.f32 %v4415, 1.442695
  %v4703 = vpow.pop %v4702
  %v4704 = vmul.f32 %v4416, 1.442695
  %v4705 = vpow.pop %v4704
  %v4706 = vmul.f32 %v4417, 1.442695
  %v4707 = vpow.pop %v4706
  %v4708 = vmul.f32 %v4418, 1.442695
  %v4709 = vpow.pop %v4708
  %v4710 = vmul.f32 %v4419, 1.442695
  %v4711 = vpow.pop %v4710
  %v4712 = vmul.f32 %v4420, 1.442695
  %v4713 = vpow.pop %v4712
  %v4714 = vmul.f32 %v4421, 1.442695
  %v4715 = vpow.pop %v4714
  %v4716 = vmul.f32 %v4422, 1.442695
  %v4717 = vpow.pop %v4716
  %v4718 = vmul.f32 %v4423, 1.442695
  %v4719 = vpow.pop %v4718
  %v4720 = vmul.f32 %v4424, 1.442695
  %v4721 = vpow.pop %v4720
  %v4722 = vmul.f32 %v4425, 1.442695
  %v4723 = vpow.pop %v4722
  %v4724 = vmul.f32 %v4426, 1.442695
  %v4725 = vpow.pop %v4724
  %v4726 = vmul.f32 %v4427, 1.442695
  %v4727 = vpow.pop %v4726
  %v4728 = vmul.f32 %v4428, 1.442695
  %v4729 = vpow.pop %v4728
  %v4730 = vmul.f32 %v4429, 1.442695
  %v4731 = vpow.pop %v4730
  %v4732 = vmul.f32 %v4430, 1.442695
  %v4733 = vpow.pop %v4732
  %v4734 = vmul.f32 %v4431, 1.442695
  %v4735 = vpow.pop %v4734
  %v4736 = vmul.f32 %v4432, 1.442695
  %v4737 = vpow.pop %v4736
  %v4738 = vmul.f32 %v4433, 1.442695
  %v4739 = vpow.pop %v4738
  %v4740 = vmul.f32 %v4434, 1.442695
  %v4741 = vpow.pop %v4740
  %v4742 = vmul.f32 %v4435, 1.442695
  %v4743 = vpow.pop %v4742
  %v4744 = vmul.f32 %v4436, 1.442695
  %v4745 = vpow.pop %v4744
  %v4746 = vmul.f32 %v4437, 1.442695
  %v4747 = vpow.pop %v4746
  %v4748 = vmul.f32 %v4438, 1.442695
  %v4749 = vpow.pop %v4748
  %v4750 = vmul.f32 %v4439, 1.442695
  %v4751 = vpow.pop %v4750
  %v4752 = vmul.f32 %v4440, 1.442695
  %v4753 = vpow.pop %v4752
  %v4754 = vmul.f32 %v4441, 1.442695
  %v4755 = vpow.pop %v4754
  %v4756 = vmul.f32 %v4442, 1.442695
  %v4757 = vpow.pop %v4756
  %v4758 = vmul.f32 %v4443, 1.442695
  %v4759 = vpow.pop %v4758
  %v4760 = vmul.f32 %v4444, 1.442695
  %v4761 = vpow.pop %v4760
  %v4762 = vmul.f32 %v4445, 1.442695
  %v4763 = vpow.pop %v4762
  %v4764 = vmul.f32 %v4446, 1.442695
  %v4765 = vpow.pop %v4764
  %v4766 = vmul.f32 %v4447, 1.442695
  %v4767 = vpow.pop %v4766
  %v4768 = vmul.f32 %v4448, 1.442695
  %v4769 = vpow.pop %v4768
  %v4770 = vmul.f32 %v4449, 1.442695
  %v4771 = vpow.pop %v4770
  %v4772 = vmul.f32 %v4450, 1.442695
  %v4773 = vpow.pop %v4772
  %v4774 = vmul.f32 %v4451, 1.442695
  %v4775 = vpow.pop %v4774
  %v4776 = vmul.f32 %v4452, 1.442695
  %v4777 = vpow.pop %v4776
  %v4778 = vmul.f32 %v4453, 1.442695
  %v4779 = vpow.pop %v4778
  %v4780 = vmul.f32 %v4454, 1.442695
  %v4781 = vpow.pop %v4780
  %v4782 = vmul.f32 %v4455, 1.442695
  %v4783 = vpow.pop %v4782
  %v4784 = vmul.f32 %v4456, 1.442695
  %v4785 = vpow.pop %v4784
  %v4786 = vmul.f32 %v4457, 1.442695
  %v4787 = vpow.pop %v4786
  %v4788 = vmul.f32 %v4458, 1.442695
  %v4789 = vpow.pop %v4788
  %v4790 = vmul.f32 %v4459, 1.442695
  %v4791 = vpow.pop %v4790
  %v4792 = vmul.f32 %v4460, 1.442695
  %v4793 = vpow.pop %v4792
  %v4794 = vmul.f32 %v4461, 1.442695
  %v4795 = vpow.pop %v4794
  %v4796 = vmul.f32 %v4462, 1.442695
  %v4797 = vpow.pop %v4796
  %v4798 = vmul.f32 %v4463, 1.442695
  %v4799 = vpow.pop %v4798
  %v4800 = vmul.f32 %v4464, 1.442695
  %v4801 = vpow.pop %v4800
  %v4802 = vmul.f32 %v4465, 1.442695
  %v4803 = vpow.pop %v4802
  %v4804 = vmul.f32 %v4466, 1.442695
  %v4805 = vpow.pop %v4804
  %v4806 = vmul.f32 %v4467, 1.442695
  %v4807 = vpow.pop %v4806
  %v4808 = vmul.f32 %v4468, 1.442695
  %v4809 = vpow.pop %v4808
  %v4810 = vmul.f32 %v4469, 1.442695
  %v4811 = vpow.pop %v4810
  %v4812 = vmul.f32 %v4470, 1.442695
  %v4813 = vpow.pop %v4812
  %v4814 = vmul.f32 %v4471, 1.442695
  %v4815 = vpow.pop %v4814
  %v4816 = vmul.f32 %v4472, 1.442695
  %v4817 = vpow.pop %v4816
  %v4818 = vmul.f32 %v4473, 1.442695
  %v4819 = vpow.pop %v4818
  %v4820 = vmul.f32 %v4474, 1.442695
  %v4821 = vpow.pop %v4820
  %v4822 = vmul.f32 %v4475, 1.442695
  %v4823 = vpow.pop %v4822
  %v4824 = vmul.f32 %v4476, 1.442695
  %v4825 = vpow.pop %v4824
  %v4826 = vmul.f32 %v4477, 1.442695
  %v4827 = vpow.pop %v4826
  %v4828 = vmul.f32 %v4478, 1.442695
  %v4829 = vpow.pop %v4828
  %v4830 = vmul.f32 %v4479, 1.442695
  %v4831 = vpow.pop %v4830
  %v4832 = vmul.f32 %v4480, 1.442695
  %v4833 = vpow.pop %v4832
  %v4834 = vmul.f32 %v4481, 1.442695
  %v4835 = vpow.pop %v4834
  %v4836 = vmul.f32 %v4482, 1.442695
  %v4837 = vpow.pop %v4836
  %v4838 = vmul.f32 %v4483, 1.442695
  %v4839 = vpow.pop %v4838
  %v4840 = vmul.f32 %v4484, 1.442695
  %v4841 = vpow.pop %v4840
  %v4842 = vmul.f32 %v4485, 1.442695
  %v4843 = vpow.pop %v4842
  %v4844 = vmul.f32 %v4486, 1.442695
  %v4845 = vpow.pop %v4844
  %v4846 = vmul.f32 %v4487, 1.442695
  %v4847 = vpow.pop %v4846
  %v4848 = vmul.f32 %v4488, 1.442695
  %v4849 = vpow.pop %v4848
  %v4850 = vmul.f32 %v4489, 1.442695
  %v4851 = vpow.pop %v4850
  %v4852 = vmul.f32 %v4490, 1.442695
  %v4853 = vpow.pop %v4852
  %v4854 = vmul.f32 %v4491, 1.442695
  %v4855 = vpow.pop %v4854
  %v4856 = vmul.f32 %v4492, 1.442695
  %v4857 = vpow.pop %v4856
  %v4858 = vmul.f32 %v4493, 1.442695
  %v4859 = vpow.pop %v4858
  %v4860 = vmul.f32 %v4494, 1.442695
  %v4861 = vpow.pop %v4860
  %v4862 = vmul.f32 %v4495, 1.442695
  %v4863 = vpow.pop %v4862
  %v4864 = vmul.f32 %v4496, 1.442695
  %v4865 = vpow.pop %v4864
  %v4866 = vmul.f32 %v4497, 1.442695
  %v4867 = vpow.pop %v4866
  %v4868 = vmul.f32 %v4498, 1.442695
  %v4869 = vpow.pop %v4868
  %v4870 = vmul.f32 %v4499, 1.442695
  %v4871 = vpow.pop %v4870
  %v4872 = vmul.f32 %v4500, 1.442695
  %v4873 = vpow.pop %v4872
  %v4874 = vmul.f32 %v4501, 1.442695
  %v4875 = vpow.pop %v4874
  %v4876 = vmul.f32 %v4502, 1.442695
  %v4877 = vpow.pop %v4876
  %v4878 = vmul.f32 %v4503, 1.442695
  %v4879 = vpow.pop %v4878
  %v4880 = vsel %vm3750, %v4505, 0.0
  %4881 = vadd.xlane.f32.xlu0 %v4880
  %v4882 = vpop.xlane.xlu0 %4881
  %v4883 = vsel %vm3750, %v4507, 0.0
  %4884 = vadd.xlane.f32.xlu0 %v4883
  %v4885 = vpop.xlane.xlu0 %4884
  %v4886 = vsel %vm3750, %v4509, 0.0
  %4887 = vadd.xlane.f32.xlu0 %v4886
  %v4888 = vpop.xlane.xlu0 %4887
  %v4889 = vsel %vm3750, %v4511, 0.0
  %4890 = vadd.xlane.f32.xlu0 %v4889
  %v4891 = vpop.xlane.xlu0 %4890
  %v4892 = vsel %vm3750, %v4513, 0.0
  %4893 = vadd.xlane.f32.xlu0 %v4892
  %v4894 = vpop.xlane.xlu0 %4893
  %v4895 = vsel %vm3750, %v4515, 0.0
  %4896 = vadd.xlane.f32.xlu0 %v4895
  %v4897 = vpop.xlane.xlu0 %4896
  %v4898 = vsel %vm3750, %v4517, 0.0
  %4899 = vadd.xlane.f32.xlu0 %v4898
  %v4900 = vpop.xlane.xlu0 %4899
  %v4901 = vsel %vm3750, %v4519, 0.0
  %4902 = vadd.xlane.f32.xlu0 %v4901
  %v4903 = vpop.xlane.xlu0 %4902
  %v4904 = vsel %vm3750, %v4521, 0.0
  %4905 = vadd.xlane.f32.xlu0 %v4904
  %v4906 = vpop.xlane.xlu0 %4905
  %v4907 = vsel %vm3750, %v4523, 0.0
  %4908 = vadd.xlane.f32.xlu0 %v4907
  %v4909 = vpop.xlane.xlu0 %4908
  %v4910 = vsel %vm3750, %v4525, 0.0
  %4911 = vadd.xlane.f32.xlu0 %v4910
  %v4912 = vpop.xlane.xlu0 %4911
  %v4913 = vsel %vm3750, %v4527, 0.0
  %4914 = vadd.xlane.f32.xlu0 %v4913
  %v4915 = vpop.xlane.xlu0 %4914
  %v4916 = vsel %vm3750, %v4529, 0.0
  %4917 = vadd.xlane.f32.xlu0 %v4916
  %v4918 = vpop.xlane.xlu0 %4917
  %v4919 = vsel %vm3750, %v4531, 0.0
  %4920 = vadd.xlane.f32.xlu0 %v4919
  %v4921 = vpop.xlane.xlu0 %4920
  %v4922 = vsel %vm3750, %v4533, 0.0
  %4923 = vadd.xlane.f32.xlu0 %v4922
  %v4924 = vpop.xlane.xlu0 %4923
  %v4925 = vsel %vm3750, %v4535, 0.0
  %4926 = vadd.xlane.f32.xlu0 %v4925
  %v4927 = vpop.xlane.xlu0 %4926
  %v4928 = vsel %vm3750, %v4537, 0.0
  %4929 = vadd.xlane.f32.xlu0 %v4928
  %v4930 = vpop.xlane.xlu0 %4929
  %v4931 = vsel %vm3750, %v4539, 0.0
  %4932 = vadd.xlane.f32.xlu0 %v4931
  %v4933 = vpop.xlane.xlu0 %4932
  %v4934 = vsel %vm3750, %v4541, 0.0
  %4935 = vadd.xlane.f32.xlu0 %v4934
  %v4936 = vpop.xlane.xlu0 %4935
  %v4937 = vsel %vm3750, %v4543, 0.0
  %4938 = vadd.xlane.f32.xlu0 %v4937
  %v4939 = vpop.xlane.xlu0 %4938
  %v4940 = vsel %vm3750, %v4545, 0.0
  %4941 = vadd.xlane.f32.xlu0 %v4940
  %v4942 = vpop.xlane.xlu0 %4941
  %v4943 = vsel %vm3750, %v4547, 0.0
  %4944 = vadd.xlane.f32.xlu0 %v4943
  %v4945 = vpop.xlane.xlu0 %4944
  %v4946 = vsel %vm3750, %v4549, 0.0
  %4947 = vadd.xlane.f32.xlu0 %v4946
  %v4948 = vpop.xlane.xlu0 %4947
  %v4949 = vsel %vm3750, %v4551, 0.0
  %4950 = vadd.xlane.f32.xlu0 %v4949
  %v4951 = vpop.xlane.xlu0 %4950
  %v4952 = vsel %vm3750, %v4553, 0.0
  %4953 = vadd.xlane.f32.xlu0 %v4952
  %v4954 = vpop.xlane.xlu0 %4953
  %v4955 = vsel %vm3750, %v4555, 0.0
  %4956 = vadd.xlane.f32.xlu0 %v4955
  %v4957 = vpop.xlane.xlu0 %4956
  %v4958 = vsel %vm3750, %v4557, 0.0
  %4959 = vadd.xlane.f32.xlu0 %v4958
  %v4960 = vpop.xlane.xlu0 %4959
  %v4961 = vsel %vm3750, %v4559, 0.0
  %4962 = vadd.xlane.f32.xlu0 %v4961
  %v4963 = vpop.xlane.xlu0 %4962
  %v4964 = vsel %vm3750, %v4561, 0.0
  %4965 = vadd.xlane.f32.xlu0 %v4964
  %v4966 = vpop.xlane.xlu0 %4965
  %v4967 = vsel %vm3750, %v4563, 0.0
  %4968 = vadd.xlane.f32.xlu0 %v4967
  %v4969 = vpop.xlane.xlu0 %4968
  %v4970 = vsel %vm3750, %v4565, 0.0
  %4971 = vadd.xlane.f32.xlu0 %v4970
  %v4972 = vpop.xlane.xlu0 %4971
  %v4973 = vsel %vm3750, %v4567, 0.0
  %4974 = vadd.xlane.f32.xlu0 %v4973
  %v4975 = vpop.xlane.xlu0 %4974
  %v4976 = vsel %vm3750, %v4569, 0.0
  %4977 = vadd.xlane.f32.xlu0 %v4976
  %v4978 = vpop.xlane.xlu0 %4977
  %v4979 = vsel %vm3750, %v4571, 0.0
  %4980 = vadd.xlane.f32.xlu0 %v4979
  %v4981 = vpop.xlane.xlu0 %4980
  %v4982 = vsel %vm3750, %v4573, 0.0
  %4983 = vadd.xlane.f32.xlu0 %v4982
  %v4984 = vpop.xlane.xlu0 %4983
  %v4985 = vsel %vm3750, %v4575, 0.0
  %4986 = vadd.xlane.f32.xlu0 %v4985
  %v4987 = vpop.xlane.xlu0 %4986
  %v4988 = vsel %vm3750, %v4577, 0.0
  %4989 = vadd.xlane.f32.xlu0 %v4988
  %v4990 = vpop.xlane.xlu0 %4989
  %v4991 = vsel %vm3750, %v4579, 0.0
  %4992 = vadd.xlane.f32.xlu0 %v4991
  %v4993 = vpop.xlane.xlu0 %4992
  %v4994 = vsel %vm3750, %v4581, 0.0
  %4995 = vadd.xlane.f32.xlu0 %v4994
  %v4996 = vpop.xlane.xlu0 %4995
  %v4997 = vsel %vm3750, %v4583, 0.0
  %4998 = vadd.xlane.f32.xlu0 %v4997
  %v4999 = vpop.xlane.xlu0 %4998
  %v5000 = vsel %vm3750, %v4585, 0.0
  %5001 = vadd.xlane.f32.xlu0 %v5000
  %v5002 = vpop.xlane.xlu0 %5001
  %v5003 = vsel %vm3750, %v4587, 0.0
  %5004 = vadd.xlane.f32.xlu0 %v5003
  %v5005 = vpop.xlane.xlu0 %5004
  %v5006 = vsel %vm3750, %v4589, 0.0
  %5007 = vadd.xlane.f32.xlu0 %v5006
  %v5008 = vpop.xlane.xlu0 %5007
  %v5009 = vsel %vm3750, %v4591, 0.0
  %5010 = vadd.xlane.f32.xlu0 %v5009
  %v5011 = vpop.xlane.xlu0 %5010
  %v5012 = vsel %vm3750, %v4593, 0.0
  %5013 = vadd.xlane.f32.xlu0 %v5012
  %v5014 = vpop.xlane.xlu0 %5013
  %v5015 = vsel %vm3750, %v4595, 0.0
  %5016 = vadd.xlane.f32.xlu0 %v5015
  %v5017 = vpop.xlane.xlu0 %5016
  %v5018 = vsel %vm3750, %v4597, 0.0
  %5019 = vadd.xlane.f32.xlu0 %v5018
  %v5020 = vpop.xlane.xlu0 %5019
  %v5021 = vsel %vm3750, %v4599, 0.0
  %5022 = vadd.xlane.f32.xlu0 %v5021
  %v5023 = vpop.xlane.xlu0 %5022
  %v5024 = vsel %vm3750, %v4601, 0.0
  %5025 = vadd.xlane.f32.xlu0 %v5024
  %v5026 = vpop.xlane.xlu0 %5025
  %v5027 = vsel %vm3750, %v4603, 0.0
  %5028 = vadd.xlane.f32.xlu0 %v5027
  %v5029 = vpop.xlane.xlu0 %5028
  %v5030 = vsel %vm3750, %v4605, 0.0
  %5031 = vadd.xlane.f32.xlu0 %v5030
  %v5032 = vpop.xlane.xlu0 %5031
  %v5033 = vsel %vm3750, %v4607, 0.0
  %5034 = vadd.xlane.f32.xlu0 %v5033
  %v5035 = vpop.xlane.xlu0 %5034
  %v5036 = vsel %vm3750, %v4609, 0.0
  %5037 = vadd.xlane.f32.xlu0 %v5036
  %v5038 = vpop.xlane.xlu0 %5037
  %v5039 = vsel %vm3750, %v4611, 0.0
  %5040 = vadd.xlane.f32.xlu0 %v5039
  %v5041 = vpop.xlane.xlu0 %5040
  %v5042 = vsel %vm3750, %v4613, 0.0
  %5043 = vadd.xlane.f32.xlu0 %v5042
  %v5044 = vpop.xlane.xlu0 %5043
  %v5045 = vsel %vm3750, %v4615, 0.0
  %5046 = vadd.xlane.f32.xlu0 %v5045
  %v5047 = vpop.xlane.xlu0 %5046
  %v5048 = vsel %vm3750, %v4617, 0.0
  %5049 = vadd.xlane.f32.xlu0 %v5048
  %v5050 = vpop.xlane.xlu0 %5049
  %v5051 = vsel %vm3750, %v4619, 0.0
  %5052 = vadd.xlane.f32.xlu0 %v5051
  %v5053 = vpop.xlane.xlu0 %5052
  %v5054 = vsel %vm3750, %v4621, 0.0
  %5055 = vadd.xlane.f32.xlu0 %v5054
  %v5056 = vpop.xlane.xlu0 %5055
  %v5057 = vsel %vm3750, %v4623, 0.0
  %5058 = vadd.xlane.f32.xlu0 %v5057
  %v5059 = vpop.xlane.xlu0 %5058
  %v5060 = vsel %vm3750, %v4625, 0.0
  %5061 = vadd.xlane.f32.xlu0 %v5060
  %v5062 = vpop.xlane.xlu0 %5061
  %v5063 = vsel %vm3750, %v4627, 0.0
  %5064 = vadd.xlane.f32.xlu0 %v5063
  %v5065 = vpop.xlane.xlu0 %5064
  %v5066 = vsel %vm3750, %v4629, 0.0
  %5067 = vadd.xlane.f32.xlu0 %v5066
  %v5068 = vpop.xlane.xlu0 %5067
  %v5069 = vsel %vm3750, %v4631, 0.0
  %5070 = vadd.xlane.f32.xlu0 %v5069
  %v5071 = vpop.xlane.xlu0 %5070
  %v5072 = vsel %vm3750, %v4633, 0.0
  %5073 = vadd.xlane.f32.xlu0 %v5072
  %v5074 = vpop.xlane.xlu0 %5073
  %v5075 = vsel %vm3750, %v4635, 0.0
  %5076 = vadd.xlane.f32.xlu0 %v5075
  %v5077 = vpop.xlane.xlu0 %5076
  %v5078 = vsel %vm3750, %v4637, 0.0
  %5079 = vadd.xlane.f32.xlu0 %v5078
  %v5080 = vpop.xlane.xlu0 %5079
  %v5081 = vsel %vm3750, %v4639, 0.0
  %5082 = vadd.xlane.f32.xlu0 %v5081
  %v5083 = vpop.xlane.xlu0 %5082
  %v5084 = vsel %vm3750, %v4641, 0.0
  %5085 = vadd.xlane.f32.xlu0 %v5084
  %v5086 = vpop.xlane.xlu0 %5085
  %v5087 = vsel %vm3750, %v4643, 0.0
  %5088 = vadd.xlane.f32.xlu0 %v5087
  %v5089 = vpop.xlane.xlu0 %5088
  %v5090 = vsel %vm3750, %v4645, 0.0
  %5091 = vadd.xlane.f32.xlu0 %v5090
  %v5092 = vpop.xlane.xlu0 %5091
  %v5093 = vsel %vm3750, %v4647, 0.0
  %5094 = vadd.xlane.f32.xlu0 %v5093
  %v5095 = vpop.xlane.xlu0 %5094
  %v5096 = vsel %vm3750, %v4649, 0.0
  %5097 = vadd.xlane.f32.xlu0 %v5096
  %v5098 = vpop.xlane.xlu0 %5097
  %v5099 = vsel %vm3750, %v4651, 0.0
  %5100 = vadd.xlane.f32.xlu0 %v5099
  %v5101 = vpop.xlane.xlu0 %5100
  %v5102 = vsel %vm3750, %v4653, 0.0
  %5103 = vadd.xlane.f32.xlu0 %v5102
  %v5104 = vpop.xlane.xlu0 %5103
  %v5105 = vsel %vm3750, %v4655, 0.0
  %5106 = vadd.xlane.f32.xlu0 %v5105
  %v5107 = vpop.xlane.xlu0 %5106
  %v5108 = vsel %vm3750, %v4657, 0.0
  %5109 = vadd.xlane.f32.xlu0 %v5108
  %v5110 = vpop.xlane.xlu0 %5109
  %v5111 = vsel %vm3750, %v4659, 0.0
  %5112 = vadd.xlane.f32.xlu0 %v5111
  %v5113 = vpop.xlane.xlu0 %5112
  %v5114 = vsel %vm3750, %v4661, 0.0
  %5115 = vadd.xlane.f32.xlu0 %v5114
  %v5116 = vpop.xlane.xlu0 %5115
  %v5117 = vsel %vm3750, %v4663, 0.0
  %5118 = vadd.xlane.f32.xlu0 %v5117
  %v5119 = vpop.xlane.xlu0 %5118
  %v5120 = vsel %vm3750, %v4665, 0.0
  %5121 = vadd.xlane.f32.xlu0 %v5120
  %v5122 = vpop.xlane.xlu0 %5121
  %v5123 = vsel %vm3750, %v4667, 0.0
  %5124 = vadd.xlane.f32.xlu0 %v5123
  %v5125 = vpop.xlane.xlu0 %5124
  %v5126 = vsel %vm3750, %v4669, 0.0
  %5127 = vadd.xlane.f32.xlu0 %v5126
  %v5128 = vpop.xlane.xlu0 %5127
  %v5129 = vsel %vm3750, %v4671, 0.0
  %5130 = vadd.xlane.f32.xlu0 %v5129
  %v5131 = vpop.xlane.xlu0 %5130
  %v5132 = vsel %vm3750, %v4673, 0.0
  %5133 = vadd.xlane.f32.xlu0 %v5132
  %v5134 = vpop.xlane.xlu0 %5133
  %v5135 = vsel %vm3750, %v4675, 0.0
  %5136 = vadd.xlane.f32.xlu0 %v5135
  %v5137 = vpop.xlane.xlu0 %5136
  %v5138 = vsel %vm3750, %v4677, 0.0
  %5139 = vadd.xlane.f32.xlu0 %v5138
  %v5140 = vpop.xlane.xlu0 %5139
  %v5141 = vsel %vm3750, %v4679, 0.0
  %5142 = vadd.xlane.f32.xlu0 %v5141
  %v5143 = vpop.xlane.xlu0 %5142
  %v5144 = vsel %vm3750, %v4681, 0.0
  %5145 = vadd.xlane.f32.xlu0 %v5144
  %v5146 = vpop.xlane.xlu0 %5145
  %v5147 = vsel %vm3750, %v4683, 0.0
  %5148 = vadd.xlane.f32.xlu0 %v5147
  %v5149 = vpop.xlane.xlu0 %5148
  %v5150 = vsel %vm3750, %v4685, 0.0
  %5151 = vadd.xlane.f32.xlu0 %v5150
  %v5152 = vpop.xlane.xlu0 %5151
  %v5153 = vsel %vm3750, %v4687, 0.0
  %5154 = vadd.xlane.f32.xlu0 %v5153
  %v5155 = vpop.xlane.xlu0 %5154
  %v5156 = vsel %vm3750, %v4689, 0.0
  %5157 = vadd.xlane.f32.xlu0 %v5156
  %v5158 = vpop.xlane.xlu0 %5157
  %v5159 = vsel %vm3750, %v4691, 0.0
  %5160 = vadd.xlane.f32.xlu0 %v5159
  %v5161 = vpop.xlane.xlu0 %5160
  %v5162 = vsel %vm3750, %v4693, 0.0
  %5163 = vadd.xlane.f32.xlu0 %v5162
  %v5164 = vpop.xlane.xlu0 %5163
  %v5165 = vsel %vm3750, %v4695, 0.0
  %5166 = vadd.xlane.f32.xlu0 %v5165
  %v5167 = vpop.xlane.xlu0 %5166
  %v5168 = vsel %vm3750, %v4697, 0.0
  %5169 = vadd.xlane.f32.xlu0 %v5168
  %v5170 = vpop.xlane.xlu0 %5169
  %v5171 = vsel %vm3750, %v4699, 0.0
  %5172 = vadd.xlane.f32.xlu0 %v5171
  %v5173 = vpop.xlane.xlu0 %5172
  %v5174 = vsel %vm3750, %v4701, 0.0
  %5175 = vadd.xlane.f32.xlu0 %v5174
  %v5176 = vpop.xlane.xlu0 %5175
  %v5177 = vsel %vm3750, %v4703, 0.0
  %5178 = vadd.xlane.f32.xlu0 %v5177
  %v5179 = vpop.xlane.xlu0 %5178
  %v5180 = vsel %vm3750, %v4705, 0.0
  %5181 = vadd.xlane.f32.xlu0 %v5180
  %v5182 = vpop.xlane.xlu0 %5181
  %v5183 = vsel %vm3750, %v4707, 0.0
  %5184 = vadd.xlane.f32.xlu0 %v5183
  %v5185 = vpop.xlane.xlu0 %5184
  %v5186 = vsel %vm3750, %v4709, 0.0
  %5187 = vadd.xlane.f32.xlu0 %v5186
  %v5188 = vpop.xlane.xlu0 %5187
  %v5189 = vsel %vm3750, %v4711, 0.0
  %5190 = vadd.xlane.f32.xlu0 %v5189
  %v5191 = vpop.xlane.xlu0 %5190
  %v5192 = vsel %vm3750, %v4713, 0.0
  %5193 = vadd.xlane.f32.xlu0 %v5192
  %v5194 = vpop.xlane.xlu0 %5193
  %v5195 = vsel %vm3750, %v4715, 0.0
  %5196 = vadd.xlane.f32.xlu0 %v5195
  %v5197 = vpop.xlane.xlu0 %5196
  %v5198 = vsel %vm3750, %v4717, 0.0
  %5199 = vadd.xlane.f32.xlu0 %v5198
  %v5200 = vpop.xlane.xlu0 %5199
  %v5201 = vsel %vm3750, %v4719, 0.0
  %5202 = vadd.xlane.f32.xlu0 %v5201
  %v5203 = vpop.xlane.xlu0 %5202
  %v5204 = vsel %vm3750, %v4721, 0.0
  %5205 = vadd.xlane.f32.xlu0 %v5204
  %v5206 = vpop.xlane.xlu0 %5205
  %v5207 = vsel %vm3750, %v4723, 0.0
  %5208 = vadd.xlane.f32.xlu0 %v5207
  %v5209 = vpop.xlane.xlu0 %5208
  %v5210 = vsel %vm3750, %v4725, 0.0
  %5211 = vadd.xlane.f32.xlu0 %v5210
  %v5212 = vpop.xlane.xlu0 %5211
  %v5213 = vsel %vm3750, %v4727, 0.0
  %5214 = vadd.xlane.f32.xlu0 %v5213
  %v5215 = vpop.xlane.xlu0 %5214
  %v5216 = vsel %vm3750, %v4729, 0.0
  %5217 = vadd.xlane.f32.xlu0 %v5216
  %v5218 = vpop.xlane.xlu0 %5217
  %v5219 = vsel %vm3750, %v4731, 0.0
  %5220 = vadd.xlane.f32.xlu0 %v5219
  %v5221 = vpop.xlane.xlu0 %5220
  %v5222 = vsel %vm3750, %v4733, 0.0
  %5223 = vadd.xlane.f32.xlu0 %v5222
  %v5224 = vpop.xlane.xlu0 %5223
  %v5225 = vsel %vm3750, %v4735, 0.0
  %5226 = vadd.xlane.f32.xlu0 %v5225
  %v5227 = vpop.xlane.xlu0 %5226
  %v5228 = vsel %vm3750, %v4737, 0.0
  %5229 = vadd.xlane.f32.xlu0 %v5228
  %v5230 = vpop.xlane.xlu0 %5229
  %v5231 = vsel %vm3750, %v4739, 0.0
  %5232 = vadd.xlane.f32.xlu0 %v5231
  %v5233 = vpop.xlane.xlu0 %5232
  %v5234 = vsel %vm3750, %v4741, 0.0
  %5235 = vadd.xlane.f32.xlu0 %v5234
  %v5236 = vpop.xlane.xlu0 %5235
  %v5237 = vsel %vm3750, %v4743, 0.0
  %5238 = vadd.xlane.f32.xlu0 %v5237
  %v5239 = vpop.xlane.xlu0 %5238
  %v5240 = vsel %vm3750, %v4745, 0.0
  %5241 = vadd.xlane.f32.xlu0 %v5240
  %v5242 = vpop.xlane.xlu0 %5241
  %v5243 = vsel %vm3750, %v4747, 0.0
  %5244 = vadd.xlane.f32.xlu0 %v5243
  %v5245 = vpop.xlane.xlu0 %5244
  %v5246 = vsel %vm3750, %v4749, 0.0
  %5247 = vadd.xlane.f32.xlu0 %v5246
  %v5248 = vpop.xlane.xlu0 %5247
  %v5249 = vsel %vm3750, %v4751, 0.0
  %5250 = vadd.xlane.f32.xlu0 %v5249
  %v5251 = vpop.xlane.xlu0 %5250
  %v5252 = vsel %vm3750, %v4753, 0.0
  %5253 = vadd.xlane.f32.xlu0 %v5252
  %v5254 = vpop.xlane.xlu0 %5253
  %v5255 = vsel %vm3750, %v4755, 0.0
  %5256 = vadd.xlane.f32.xlu0 %v5255
  %v5257 = vpop.xlane.xlu0 %5256
  %v5258 = vsel %vm3750, %v4757, 0.0
  %5259 = vadd.xlane.f32.xlu0 %v5258
  %v5260 = vpop.xlane.xlu0 %5259
  %v5261 = vsel %vm3750, %v4759, 0.0
  %5262 = vadd.xlane.f32.xlu0 %v5261
  %v5263 = vpop.xlane.xlu0 %5262
  %v5264 = vsel %vm3750, %v4761, 0.0
  %5265 = vadd.xlane.f32.xlu0 %v5264
  %v5266 = vpop.xlane.xlu0 %5265
  %v5267 = vsel %vm3750, %v4763, 0.0
  %5268 = vadd.xlane.f32.xlu0 %v5267
  %v5269 = vpop.xlane.xlu0 %5268
  %v5270 = vsel %vm3750, %v4765, 0.0
  %5271 = vadd.xlane.f32.xlu0 %v5270
  %v5272 = vpop.xlane.xlu0 %5271
  %v5273 = vsel %vm3750, %v4767, 0.0
  %5274 = vadd.xlane.f32.xlu0 %v5273
  %v5275 = vpop.xlane.xlu0 %5274
  %v5276 = vsel %vm3750, %v4769, 0.0
  %5277 = vadd.xlane.f32.xlu0 %v5276
  %v5278 = vpop.xlane.xlu0 %5277
  %v5279 = vsel %vm3750, %v4771, 0.0
  %5280 = vadd.xlane.f32.xlu0 %v5279
  %v5281 = vpop.xlane.xlu0 %5280
  %v5282 = vsel %vm3750, %v4773, 0.0
  %5283 = vadd.xlane.f32.xlu0 %v5282
  %v5284 = vpop.xlane.xlu0 %5283
  %v5285 = vsel %vm3750, %v4775, 0.0
  %5286 = vadd.xlane.f32.xlu0 %v5285
  %v5287 = vpop.xlane.xlu0 %5286
  %v5288 = vsel %vm3750, %v4777, 0.0
  %5289 = vadd.xlane.f32.xlu0 %v5288
  %v5290 = vpop.xlane.xlu0 %5289
  %v5291 = vsel %vm3750, %v4779, 0.0
  %5292 = vadd.xlane.f32.xlu0 %v5291
  %v5293 = vpop.xlane.xlu0 %5292
  %v5294 = vsel %vm3750, %v4781, 0.0
  %5295 = vadd.xlane.f32.xlu0 %v5294
  %v5296 = vpop.xlane.xlu0 %5295
  %v5297 = vsel %vm3750, %v4783, 0.0
  %5298 = vadd.xlane.f32.xlu0 %v5297
  %v5299 = vpop.xlane.xlu0 %5298
  %v5300 = vsel %vm3750, %v4785, 0.0
  %5301 = vadd.xlane.f32.xlu0 %v5300
  %v5302 = vpop.xlane.xlu0 %5301
  %v5303 = vsel %vm3750, %v4787, 0.0
  %5304 = vadd.xlane.f32.xlu0 %v5303
  %v5305 = vpop.xlane.xlu0 %5304
  %v5306 = vsel %vm3750, %v4789, 0.0
  %5307 = vadd.xlane.f32.xlu0 %v5306
  %v5308 = vpop.xlane.xlu0 %5307
  %v5309 = vsel %vm3750, %v4791, 0.0
  %5310 = vadd.xlane.f32.xlu0 %v5309
  %v5311 = vpop.xlane.xlu0 %5310
  %v5312 = vsel %vm3750, %v4793, 0.0
  %5313 = vadd.xlane.f32.xlu0 %v5312
  %v5314 = vpop.xlane.xlu0 %5313
  %v5315 = vsel %vm3750, %v4795, 0.0
  %5316 = vadd.xlane.f32.xlu0 %v5315
  %v5317 = vpop.xlane.xlu0 %5316
  %v5318 = vsel %vm3750, %v4797, 0.0
  %5319 = vadd.xlane.f32.xlu0 %v5318
  %v5320 = vpop.xlane.xlu0 %5319
  %v5321 = vsel %vm3750, %v4799, 0.0
  %5322 = vadd.xlane.f32.xlu0 %v5321
  %v5323 = vpop.xlane.xlu0 %5322
  %v5324 = vsel %vm3750, %v4801, 0.0
  %5325 = vadd.xlane.f32.xlu0 %v5324
  %v5326 = vpop.xlane.xlu0 %5325
  %v5327 = vsel %vm3750, %v4803, 0.0
  %5328 = vadd.xlane.f32.xlu0 %v5327
  %v5329 = vpop.xlane.xlu0 %5328
  %v5330 = vsel %vm3750, %v4805, 0.0
  %5331 = vadd.xlane.f32.xlu0 %v5330
  %v5332 = vpop.xlane.xlu0 %5331
  %v5333 = vsel %vm3750, %v4807, 0.0
  %5334 = vadd.xlane.f32.xlu0 %v5333
  %v5335 = vpop.xlane.xlu0 %5334
  %v5336 = vsel %vm3750, %v4809, 0.0
  %5337 = vadd.xlane.f32.xlu0 %v5336
  %v5338 = vpop.xlane.xlu0 %5337
  %v5339 = vsel %vm3750, %v4811, 0.0
  %5340 = vadd.xlane.f32.xlu0 %v5339
  %v5341 = vpop.xlane.xlu0 %5340
  %v5342 = vsel %vm3750, %v4813, 0.0
  %5343 = vadd.xlane.f32.xlu0 %v5342
  %v5344 = vpop.xlane.xlu0 %5343
  %v5345 = vsel %vm3750, %v4815, 0.0
  %5346 = vadd.xlane.f32.xlu0 %v5345
  %v5347 = vpop.xlane.xlu0 %5346
  %v5348 = vsel %vm3750, %v4817, 0.0
  %5349 = vadd.xlane.f32.xlu0 %v5348
  %v5350 = vpop.xlane.xlu0 %5349
  %v5351 = vsel %vm3750, %v4819, 0.0
  %5352 = vadd.xlane.f32.xlu0 %v5351
  %v5353 = vpop.xlane.xlu0 %5352
  %v5354 = vsel %vm3750, %v4821, 0.0
  %5355 = vadd.xlane.f32.xlu0 %v5354
  %v5356 = vpop.xlane.xlu0 %5355
  %v5357 = vsel %vm3750, %v4823, 0.0
  %5358 = vadd.xlane.f32.xlu0 %v5357
  %v5359 = vpop.xlane.xlu0 %5358
  %v5360 = vsel %vm3750, %v4825, 0.0
  %5361 = vadd.xlane.f32.xlu0 %v5360
  %v5362 = vpop.xlane.xlu0 %5361
  %v5363 = vsel %vm3750, %v4827, 0.0
  %5364 = vadd.xlane.f32.xlu0 %v5363
  %v5365 = vpop.xlane.xlu0 %5364
  %v5366 = vsel %vm3750, %v4829, 0.0
  %5367 = vadd.xlane.f32.xlu0 %v5366
  %v5368 = vpop.xlane.xlu0 %5367
  %v5369 = vsel %vm3750, %v4831, 0.0
  %5370 = vadd.xlane.f32.xlu0 %v5369
  %v5371 = vpop.xlane.xlu0 %5370
  %v5372 = vsel %vm3750, %v4833, 0.0
  %5373 = vadd.xlane.f32.xlu0 %v5372
  %v5374 = vpop.xlane.xlu0 %5373
  %v5375 = vsel %vm3750, %v4835, 0.0
  %5376 = vadd.xlane.f32.xlu0 %v5375
  %v5377 = vpop.xlane.xlu0 %5376
  %v5378 = vsel %vm3750, %v4837, 0.0
  %5379 = vadd.xlane.f32.xlu0 %v5378
  %v5380 = vpop.xlane.xlu0 %5379
  %v5381 = vsel %vm3750, %v4839, 0.0
  %5382 = vadd.xlane.f32.xlu0 %v5381
  %v5383 = vpop.xlane.xlu0 %5382
  %v5384 = vsel %vm3750, %v4841, 0.0
  %5385 = vadd.xlane.f32.xlu0 %v5384
  %v5386 = vpop.xlane.xlu0 %5385
  %v5387 = vsel %vm3750, %v4843, 0.0
  %5388 = vadd.xlane.f32.xlu0 %v5387
  %v5389 = vpop.xlane.xlu0 %5388
  %v5390 = vsel %vm3750, %v4845, 0.0
  %5391 = vadd.xlane.f32.xlu0 %v5390
  %v5392 = vpop.xlane.xlu0 %5391
  %v5393 = vsel %vm3750, %v4847, 0.0
  %5394 = vadd.xlane.f32.xlu0 %v5393
  %v5395 = vpop.xlane.xlu0 %5394
  %v5396 = vsel %vm3750, %v4849, 0.0
  %5397 = vadd.xlane.f32.xlu0 %v5396
  %v5398 = vpop.xlane.xlu0 %5397
  %v5399 = vsel %vm3750, %v4851, 0.0
  %5400 = vadd.xlane.f32.xlu0 %v5399
  %v5401 = vpop.xlane.xlu0 %5400
  %v5402 = vsel %vm3750, %v4853, 0.0
  %5403 = vadd.xlane.f32.xlu0 %v5402
  %v5404 = vpop.xlane.xlu0 %5403
  %v5405 = vsel %vm3750, %v4855, 0.0
  %5406 = vadd.xlane.f32.xlu0 %v5405
  %v5407 = vpop.xlane.xlu0 %5406
  %v5408 = vsel %vm3750, %v4857, 0.0
  %5409 = vadd.xlane.f32.xlu0 %v5408
  %v5410 = vpop.xlane.xlu0 %5409
  %v5411 = vsel %vm3750, %v4859, 0.0
  %5412 = vadd.xlane.f32.xlu0 %v5411
  %v5413 = vpop.xlane.xlu0 %5412
  %v5414 = vsel %vm3750, %v4861, 0.0
  %5415 = vadd.xlane.f32.xlu0 %v5414
  %v5416 = vpop.xlane.xlu0 %5415
  %v5417 = vsel %vm3750, %v4863, 0.0
  %5418 = vadd.xlane.f32.xlu0 %v5417
  %v5419 = vpop.xlane.xlu0 %5418
  %v5420 = vsel %vm3750, %v4865, 0.0
  %5421 = vadd.xlane.f32.xlu0 %v5420
  %v5422 = vpop.xlane.xlu0 %5421
  %v5423 = vsel %vm3750, %v4867, 0.0
  %5424 = vadd.xlane.f32.xlu0 %v5423
  %v5425 = vpop.xlane.xlu0 %5424
  %v5426 = vsel %vm3750, %v4869, 0.0
  %5427 = vadd.xlane.f32.xlu0 %v5426
  %v5428 = vpop.xlane.xlu0 %5427
  %v5429 = vsel %vm3750, %v4871, 0.0
  %5430 = vadd.xlane.f32.xlu0 %v5429
  %v5431 = vpop.xlane.xlu0 %5430
  %v5432 = vsel %vm3750, %v4873, 0.0
  %5433 = vadd.xlane.f32.xlu0 %v5432
  %v5434 = vpop.xlane.xlu0 %5433
  %v5435 = vsel %vm3750, %v4875, 0.0
  %5436 = vadd.xlane.f32.xlu0 %v5435
  %v5437 = vpop.xlane.xlu0 %5436
  %v5438 = vsel %vm3750, %v4877, 0.0
  %5439 = vadd.xlane.f32.xlu0 %v5438
  %v5440 = vpop.xlane.xlu0 %5439
  %v5441 = vsel %vm4312, %v4879, 0.0
  %5442 = vadd.xlane.f32.xlu0 %v5441
  %v5443 = vpop.xlane.xlu0 %5442
  %v5444 = vlog2.pop %v4882
  %v5445 = vmul.f32 %v5444, 0.6931472
  %v5446 = vlog2.pop %v4885
  %v5447 = vmul.f32 %v5446, 0.6931472
  %v5448 = vlog2.pop %v4888
  %v5449 = vmul.f32 %v5448, 0.6931472
  %v5450 = vlog2.pop %v4891
  %v5451 = vmul.f32 %v5450, 0.6931472
  %v5452 = vlog2.pop %v4894
  %v5453 = vmul.f32 %v5452, 0.6931472
  %v5454 = vlog2.pop %v4897
  %v5455 = vmul.f32 %v5454, 0.6931472
  %v5456 = vlog2.pop %v4900
  %v5457 = vmul.f32 %v5456, 0.6931472
  %v5458 = vlog2.pop %v4903
  %v5459 = vmul.f32 %v5458, 0.6931472
  %v5460 = vlog2.pop %v4906
  %v5461 = vmul.f32 %v5460, 0.6931472
  %v5462 = vlog2.pop %v4909
  %v5463 = vmul.f32 %v5462, 0.6931472
  %v5464 = vlog2.pop %v4912
  %v5465 = vmul.f32 %v5464, 0.6931472
  %v5466 = vlog2.pop %v4915
  %v5467 = vmul.f32 %v5466, 0.6931472
  %v5468 = vlog2.pop %v4918
  %v5469 = vmul.f32 %v5468, 0.6931472
  %v5470 = vlog2.pop %v4921
  %v5471 = vmul.f32 %v5470, 0.6931472
  %v5472 = vlog2.pop %v4924
  %v5473 = vmul.f32 %v5472, 0.6931472
  %v5474 = vlog2.pop %v4927
  %v5475 = vmul.f32 %v5474, 0.6931472
  %v5476 = vlog2.pop %v4930
  %v5477 = vmul.f32 %v5476, 0.6931472
  %v5478 = vlog2.pop %v4933
  %v5479 = vmul.f32 %v5478, 0.6931472
  %v5480 = vlog2.pop %v4936
  %v5481 = vmul.f32 %v5480, 0.6931472
  %v5482 = vlog2.pop %v4939
  %v5483 = vmul.f32 %v5482, 0.6931472
  %v5484 = vlog2.pop %v4942
  %v5485 = vmul.f32 %v5484, 0.6931472
  %v5486 = vlog2.pop %v4945
  %v5487 = vmul.f32 %v5486, 0.6931472
  %v5488 = vlog2.pop %v4948
  %v5489 = vmul.f32 %v5488, 0.6931472
  %v5490 = vlog2.pop %v4951
  %v5491 = vmul.f32 %v5490, 0.6931472
  %v5492 = vlog2.pop %v4954
  %v5493 = vmul.f32 %v5492, 0.6931472
  %v5494 = vlog2.pop %v4957
  %v5495 = vmul.f32 %v5494, 0.6931472
  %v5496 = vlog2.pop %v4960
  %v5497 = vmul.f32 %v5496, 0.6931472
  %v5498 = vlog2.pop %v4963
  %v5499 = vmul.f32 %v5498, 0.6931472
  %v5500 = vlog2.pop %v4966
  %v5501 = vmul.f32 %v5500, 0.6931472
  %v5502 = vlog2.pop %v4969
  %v5503 = vmul.f32 %v5502, 0.6931472
  %v5504 = vlog2.pop %v4972
  %v5505 = vmul.f32 %v5504, 0.6931472
  %v5506 = vlog2.pop %v4975
  %v5507 = vmul.f32 %v5506, 0.6931472
  %v5508 = vlog2.pop %v4978
  %v5509 = vmul.f32 %v5508, 0.6931472
  %v5510 = vlog2.pop %v4981
  %v5511 = vmul.f32 %v5510, 0.6931472
  %v5512 = vlog2.pop %v4984
  %v5513 = vmul.f32 %v5512, 0.6931472
  %v5514 = vlog2.pop %v4987
  %v5515 = vmul.f32 %v5514, 0.6931472
  %v5516 = vlog2.pop %v4990
  %v5517 = vmul.f32 %v5516, 0.6931472
  %v5518 = vlog2.pop %v4993
  %v5519 = vmul.f32 %v5518, 0.6931472
  %v5520 = vlog2.pop %v4996
  %v5521 = vmul.f32 %v5520, 0.6931472
  %v5522 = vlog2.pop %v4999
  %v5523 = vmul.f32 %v5522, 0.6931472
  %v5524 = vlog2.pop %v5002
  %v5525 = vmul.f32 %v5524, 0.6931472
  %v5526 = vlog2.pop %v5005
  %v5527 = vmul.f32 %v5526, 0.6931472
  %v5528 = vlog2.pop %v5008
  %v5529 = vmul.f32 %v5528, 0.6931472
  %v5530 = vlog2.pop %v5011
  %v5531 = vmul.f32 %v5530, 0.6931472
  %v5532 = vlog2.pop %v5014
  %v5533 = vmul.f32 %v5532, 0.6931472
  %v5534 = vlog2.pop %v5017
  %v5535 = vmul.f32 %v5534, 0.6931472
  %v5536 = vlog2.pop %v5020
  %v5537 = vmul.f32 %v5536, 0.6931472
  %v5538 = vlog2.pop %v5023
  %v5539 = vmul.f32 %v5538, 0.6931472
  %v5540 = vlog2.pop %v5026
  %v5541 = vmul.f32 %v5540, 0.6931472
  %v5542 = vlog2.pop %v5029
  %v5543 = vmul.f32 %v5542, 0.6931472
  %v5544 = vlog2.pop %v5032
  %v5545 = vmul.f32 %v5544, 0.6931472
  %v5546 = vlog2.pop %v5035
  %v5547 = vmul.f32 %v5546, 0.6931472
  %v5548 = vlog2.pop %v5038
  %v5549 = vmul.f32 %v5548, 0.6931472
  %v5550 = vlog2.pop %v5041
  %v5551 = vmul.f32 %v5550, 0.6931472
  %v5552 = vlog2.pop %v5044
  %v5553 = vmul.f32 %v5552, 0.6931472
  %v5554 = vlog2.pop %v5047
  %v5555 = vmul.f32 %v5554, 0.6931472
  %v5556 = vlog2.pop %v5050
  %v5557 = vmul.f32 %v5556, 0.6931472
  %v5558 = vlog2.pop %v5053
  %v5559 = vmul.f32 %v5558, 0.6931472
  %v5560 = vlog2.pop %v5056
  %v5561 = vmul.f32 %v5560, 0.6931472
  %v5562 = vlog2.pop %v5059
  %v5563 = vmul.f32 %v5562, 0.6931472
  %v5564 = vlog2.pop %v5062
  %v5565 = vmul.f32 %v5564, 0.6931472
  %v5566 = vlog2.pop %v5065
  %v5567 = vmul.f32 %v5566, 0.6931472
  %v5568 = vlog2.pop %v5068
  %v5569 = vmul.f32 %v5568, 0.6931472
  %v5570 = vlog2.pop %v5071
  %v5571 = vmul.f32 %v5570, 0.6931472
  %v5572 = vlog2.pop %v5074
  %v5573 = vmul.f32 %v5572, 0.6931472
  %v5574 = vlog2.pop %v5077
  %v5575 = vmul.f32 %v5574, 0.6931472
  %v5576 = vlog2.pop %v5080
  %v5577 = vmul.f32 %v5576, 0.6931472
  %v5578 = vlog2.pop %v5083
  %v5579 = vmul.f32 %v5578, 0.6931472
  %v5580 = vlog2.pop %v5086
  %v5581 = vmul.f32 %v5580, 0.6931472
  %v5582 = vlog2.pop %v5089
  %v5583 = vmul.f32 %v5582, 0.6931472
  %v5584 = vlog2.pop %v5092
  %v5585 = vmul.f32 %v5584, 0.6931472
  %v5586 = vlog2.pop %v5095
  %v5587 = vmul.f32 %v5586, 0.6931472
  %v5588 = vlog2.pop %v5098
  %v5589 = vmul.f32 %v5588, 0.6931472
  %v5590 = vlog2.pop %v5101
  %v5591 = vmul.f32 %v5590, 0.6931472
  %v5592 = vlog2.pop %v5104
  %v5593 = vmul.f32 %v5592, 0.6931472
  %v5594 = vlog2.pop %v5107
  %v5595 = vmul.f32 %v5594, 0.6931472
  %v5596 = vlog2.pop %v5110
  %v5597 = vmul.f32 %v5596, 0.6931472
  %v5598 = vlog2.pop %v5113
  %v5599 = vmul.f32 %v5598, 0.6931472
  %v5600 = vlog2.pop %v5116
  %v5601 = vmul.f32 %v5600, 0.6931472
  %v5602 = vlog2.pop %v5119
  %v5603 = vmul.f32 %v5602, 0.6931472
  %v5604 = vlog2.pop %v5122
  %v5605 = vmul.f32 %v5604, 0.6931472
  %v5606 = vlog2.pop %v5125
  %v5607 = vmul.f32 %v5606, 0.6931472
  %v5608 = vlog2.pop %v5128
  %v5609 = vmul.f32 %v5608, 0.6931472
  %v5610 = vlog2.pop %v5131
  %v5611 = vmul.f32 %v5610, 0.6931472
  %v5612 = vlog2.pop %v5134
  %v5613 = vmul.f32 %v5612, 0.6931472
  %v5614 = vlog2.pop %v5137
  %v5615 = vmul.f32 %v5614, 0.6931472
  %v5616 = vlog2.pop %v5140
  %v5617 = vmul.f32 %v5616, 0.6931472
  %v5618 = vlog2.pop %v5143
  %v5619 = vmul.f32 %v5618, 0.6931472
  %v5620 = vlog2.pop %v5146
  %v5621 = vmul.f32 %v5620, 0.6931472
  %v5622 = vlog2.pop %v5149
  %v5623 = vmul.f32 %v5622, 0.6931472
  %v5624 = vlog2.pop %v5152
  %v5625 = vmul.f32 %v5624, 0.6931472
  %v5626 = vlog2.pop %v5155
  %v5627 = vmul.f32 %v5626, 0.6931472
  %v5628 = vlog2.pop %v5158
  %v5629 = vmul.f32 %v5628, 0.6931472
  %v5630 = vlog2.pop %v5161
  %v5631 = vmul.f32 %v5630, 0.6931472
  %v5632 = vlog2.pop %v5164
  %v5633 = vmul.f32 %v5632, 0.6931472
  %v5634 = vlog2.pop %v5167
  %v5635 = vmul.f32 %v5634, 0.6931472
  %v5636 = vlog2.pop %v5170
  %v5637 = vmul.f32 %v5636, 0.6931472
  %v5638 = vlog2.pop %v5173
  %v5639 = vmul.f32 %v5638, 0.6931472
  %v5640 = vlog2.pop %v5176
  %v5641 = vmul.f32 %v5640, 0.6931472
  %v5642 = vlog2.pop %v5179
  %v5643 = vmul.f32 %v5642, 0.6931472
  %v5644 = vlog2.pop %v5182
  %v5645 = vmul.f32 %v5644, 0.6931472
  %v5646 = vlog2.pop %v5185
  %v5647 = vmul.f32 %v5646, 0.6931472
  %v5648 = vlog2.pop %v5188
  %v5649 = vmul.f32 %v5648, 0.6931472
  %v5650 = vlog2.pop %v5191
  %v5651 = vmul.f32 %v5650, 0.6931472
  %v5652 = vlog2.pop %v5194
  %v5653 = vmul.f32 %v5652, 0.6931472
  %v5654 = vlog2.pop %v5197
  %v5655 = vmul.f32 %v5654, 0.6931472
  %v5656 = vlog2.pop %v5200
  %v5657 = vmul.f32 %v5656, 0.6931472
  %v5658 = vlog2.pop %v5203
  %v5659 = vmul.f32 %v5658, 0.6931472
  %v5660 = vlog2.pop %v5206
  %v5661 = vmul.f32 %v5660, 0.6931472
  %v5662 = vlog2.pop %v5209
  %v5663 = vmul.f32 %v5662, 0.6931472
  %v5664 = vlog2.pop %v5212
  %v5665 = vmul.f32 %v5664, 0.6931472
  %v5666 = vlog2.pop %v5215
  %v5667 = vmul.f32 %v5666, 0.6931472
  %v5668 = vlog2.pop %v5218
  %v5669 = vmul.f32 %v5668, 0.6931472
  %v5670 = vlog2.pop %v5221
  %v5671 = vmul.f32 %v5670, 0.6931472
  %v5672 = vlog2.pop %v5224
  %v5673 = vmul.f32 %v5672, 0.6931472
  %v5674 = vlog2.pop %v5227
  %v5675 = vmul.f32 %v5674, 0.6931472
  %v5676 = vlog2.pop %v5230
  %v5677 = vmul.f32 %v5676, 0.6931472
  %v5678 = vlog2.pop %v5233
  %v5679 = vmul.f32 %v5678, 0.6931472
  %v5680 = vlog2.pop %v5236
  %v5681 = vmul.f32 %v5680, 0.6931472
  %v5682 = vlog2.pop %v5239
  %v5683 = vmul.f32 %v5682, 0.6931472
  %v5684 = vlog2.pop %v5242
  %v5685 = vmul.f32 %v5684, 0.6931472
  %v5686 = vlog2.pop %v5245
  %v5687 = vmul.f32 %v5686, 0.6931472
  %v5688 = vlog2.pop %v5248
  %v5689 = vmul.f32 %v5688, 0.6931472
  %v5690 = vlog2.pop %v5251
  %v5691 = vmul.f32 %v5690, 0.6931472
  %v5692 = vlog2.pop %v5254
  %v5693 = vmul.f32 %v5692, 0.6931472
  %v5694 = vlog2.pop %v5257
  %v5695 = vmul.f32 %v5694, 0.6931472
  %v5696 = vlog2.pop %v5260
  %v5697 = vmul.f32 %v5696, 0.6931472
  %v5698 = vlog2.pop %v5263
  %v5699 = vmul.f32 %v5698, 0.6931472
  %v5700 = vlog2.pop %v5266
  %v5701 = vmul.f32 %v5700, 0.6931472
  %v5702 = vlog2.pop %v5269
  %v5703 = vmul.f32 %v5702, 0.6931472
  %v5704 = vlog2.pop %v5272
  %v5705 = vmul.f32 %v5704, 0.6931472
  %v5706 = vlog2.pop %v5275
  %v5707 = vmul.f32 %v5706, 0.6931472
  %v5708 = vlog2.pop %v5278
  %v5709 = vmul.f32 %v5708, 0.6931472
  %v5710 = vlog2.pop %v5281
  %v5711 = vmul.f32 %v5710, 0.6931472
  %v5712 = vlog2.pop %v5284
  %v5713 = vmul.f32 %v5712, 0.6931472
  %v5714 = vlog2.pop %v5287
  %v5715 = vmul.f32 %v5714, 0.6931472
  %v5716 = vlog2.pop %v5290
  %v5717 = vmul.f32 %v5716, 0.6931472
  %v5718 = vlog2.pop %v5293
  %v5719 = vmul.f32 %v5718, 0.6931472
  %v5720 = vlog2.pop %v5296
  %v5721 = vmul.f32 %v5720, 0.6931472
  %v5722 = vlog2.pop %v5299
  %v5723 = vmul.f32 %v5722, 0.6931472
  %v5724 = vlog2.pop %v5302
  %v5725 = vmul.f32 %v5724, 0.6931472
  %v5726 = vlog2.pop %v5305
  %v5727 = vmul.f32 %v5726, 0.6931472
  %v5728 = vlog2.pop %v5308
  %v5729 = vmul.f32 %v5728, 0.6931472
  %v5730 = vlog2.pop %v5311
  %v5731 = vmul.f32 %v5730, 0.6931472
  %v5732 = vlog2.pop %v5314
  %v5733 = vmul.f32 %v5732, 0.6931472
  %v5734 = vlog2.pop %v5317
  %v5735 = vmul.f32 %v5734, 0.6931472
  %v5736 = vlog2.pop %v5320
  %v5737 = vmul.f32 %v5736, 0.6931472
  %v5738 = vlog2.pop %v5323
  %v5739 = vmul.f32 %v5738, 0.6931472
  %v5740 = vlog2.pop %v5326
  %v5741 = vmul.f32 %v5740, 0.6931472
  %v5742 = vlog2.pop %v5329
  %v5743 = vmul.f32 %v5742, 0.6931472
  %v5744 = vlog2.pop %v5332
  %v5745 = vmul.f32 %v5744, 0.6931472
  %v5746 = vlog2.pop %v5335
  %v5747 = vmul.f32 %v5746, 0.6931472
  %v5748 = vlog2.pop %v5338
  %v5749 = vmul.f32 %v5748, 0.6931472
  %v5750 = vlog2.pop %v5341
  %v5751 = vmul.f32 %v5750, 0.6931472
  %v5752 = vlog2.pop %v5344
  %v5753 = vmul.f32 %v5752, 0.6931472
  %v5754 = vlog2.pop %v5347
  %v5755 = vmul.f32 %v5754, 0.6931472
  %v5756 = vlog2.pop %v5350
  %v5757 = vmul.f32 %v5756, 0.6931472
  %v5758 = vlog2.pop %v5353
  %v5759 = vmul.f32 %v5758, 0.6931472
  %v5760 = vlog2.pop %v5356
  %v5761 = vmul.f32 %v5760, 0.6931472
  %v5762 = vlog2.pop %v5359
  %v5763 = vmul.f32 %v5762, 0.6931472
  %v5764 = vlog2.pop %v5362
  %v5765 = vmul.f32 %v5764, 0.6931472
  %v5766 = vlog2.pop %v5365
  %v5767 = vmul.f32 %v5766, 0.6931472
  %v5768 = vlog2.pop %v5368
  %v5769 = vmul.f32 %v5768, 0.6931472
  %v5770 = vlog2.pop %v5371
  %v5771 = vmul.f32 %v5770, 0.6931472
  %v5772 = vlog2.pop %v5374
  %v5773 = vmul.f32 %v5772, 0.6931472
  %v5774 = vlog2.pop %v5377
  %v5775 = vmul.f32 %v5774, 0.6931472
  %v5776 = vlog2.pop %v5380
  %v5777 = vmul.f32 %v5776, 0.6931472
  %v5778 = vlog2.pop %v5383
  %v5779 = vmul.f32 %v5778, 0.6931472
  %v5780 = vlog2.pop %v5386
  %v5781 = vmul.f32 %v5780, 0.6931472
  %v5782 = vlog2.pop %v5389
  %v5783 = vmul.f32 %v5782, 0.6931472
  %v5784 = vlog2.pop %v5392
  %v5785 = vmul.f32 %v5784, 0.6931472
  %v5786 = vlog2.pop %v5395
  %v5787 = vmul.f32 %v5786, 0.6931472
  %v5788 = vlog2.pop %v5398
  %v5789 = vmul.f32 %v5788, 0.6931472
  %v5790 = vlog2.pop %v5401
  %v5791 = vmul.f32 %v5790, 0.6931472
  %v5792 = vlog2.pop %v5404
  %v5793 = vmul.f32 %v5792, 0.6931472
  %v5794 = vlog2.pop %v5407
  %v5795 = vmul.f32 %v5794, 0.6931472
  %v5796 = vlog2.pop %v5410
  %v5797 = vmul.f32 %v5796, 0.6931472
  %v5798 = vlog2.pop %v5413
  %v5799 = vmul.f32 %v5798, 0.6931472
  %v5800 = vlog2.pop %v5416
  %v5801 = vmul.f32 %v5800, 0.6931472
  %v5802 = vlog2.pop %v5419
  %v5803 = vmul.f32 %v5802, 0.6931472
  %v5804 = vlog2.pop %v5422
  %v5805 = vmul.f32 %v5804, 0.6931472
  %v5806 = vlog2.pop %v5425
  %v5807 = vmul.f32 %v5806, 0.6931472
  %v5808 = vlog2.pop %v5428
  %v5809 = vmul.f32 %v5808, 0.6931472
  %v5810 = vlog2.pop %v5431
  %v5811 = vmul.f32 %v5810, 0.6931472
  %v5812 = vlog2.pop %v5434
  %v5813 = vmul.f32 %v5812, 0.6931472
  %v5814 = vlog2.pop %v5437
  %v5815 = vmul.f32 %v5814, 0.6931472
  %v5816 = vlog2.pop %v5440
  %v5817 = vmul.f32 %v5816, 0.6931472
  %v5818 = vlog2.pop %v5443
  %v5819 = vmul.f32 %v5818, 0.6931472
  %v5820 = vsub.f32 %v4316, %v5445
  %v5821 = vsub.f32 %v4317, %v5447
  %v5822 = vsub.f32 %v4318, %v5449
  %v5823 = vsub.f32 %v4319, %v5451
  %v5824 = vsub.f32 %v4320, %v5453
  %v5825 = vsub.f32 %v4321, %v5455
  %v5826 = vsub.f32 %v4322, %v5457
  %v5827 = vsub.f32 %v4323, %v5459
  %v5828 = vsub.f32 %v4324, %v5461
  %v5829 = vsub.f32 %v4325, %v5463
  %v5830 = vsub.f32 %v4326, %v5465
  %v5831 = vsub.f32 %v4327, %v5467
  %v5832 = vsub.f32 %v4328, %v5469
  %v5833 = vsub.f32 %v4329, %v5471
  %v5834 = vsub.f32 %v4330, %v5473
  %v5835 = vsub.f32 %v4331, %v5475
  %v5836 = vsub.f32 %v4332, %v5477
  %v5837 = vsub.f32 %v4333, %v5479
  %v5838 = vsub.f32 %v4334, %v5481
  %v5839 = vsub.f32 %v4335, %v5483
  %v5840 = vsub.f32 %v4336, %v5485
  %v5841 = vsub.f32 %v4337, %v5487
  %v5842 = vsub.f32 %v4338, %v5489
  %v5843 = vsub.f32 %v4339, %v5491
  %v5844 = vsub.f32 %v4340, %v5493
  %v5845 = vsub.f32 %v4341, %v5495
  %v5846 = vsub.f32 %v4342, %v5497
  %v5847 = vsub.f32 %v4343, %v5499
  %v5848 = vsub.f32 %v4344, %v5501
  %v5849 = vsub.f32 %v4345, %v5503
  %v5850 = vsub.f32 %v4346, %v5505
  %v5851 = vsub.f32 %v4347, %v5507
  %v5852 = vsub.f32 %v4348, %v5509
  %v5853 = vsub.f32 %v4349, %v5511
  %v5854 = vsub.f32 %v4350, %v5513
  %v5855 = vsub.f32 %v4351, %v5515
  %v5856 = vsub.f32 %v4352, %v5517
  %v5857 = vsub.f32 %v4353, %v5519
  %v5858 = vsub.f32 %v4354, %v5521
  %v5859 = vsub.f32 %v4355, %v5523
  %v5860 = vsub.f32 %v4356, %v5525
  %v5861 = vsub.f32 %v4357, %v5527
  %v5862 = vsub.f32 %v4358, %v5529
  %v5863 = vsub.f32 %v4359, %v5531
  %v5864 = vsub.f32 %v4360, %v5533
  %v5865 = vsub.f32 %v4361, %v5535
  %v5866 = vsub.f32 %v4362, %v5537
  %v5867 = vsub.f32 %v4363, %v5539
  %v5868 = vsub.f32 %v4364, %v5541
  %v5869 = vsub.f32 %v4365, %v5543
  %v5870 = vsub.f32 %v4366, %v5545
  %v5871 = vsub.f32 %v4367, %v5547
  %v5872 = vsub.f32 %v4368, %v5549
  %v5873 = vsub.f32 %v4369, %v5551
  %v5874 = vsub.f32 %v4370, %v5553
  %v5875 = vsub.f32 %v4371, %v5555
  %v5876 = vsub.f32 %v4372, %v5557
  %v5877 = vsub.f32 %v4373, %v5559
  %v5878 = vsub.f32 %v4374, %v5561
  %v5879 = vsub.f32 %v4375, %v5563
  %v5880 = vsub.f32 %v4376, %v5565
  %v5881 = vsub.f32 %v4377, %v5567
  %v5882 = vsub.f32 %v4378, %v5569
  %v5883 = vsub.f32 %v4379, %v5571
  %v5884 = vsub.f32 %v4380, %v5573
  %v5885 = vsub.f32 %v4381, %v5575
  %v5886 = vsub.f32 %v4382, %v5577
  %v5887 = vsub.f32 %v4383, %v5579
  %v5888 = vsub.f32 %v4384, %v5581
  %v5889 = vsub.f32 %v4385, %v5583
  %v5890 = vsub.f32 %v4386, %v5585
  %v5891 = vsub.f32 %v4387, %v5587
  %v5892 = vsub.f32 %v4388, %v5589
  %v5893 = vsub.f32 %v4389, %v5591
  %v5894 = vsub.f32 %v4390, %v5593
  %v5895 = vsub.f32 %v4391, %v5595
  %v5896 = vsub.f32 %v4392, %v5597
  %v5897 = vsub.f32 %v4393, %v5599
  %v5898 = vsub.f32 %v4394, %v5601
  %v5899 = vsub.f32 %v4395, %v5603
  %v5900 = vsub.f32 %v4396, %v5605
  %v5901 = vsub.f32 %v4397, %v5607
  %v5902 = vsub.f32 %v4398, %v5609
  %v5903 = vsub.f32 %v4399, %v5611
  %v5904 = vsub.f32 %v4400, %v5613
  %v5905 = vsub.f32 %v4401, %v5615
  %v5906 = vsub.f32 %v4402, %v5617
  %v5907 = vsub.f32 %v4403, %v5619
  %v5908 = vsub.f32 %v4404, %v5621
  %v5909 = vsub.f32 %v4405, %v5623
  %v5910 = vsub.f32 %v4406, %v5625
  %v5911 = vsub.f32 %v4407, %v5627
  %v5912 = vsub.f32 %v4408, %v5629
  %v5913 = vsub.f32 %v4409, %v5631
  %v5914 = vsub.f32 %v4410, %v5633
  %v5915 = vsub.f32 %v4411, %v5635
  %v5916 = vsub.f32 %v4412, %v5637
  %v5917 = vsub.f32 %v4413, %v5639
  %v5918 = vsub.f32 %v4414, %v5641
  %v5919 = vsub.f32 %v4415, %v5643
  %v5920 = vsub.f32 %v4416, %v5645
  %v5921 = vsub.f32 %v4417, %v5647
  %v5922 = vsub.f32 %v4418, %v5649
  %v5923 = vsub.f32 %v4419, %v5651
  %v5924 = vsub.f32 %v4420, %v5653
  %v5925 = vsub.f32 %v4421, %v5655
  %v5926 = vsub.f32 %v4422, %v5657
  %v5927 = vsub.f32 %v4423, %v5659
  %v5928 = vsub.f32 %v4424, %v5661
  %v5929 = vsub.f32 %v4425, %v5663
  %v5930 = vsub.f32 %v4426, %v5665
  %v5931 = vsub.f32 %v4427, %v5667
  %v5932 = vsub.f32 %v4428, %v5669
  %v5933 = vsub.f32 %v4429, %v5671
  %v5934 = vsub.f32 %v4430, %v5673
  %v5935 = vsub.f32 %v4431, %v5675
  %v5936 = vsub.f32 %v4432, %v5677
  %v5937 = vsub.f32 %v4433, %v5679
  %v5938 = vsub.f32 %v4434, %v5681
  %v5939 = vsub.f32 %v4435, %v5683
  %v5940 = vsub.f32 %v4436, %v5685
  %v5941 = vsub.f32 %v4437, %v5687
  %v5942 = vsub.f32 %v4438, %v5689
  %v5943 = vsub.f32 %v4439, %v5691
  %v5944 = vsub.f32 %v4440, %v5693
  %v5945 = vsub.f32 %v4441, %v5695
  %v5946 = vsub.f32 %v4442, %v5697
  %v5947 = vsub.f32 %v4443, %v5699
  %v5948 = vsub.f32 %v4444, %v5701
  %v5949 = vsub.f32 %v4445, %v5703
  %v5950 = vsub.f32 %v4446, %v5705
  %v5951 = vsub.f32 %v4447, %v5707
  %v5952 = vsub.f32 %v4448, %v5709
  %v5953 = vsub.f32 %v4449, %v5711
  %v5954 = vsub.f32 %v4450, %v5713
  %v5955 = vsub.f32 %v4451, %v5715
  %v5956 = vsub.f32 %v4452, %v5717
  %v5957 = vsub.f32 %v4453, %v5719
  %v5958 = vsub.f32 %v4454, %v5721
  %v5959 = vsub.f32 %v4455, %v5723
  %v5960 = vsub.f32 %v4456, %v5725
  %v5961 = vsub.f32 %v4457, %v5727
  %v5962 = vsub.f32 %v4458, %v5729
  %v5963 = vsub.f32 %v4459, %v5731
  %v5964 = vsub.f32 %v4460, %v5733
  %v5965 = vsub.f32 %v4461, %v5735
  %v5966 = vsub.f32 %v4462, %v5737
  %v5967 = vsub.f32 %v4463, %v5739
  %v5968 = vsub.f32 %v4464, %v5741
  %v5969 = vsub.f32 %v4465, %v5743
  %v5970 = vsub.f32 %v4466, %v5745
  %v5971 = vsub.f32 %v4467, %v5747
  %v5972 = vsub.f32 %v4468, %v5749
  %v5973 = vsub.f32 %v4469, %v5751
  %v5974 = vsub.f32 %v4470, %v5753
  %v5975 = vsub.f32 %v4471, %v5755
  %v5976 = vsub.f32 %v4472, %v5757
  %v5977 = vsub.f32 %v4473, %v5759
  %v5978 = vsub.f32 %v4474, %v5761
  %v5979 = vsub.f32 %v4475, %v5763
  %v5980 = vsub.f32 %v4476, %v5765
  %v5981 = vsub.f32 %v4477, %v5767
  %v5982 = vsub.f32 %v4478, %v5769
  %v5983 = vsub.f32 %v4479, %v5771
  %v5984 = vsub.f32 %v4480, %v5773
  %v5985 = vsub.f32 %v4481, %v5775
  %v5986 = vsub.f32 %v4482, %v5777
  %v5987 = vsub.f32 %v4483, %v5779
  %v5988 = vsub.f32 %v4484, %v5781
  %v5989 = vsub.f32 %v4485, %v5783
  %v5990 = vsub.f32 %v4486, %v5785
  %v5991 = vsub.f32 %v4487, %v5787
  %v5992 = vsub.f32 %v4488, %v5789
  %v5993 = vsub.f32 %v4489, %v5791
  %v5994 = vsub.f32 %v4490, %v5793
  %v5995 = vsub.f32 %v4491, %v5795
  %v5996 = vsub.f32 %v4492, %v5797
  %v5997 = vsub.f32 %v4493, %v5799
  %v5998 = vsub.f32 %v4494, %v5801
  %v5999 = vsub.f32 %v4495, %v5803
  %v6000 = vsub.f32 %v4496, %v5805
  %v6001 = vsub.f32 %v4497, %v5807
  %v6002 = vsub.f32 %v4498, %v5809
  %v6003 = vsub.f32 %v4499, %v5811
  %v6004 = vsub.f32 %v4500, %v5813
  %v6005 = vsub.f32 %v4501, %v5815
  %v6006 = vsub.f32 %v4502, %v5817
  %v6007 = vsub.f32 %v4503, %v5819
  %6008 = vst.msk [vmem:[%s5] sm:$0xff] %vm3750, %v5820
  %6009 = vst.msk [vmem:[%s5 + $0x8] sm:$0xff] %vm3750, %v5821
  %6010 = vst.msk [vmem:[%s5 + $0x10] sm:$0xff] %vm3750, %v5822
  %6011 = vst.msk [vmem:[%s5 + $0x18] sm:$0xff] %vm3750, %v5823
  %6012 = vst.msk [vmem:[%s5 + $0x20] sm:$0xff] %vm3750, %v5824
  %6013 = vst.msk [vmem:[%s5 + $0x28] sm:$0xff] %vm3750, %v5825
  %6014 = vst.msk [vmem:[%s5 + $0x30] sm:$0xff] %vm3750, %v5826
  %6015 = vst.msk [vmem:[%s5 + $0x38] sm:$0xff] %vm3750, %v5827
  %6016 = vst.msk [vmem:[%s5 + $0x40] sm:$0xff] %vm3750, %v5828
  %6017 = vst.msk [vmem:[%s5 + $0x48] sm:$0xff] %vm3750, %v5829
  %6018 = vst.msk [vmem:[%s5 + $0x50] sm:$0xff] %vm3750, %v5830
  %6019 = vst.msk [vmem:[%s5 + $0x58] sm:$0xff] %vm3750, %v5831
  %6020 = vst.msk [vmem:[%s5 + $0x60] sm:$0xff] %vm3750, %v5832
  %6021 = vst.msk [vmem:[%s5 + $0x68] sm:$0xff] %vm3750, %v5833
  %6022 = vst.msk [vmem:[%s5 + $0x70] sm:$0xff] %vm3750, %v5834
  %6023 = vst.msk [vmem:[%s5 + $0x78] sm:$0xff] %vm3750, %v5835
  %6024 = vst.msk [vmem:[%s5 + $0x80] sm:$0xff] %vm3750, %v5836
  %6025 = vst.msk [vmem:[%s5 + $0x88] sm:$0xff] %vm3750, %v5837
  %6026 = vst.msk [vmem:[%s5 + $0x90] sm:$0xff] %vm3750, %v5838
  %6027 = vst.msk [vmem:[%s5 + $0x98] sm:$0xff] %vm3750, %v5839
  %6028 = vst.msk [vmem:[%s5 + $0xa0] sm:$0xff] %vm3750, %v5840
  %6029 = vst.msk [vmem:[%s5 + $0xa8] sm:$0xff] %vm3750, %v5841
  %6030 = vst.msk [vmem:[%s5 + $0xb0] sm:$0xff] %vm3750, %v5842
  %6031 = vst.msk [vmem:[%s5 + $0xb8] sm:$0xff] %vm3750, %v5843
  %6032 = vst.msk [vmem:[%s5 + $0xc0] sm:$0xff] %vm3750, %v5844
  %6033 = vst.msk [vmem:[%s5 + $0xc8] sm:$0xff] %vm3750, %v5845
  %6034 = vst.msk [vmem:[%s5 + $0xd0] sm:$0xff] %vm3750, %v5846
  %6035 = vst.msk [vmem:[%s5 + $0xd8] sm:$0xff] %vm3750, %v5847
  %6036 = vst.msk [vmem:[%s5 + $0xe0] sm:$0xff] %vm3750, %v5848
  %6037 = vst.msk [vmem:[%s5 + $0xe8] sm:$0xff] %vm3750, %v5849
  %6038 = vst.msk [vmem:[%s5 + $0xf0] sm:$0xff] %vm3750, %v5850
  %6039 = vst.msk [vmem:[%s5 + $0xf8] sm:$0xff] %vm3750, %v5851
  %6040 = vst.msk [vmem:[%s5 + $0x100] sm:$0xff] %vm3750, %v5852
  %6041 = vst.msk [vmem:[%s5 + $0x108] sm:$0xff] %vm3750, %v5853
  %6042 = vst.msk [vmem:[%s5 + $0x110] sm:$0xff] %vm3750, %v5854
  %6043 = vst.msk [vmem:[%s5 + $0x118] sm:$0xff] %vm3750, %v5855
  %6044 = vst.msk [vmem:[%s5 + $0x120] sm:$0xff] %vm3750, %v5856
  %6045 = vst.msk [vmem:[%s5 + $0x128] sm:$0xff] %vm3750, %v5857
  %6046 = vst.msk [vmem:[%s5 + $0x130] sm:$0xff] %vm3750, %v5858
  %6047 = vst.msk [vmem:[%s5 + $0x138] sm:$0xff] %vm3750, %v5859
  %6048 = vst.msk [vmem:[%s5 + $0x140] sm:$0xff] %vm3750, %v5860
  %6049 = vst.msk [vmem:[%s5 + $0x148] sm:$0xff] %vm3750, %v5861
  %6050 = vst.msk [vmem:[%s5 + $0x150] sm:$0xff] %vm3750, %v5862
  %6051 = vst.msk [vmem:[%s5 + $0x158] sm:$0xff] %vm3750, %v5863
  %6052 = vst.msk [vmem:[%s5 + $0x160] sm:$0xff] %vm3750, %v5864
  %6053 = vst.msk [vmem:[%s5 + $0x168] sm:$0xff] %vm3750, %v5865
  %6054 = vst.msk [vmem:[%s5 + $0x170] sm:$0xff] %vm3750, %v5866
  %6055 = vst.msk [vmem:[%s5 + $0x178] sm:$0xff] %vm3750, %v5867
  %6056 = vst.msk [vmem:[%s5 + $0x180] sm:$0xff] %vm3750, %v5868
  %6057 = vst.msk [vmem:[%s5 + $0x188] sm:$0xff] %vm3750, %v5869
  %6058 = vst.msk [vmem:[%s5 + $0x190] sm:$0xff] %vm3750, %v5870
  %6059 = vst.msk [vmem:[%s5 + $0x198] sm:$0xff] %vm3750, %v5871
  %6060 = vst.msk [vmem:[%s5 + $0x1a0] sm:$0xff] %vm3750, %v5872
  %6061 = vst.msk [vmem:[%s5 + $0x1a8] sm:$0xff] %vm3750, %v5873
  %6062 = vst.msk [vmem:[%s5 + $0x1b0] sm:$0xff] %vm3750, %v5874
  %6063 = vst.msk [vmem:[%s5 + $0x1b8] sm:$0xff] %vm3750, %v5875
  %6064 = vst.msk [vmem:[%s5 + $0x1c0] sm:$0xff] %vm3750, %v5876
  %6065 = vst.msk [vmem:[%s5 + $0x1c8] sm:$0xff] %vm3750, %v5877
  %6066 = vst.msk [vmem:[%s5 + $0x1d0] sm:$0xff] %vm3750, %v5878
  %6067 = vst.msk [vmem:[%s5 + $0x1d8] sm:$0xff] %vm3750, %v5879
  %6068 = vst.msk [vmem:[%s5 + $0x1e0] sm:$0xff] %vm3750, %v5880
  %6069 = vst.msk [vmem:[%s5 + $0x1e8] sm:$0xff] %vm3750, %v5881
  %6070 = vst.msk [vmem:[%s5 + $0x1f0] sm:$0xff] %vm3750, %v5882
  %6071 = vst.msk [vmem:[%s5 + $0x1f8] sm:$0xff] %vm3750, %v5883
  %6072 = vst.msk [vmem:[%s5 + $0x200] sm:$0xff] %vm3750, %v5884
  %6073 = vst.msk [vmem:[%s5 + $0x208] sm:$0xff] %vm3750, %v5885
  %6074 = vst.msk [vmem:[%s5 + $0x210] sm:$0xff] %vm3750, %v5886
  %6075 = vst.msk [vmem:[%s5 + $0x218] sm:$0xff] %vm3750, %v5887
  %6076 = vst.msk [vmem:[%s5 + $0x220] sm:$0xff] %vm3750, %v5888
  %6077 = vst.msk [vmem:[%s5 + $0x228] sm:$0xff] %vm3750, %v5889
  %6078 = vst.msk [vmem:[%s5 + $0x230] sm:$0xff] %vm3750, %v5890
  %6079 = vst.msk [vmem:[%s5 + $0x238] sm:$0xff] %vm3750, %v5891
  %6080 = vst.msk [vmem:[%s5 + $0x240] sm:$0xff] %vm3750, %v5892
  %6081 = vst.msk [vmem:[%s5 + $0x248] sm:$0xff] %vm3750, %v5893
  %6082 = vst.msk [vmem:[%s5 + $0x250] sm:$0xff] %vm3750, %v5894
  %6083 = vst.msk [vmem:[%s5 + $0x258] sm:$0xff] %vm3750, %v5895
  %6084 = vst.msk [vmem:[%s5 + $0x260] sm:$0xff] %vm3750, %v5896
  %6085 = vst.msk [vmem:[%s5 + $0x268] sm:$0xff] %vm3750, %v5897
  %6086 = vst.msk [vmem:[%s5 + $0x270] sm:$0xff] %vm3750, %v5898
  %6087 = vst.msk [vmem:[%s5 + $0x278] sm:$0xff] %vm3750, %v5899
  %6088 = vst.msk [vmem:[%s5 + $0x280] sm:$0xff] %vm3750, %v5900
  %6089 = vst.msk [vmem:[%s5 + $0x288] sm:$0xff] %vm3750, %v5901
  %6090 = vst.msk [vmem:[%s5 + $0x290] sm:$0xff] %vm3750, %v5902
  %6091 = vst.msk [vmem:[%s5 + $0x298] sm:$0xff] %vm3750, %v5903
  %6092 = vst.msk [vmem:[%s5 + $0x2a0] sm:$0xff] %vm3750, %v5904
  %6093 = vst.msk [vmem:[%s5 + $0x2a8] sm:$0xff] %vm3750, %v5905
  %6094 = vst.msk [vmem:[%s5 + $0x2b0] sm:$0xff] %vm3750, %v5906
  %6095 = vst.msk [vmem:[%s5 + $0x2b8] sm:$0xff] %vm3750, %v5907
  %6096 = vst.msk [vmem:[%s5 + $0x2c0] sm:$0xff] %vm3750, %v5908
  %6097 = vst.msk [vmem:[%s5 + $0x2c8] sm:$0xff] %vm3750, %v5909
  %6098 = vst.msk [vmem:[%s5 + $0x2d0] sm:$0xff] %vm3750, %v5910
  %6099 = vst.msk [vmem:[%s5 + $0x2d8] sm:$0xff] %vm3750, %v5911
  %6100 = vst.msk [vmem:[%s5 + $0x2e0] sm:$0xff] %vm3750, %v5912
  %6101 = vst.msk [vmem:[%s5 + $0x2e8] sm:$0xff] %vm3750, %v5913
  %6102 = vst.msk [vmem:[%s5 + $0x2f0] sm:$0xff] %vm3750, %v5914
  %6103 = vst.msk [vmem:[%s5 + $0x2f8] sm:$0xff] %vm3750, %v5915
  %6104 = vst.msk [vmem:[%s5 + $0x300] sm:$0xff] %vm3750, %v5916
  %6105 = vst.msk [vmem:[%s5 + $0x308] sm:$0xff] %vm3750, %v5917
  %6106 = vst.msk [vmem:[%s5 + $0x310] sm:$0xff] %vm3750, %v5918
  %6107 = vst.msk [vmem:[%s5 + $0x318] sm:$0xff] %vm3750, %v5919
  %6108 = vst.msk [vmem:[%s5 + $0x320] sm:$0xff] %vm3750, %v5920
  %6109 = vst.msk [vmem:[%s5 + $0x328] sm:$0xff] %vm3750, %v5921
  %6110 = vst.msk [vmem:[%s5 + $0x330] sm:$0xff] %vm3750, %v5922
  %6111 = vst.msk [vmem:[%s5 + $0x338] sm:$0xff] %vm3750, %v5923
  %6112 = vst.msk [vmem:[%s5 + $0x340] sm:$0xff] %vm3750, %v5924
  %6113 = vst.msk [vmem:[%s5 + $0x348] sm:$0xff] %vm3750, %v5925
  %6114 = vst.msk [vmem:[%s5 + $0x350] sm:$0xff] %vm3750, %v5926
  %6115 = vst.msk [vmem:[%s5 + $0x358] sm:$0xff] %vm3750, %v5927
  %6116 = vst.msk [vmem:[%s5 + $0x360] sm:$0xff] %vm3750, %v5928
  %6117 = vst.msk [vmem:[%s5 + $0x368] sm:$0xff] %vm3750, %v5929
  %6118 = vst.msk [vmem:[%s5 + $0x370] sm:$0xff] %vm3750, %v5930
  %6119 = vst.msk [vmem:[%s5 + $0x378] sm:$0xff] %vm3750, %v5931
  %6120 = vst.msk [vmem:[%s5 + $0x380] sm:$0xff] %vm3750, %v5932
  %6121 = vst.msk [vmem:[%s5 + $0x388] sm:$0xff] %vm3750, %v5933
  %6122 = vst.msk [vmem:[%s5 + $0x390] sm:$0xff] %vm3750, %v5934
  %6123 = vst.msk [vmem:[%s5 + $0x398] sm:$0xff] %vm3750, %v5935
  %6124 = vst.msk [vmem:[%s5 + $0x3a0] sm:$0xff] %vm3750, %v5936
  %6125 = vst.msk [vmem:[%s5 + $0x3a8] sm:$0xff] %vm3750, %v5937
  %6126 = vst.msk [vmem:[%s5 + $0x3b0] sm:$0xff] %vm3750, %v5938
  %6127 = vst.msk [vmem:[%s5 + $0x3b8] sm:$0xff] %vm3750, %v5939
  %6128 = vst.msk [vmem:[%s5 + $0x3c0] sm:$0xff] %vm3750, %v5940
  %6129 = vst.msk [vmem:[%s5 + $0x3c8] sm:$0xff] %vm3750, %v5941
  %6130 = vst.msk [vmem:[%s5 + $0x3d0] sm:$0xff] %vm3750, %v5942
  %6131 = vst.msk [vmem:[%s5 + $0x3d8] sm:$0xff] %vm3750, %v5943
  %6132 = vst.msk [vmem:[%s5 + $0x3e0] sm:$0xff] %vm3750, %v5944
  %6133 = vst.msk [vmem:[%s5 + $0x3e8] sm:$0xff] %vm3750, %v5945
  %6134 = vst.msk [vmem:[%s5 + $0x3f0] sm:$0xff] %vm3750, %v5946
  %6135 = vst.msk [vmem:[%s5 + $0x3f8] sm:$0xff] %vm3750, %v5947
  %6136 = vst.msk [vmem:[%s5 + $0x400] sm:$0xff] %vm3750, %v5948
  %6137 = vst.msk [vmem:[%s5 + $0x408] sm:$0xff] %vm3750, %v5949
  %6138 = vst.msk [vmem:[%s5 + $0x410] sm:$0xff] %vm3750, %v5950
  %6139 = vst.msk [vmem:[%s5 + $0x418] sm:$0xff] %vm3750, %v5951
  %6140 = vst.msk [vmem:[%s5 + $0x420] sm:$0xff] %vm3750, %v5952
  %6141 = vst.msk [vmem:[%s5 + $0x428] sm:$0xff] %vm3750, %v5953
  %6142 = vst.msk [vmem:[%s5 + $0x430] sm:$0xff] %vm3750, %v5954
  %6143 = vst.msk [vmem:[%s5 + $0x438] sm:$0xff] %vm3750, %v5955
  %6144 = vst.msk [vmem:[%s5 + $0x440] sm:$0xff] %vm3750, %v5956
  %6145 = vst.msk [vmem:[%s5 + $0x448] sm:$0xff] %vm3750, %v5957
  %6146 = vst.msk [vmem:[%s5 + $0x450] sm:$0xff] %vm3750, %v5958
  %6147 = vst.msk [vmem:[%s5 + $0x458] sm:$0xff] %vm3750, %v5959
  %6148 = vst.msk [vmem:[%s5 + $0x460] sm:$0xff] %vm3750, %v5960
  %6149 = vst.msk [vmem:[%s5 + $0x468] sm:$0xff] %vm3750, %v5961
  %6150 = vst.msk [vmem:[%s5 + $0x470] sm:$0xff] %vm3750, %v5962
  %6151 = vst.msk [vmem:[%s5 + $0x478] sm:$0xff] %vm3750, %v5963
  %6152 = vst.msk [vmem:[%s5 + $0x480] sm:$0xff] %vm3750, %v5964
  %6153 = vst.msk [vmem:[%s5 + $0x488] sm:$0xff] %vm3750, %v5965
  %6154 = vst.msk [vmem:[%s5 + $0x490] sm:$0xff] %vm3750, %v5966
  %6155 = vst.msk [vmem:[%s5 + $0x498] sm:$0xff] %vm3750, %v5967
  %6156 = vst.msk [vmem:[%s5 + $0x4a0] sm:$0xff] %vm3750, %v5968
  %6157 = vst.msk [vmem:[%s5 + $0x4a8] sm:$0xff] %vm3750, %v5969
  %6158 = vst.msk [vmem:[%s5 + $0x4b0] sm:$0xff] %vm3750, %v5970
  %6159 = vst.msk [vmem:[%s5 + $0x4b8] sm:$0xff] %vm3750, %v5971
  %6160 = vst.msk [vmem:[%s5 + $0x4c0] sm:$0xff] %vm3750, %v5972
  %6161 = vst.msk [vmem:[%s5 + $0x4c8] sm:$0xff] %vm3750, %v5973
  %6162 = vst.msk [vmem:[%s5 + $0x4d0] sm:$0xff] %vm3750, %v5974
  %6163 = vst.msk [vmem:[%s5 + $0x4d8] sm:$0xff] %vm3750, %v5975
  %6164 = vst.msk [vmem:[%s5 + $0x4e0] sm:$0xff] %vm3750, %v5976
  %6165 = vst.msk [vmem:[%s5 + $0x4e8] sm:$0xff] %vm3750, %v5977
  %6166 = vst.msk [vmem:[%s5 + $0x4f0] sm:$0xff] %vm3750, %v5978
  %6167 = vst.msk [vmem:[%s5 + $0x4f8] sm:$0xff] %vm3750, %v5979
  %6168 = vst.msk [vmem:[%s5 + $0x500] sm:$0xff] %vm3750, %v5980
  %6169 = vst.msk [vmem:[%s5 + $0x508] sm:$0xff] %vm3750, %v5981
  %6170 = vst.msk [vmem:[%s5 + $0x510] sm:$0xff] %vm3750, %v5982
  %6171 = vst.msk [vmem:[%s5 + $0x518] sm:$0xff] %vm3750, %v5983
  %6172 = vst.msk [vmem:[%s5 + $0x520] sm:$0xff] %vm3750, %v5984
  %6173 = vst.msk [vmem:[%s5 + $0x528] sm:$0xff] %vm3750, %v5985
  %6174 = vst.msk [vmem:[%s5 + $0x530] sm:$0xff] %vm3750, %v5986
  %6175 = vst.msk [vmem:[%s5 + $0x538] sm:$0xff] %vm3750, %v5987
  %6176 = vst.msk [vmem:[%s5 + $0x540] sm:$0xff] %vm3750, %v5988
  %6177 = vst.msk [vmem:[%s5 + $0x548] sm:$0xff] %vm3750, %v5989
  %6178 = vst.msk [vmem:[%s5 + $0x550] sm:$0xff] %vm3750, %v5990
  %6179 = vst.msk [vmem:[%s5 + $0x558] sm:$0xff] %vm3750, %v5991
  %6180 = vst.msk [vmem:[%s5 + $0x560] sm:$0xff] %vm3750, %v5992
  %6181 = vst.msk [vmem:[%s5 + $0x568] sm:$0xff] %vm3750, %v5993
  %6182 = vst.msk [vmem:[%s5 + $0x570] sm:$0xff] %vm3750, %v5994
  %6183 = vst.msk [vmem:[%s5 + $0x578] sm:$0xff] %vm3750, %v5995
  %6184 = vst.msk [vmem:[%s5 + $0x580] sm:$0xff] %vm3750, %v5996
  %6185 = vst.msk [vmem:[%s5 + $0x588] sm:$0xff] %vm3750, %v5997
  %6186 = vst.msk [vmem:[%s5 + $0x590] sm:$0xff] %vm3750, %v5998
  %6187 = vst.msk [vmem:[%s5 + $0x598] sm:$0xff] %vm3750, %v5999
  %6188 = vst.msk [vmem:[%s5 + $0x5a0] sm:$0xff] %vm3750, %v6000
  %6189 = vst.msk [vmem:[%s5 + $0x5a8] sm:$0xff] %vm3750, %v6001
  %6190 = vst.msk [vmem:[%s5 + $0x5b0] sm:$0xff] %vm3750, %v6002
  %6191 = vst.msk [vmem:[%s5 + $0x5b8] sm:$0xff] %vm3750, %v6003
  %6192 = vst.msk [vmem:[%s5 + $0x5c0] sm:$0xff] %vm3750, %v6004
  %6193 = vst.msk [vmem:[%s5 + $0x5c8] sm:$0xff] %vm3750, %v6005
  %6194 = vst.msk [vmem:[%s5 + $0x5d0] sm:$0xff] %vm3750, %v6006
  %6195 = vst.msk [vmem:[%s5 + $0x5d8] sm:$0xf] %vm4312, %v6007
  // Predicated region
  $region22: #{tpu_custom_call.1} parent=0 // pred_check
    _
  $region23: #{tpu_custom_call.1} parent=0 // pred_check_branch
    %6197 = sbr.rel (0) target = $region25
  $region24: #{tpu_custom_call.1} parent=0 // pred_region
    _
  $region25: #{tpu_custom_call.1} parent=0 // pred_fallthru
    _
  // Predicated region
  $region26: #{tpu_custom_call.1} parent=0 // pred_check
    _
  $region27: #{tpu_custom_call.1} parent=0 // pred_check_branch
    %6199 = sbr.rel (0) target = $region29
  $region28: #{tpu_custom_call.1} parent=0 // pred_region
    _
  $region29: #{tpu_custom_call.1} parent=0 // pred_fallthru
    _

</llo_original>
